<compile_context>
chip_gen: v5e
topology: v5e:2x2
jax: 0.10.0
libtpu: 0.0.40
codegen_flags: <defaults>
</compile_context>

<pallas_src>
import numpy as np

import jax
import jax.numpy as jnp
from jax.experimental import pallas as pl
from jax.experimental.pallas import tpu as pltpu


BB = 8  # images processed per grid step


# ------------------------------ Pallas kernel ------------------------------

def _cnn_fused_kernel(x_ref, t1_ref, b1_ref, s1_ref, t2_ref, b2_ref, s2_ref,
                      w1_ref, fb1_ref, w2_ref, fb2_ref, w3_ref, fb3_ref,
                      o_ref):
    """BB padded images -> BB rows of (padded) log-probabilities."""
    # ---- stack the BB padded (32,32) images along the row (M) dimension ----
    # xf row 32*b + r = row r of padded image b; 8 trailing zero rows so the
    # kh-shifted slices below are uniform (the rows they produce for
    # i in 28..31 of each image are garbage and never selected by the pool).
    xf = jnp.concatenate(
        [x_ref[b] for b in range(BB)] + [jnp.zeros((8, 32), jnp.float32)],
        axis=0)                                               # (264, 32) f32

    # ---- conv1 (1->8, k=5, pad=2): 5 kh-shifted Toeplitz matmuls, M=256 ----
    y1 = jnp.broadcast_to(b1_ref[...], (BB * 32, 256))        # bias-init acc
    for kh in range(5):
        a = xf[kh:kh + BB * 32, :].astype(jnp.bfloat16)       # (256, 32)
        y1 = y1 + jnp.dot(a, t1_ref[kh * 32:(kh + 1) * 32, :],
                          preferred_element_type=jnp.float32)
    y1 = jnp.maximum(y1, 0.0)
    # 2x2 pool: W via the two aligned 128-lane parity halves, H via one
    # stacked even/odd selection matmul + aligned sublane-half max.
    yw = jnp.maximum(y1[:, :128], y1[:, 128:]).astype(jnp.bfloat16)  # (256,128)
    r1 = jnp.dot(s1_ref[...], yw, preferred_element_type=jnp.float32)  # (224,128)
    p1 = jnp.maximum(r1[:BB * 14, :], r1[BB * 14:, :])        # (112, 128)
    # p1 row = 14*b + j, col = c_in*14 + w (112 valid + 16 zero pad)

    # ---- conv2 (8->16, k=3): 3 kh-shifted Toeplitz matmuls, M=112 ----
    p1 = jnp.concatenate([p1, jnp.zeros((8, 128), jnp.float32)], axis=0)
    y2 = jnp.broadcast_to(b2_ref[...], (BB * 14, 256))
    for kh in range(3):
        a = p1[kh:kh + BB * 14, :].astype(jnp.bfloat16)       # (112, 128)
        y2 = y2 + jnp.dot(a, t2_ref[kh * 128:(kh + 1) * 128, :],
                          preferred_element_type=jnp.float32)
    y2 = jnp.maximum(y2, 0.0)
    y2w = jnp.maximum(y2[:, :128], y2[:, 128:]).astype(jnp.bfloat16)  # (112,128)
    # pool-H + channels-last flatten in one selection matmul: result rows
    # h*16 + b are the even picks, h*16 + 8 + b the odd picks.
    r2 = jnp.dot(s2_ref[...], y2w, preferred_element_type=jnp.float32)  # (96,128)
    feat = jnp.concatenate(
        [jnp.maximum(r2[h * 16:h * 16 + BB, :],
                     r2[h * 16 + BB:h * 16 + 2 * BB, :]) for h in range(6)],
        axis=1).astype(jnp.bfloat16)                          # (BB, 768)

    # ---- fused fc1+ReLU -> fc2+ReLU -> fc3 -> log_softmax ----
    z = jnp.dot(feat, w1_ref[...], preferred_element_type=jnp.float32)
    z = jnp.maximum(z + fb1_ref[...], 0.0).astype(jnp.bfloat16)       # (BB,640)
    # TODO(synk): training-mode dropout after fc1 not applied (eval-mode
    # dropout is the identity, which this reproduces).
    z = jnp.dot(z, w2_ref[...], preferred_element_type=jnp.float32)
    z = jnp.maximum(z + fb2_ref[...], 0.0).astype(jnp.bfloat16)       # (BB,128)
    z = jnp.dot(z, w3_ref[...], preferred_element_type=jnp.float32)
    z = z + fb3_ref[...]                         # pad logits get -1e30 bias
    m = jnp.max(z, axis=-1, keepdims=True)
    s = z - m
    lse = jnp.log(jnp.sum(jnp.exp(s), axis=-1, keepdims=True))
    o_ref[...] = s - lse                                      # (BB, 128)


# ---------------------------- pallas_call wrapper ---------------------------

def cnn_pallas(xp, prep):
    """xp: (Bp, 32, 32) padded images (Bp multiple of BB) -> (Bp, 128)."""
    Bp = xp.shape[0]
    steps = Bp // BB
    fixed = lambda b: (0, 0)

    flops_per_step = (5 * 2 * 256 * 32 * 256 + 2 * 224 * 256 * 128 +
                      3 * 2 * 112 * 128 * 256 + 2 * 96 * 112 * 128 +
                      2 * BB * 768 * 640 + 2 * BB * 640 * 128 +
                      2 * BB * 128 * 128)
    weight_bytes = sum(int(np.prod(prep[k].shape)) * prep[k].dtype.itemsize
                       for k in prep)

    return pl.pallas_call(
        _cnn_fused_kernel,
        out_shape=jax.ShapeDtypeStruct((Bp, 128), jnp.float32),
        grid=(steps,),
        in_specs=[
            pl.BlockSpec((BB, 32, 32), lambda b: (b, 0, 0)),   # image block
            pl.BlockSpec((160, 256), fixed),                   # t1
            pl.BlockSpec((1, 256), fixed),                     # b1row
            pl.BlockSpec((224, 256), fixed),                   # s1 (pool1)
            pl.BlockSpec((384, 256), fixed),                   # t2
            pl.BlockSpec((1, 256), fixed),                     # b2row
            pl.BlockSpec((96, 112), fixed),                    # s2 (pool2)
            pl.BlockSpec((768, 640), fixed),                   # fc1 w
            pl.BlockSpec((1, 640), fixed),                     # fc1 b
            pl.BlockSpec((640, 128), fixed),                   # fc2 w
            pl.BlockSpec((1, 128), fixed),                     # fc2 b
            pl.BlockSpec((128, 128), fixed),                   # fc3 w
            pl.BlockSpec((1, 128), fixed),                     # fc3 b
        ],
        out_specs=pl.BlockSpec((BB, 128), lambda b: (b, 0)),
        compiler_params=pltpu.CompilerParams(
            dimension_semantics=("parallel",)),
        cost_estimate=pl.CostEstimate(
            flops=steps * flops_per_step,
            transcendentals=steps * (BB * 128 + BB),
            bytes_accessed=int(Bp * (32 * 32 * 4 + 128 * 4) + weight_bytes)),
    )(xp, prep["t1"], prep["b1row"], prep["s1"], prep["t2"], prep["b2row"],
      prep["s2"], prep["w1p"], prep["fb1"], prep["w2p"], prep["fb2"],
      prep["w3p"], prep["fb3"])


# ------------------------------ parameters ---------------------------------

def init_params(key):
    """Deterministic PyTorch-default-style uniform init (same shapes as CNN)."""
    ks = jax.random.split(key, 10)

    def uni(k, shape, fan_in):
        bound = 1.0 / float(fan_in) ** 0.5
        return jax.random.uniform(k, shape, jnp.float32, -bound, bound)

    return {
        "conv1_w": uni(ks[0], (8, 1, 5, 5), 1 * 5 * 5),
        "conv1_b": uni(ks[1], (8,), 1 * 5 * 5),
        "conv2_w": uni(ks[2], (16, 8, 3, 3), 8 * 3 * 3),
        "conv2_b": uni(ks[3], (16,), 8 * 3 * 3),
        "fc1_w": uni(ks[4], (600, 576), 576),
        "fc1_b": uni(ks[5], (600,), 576),
        "fc2_w": uni(ks[6], (120, 600), 600),
        "fc2_b": uni(ks[7], (120,), 600),
        "fc3_w": uni(ks[8], (10, 120), 120),
        "fc3_b": uni(ks[9], (10,), 120),
    }


def prepare_params(params):
    """One-time weight preparation (hoisted out of the per-call forward)."""
    w1 = np.asarray(params["conv1_w"], np.float32)
    b1 = np.asarray(params["conv1_b"], np.float32)
    w2 = np.asarray(params["conv2_w"], np.float32)
    b2 = np.asarray(params["conv2_b"], np.float32)
    fc1_w = np.asarray(params["fc1_w"], np.float32)
    fc1_b = np.asarray(params["fc1_b"], np.float32)
    fc2_w = np.asarray(params["fc2_w"], np.float32)
    fc2_b = np.asarray(params["fc2_b"], np.float32)
    fc3_w = np.asarray(params["fc3_w"], np.float32)
    fc3_b = np.asarray(params["fc3_b"], np.float32)

    # conv1 Toeplitz: row = kh*32 + w_in(padded), col = p*128 + (c*14 + j).
    t1 = np.zeros((5, 32, 2, 8, 14), np.float32)
    for kh in range(5):
        for kw in range(5):
            for c in range(8):
                for p in range(2):
                    for j in range(14):
                        t1[kh, 2 * j + p + kw, p, c, j] = w1[c, 0, kh, kw]
    t1 = np.pad(t1.reshape(5, 32, 2, 112), ((0, 0), (0, 0), (0, 0), (0, 16)))
    t1 = t1.reshape(160, 256)
    b1h = np.pad(np.repeat(b1, 14), (0, 16))
    b1row = np.concatenate([b1h, b1h]).reshape(1, 256)

    # conv2 Toeplitz: row = kh*128 + (ci*14 + w_in), col = p*128 + (f*6 + j).
    t2 = np.zeros((3, 8, 14, 2, 16, 6), np.float32)
    for kh in range(3):
        for kw in range(3):
            for f in range(16):
                for ci in range(8):
                    for p in range(2):
                        for j in range(6):
                            t2[kh, ci, 2 * j + p + kw, p, f, j] = w2[f, ci, kh, kw]
    t2 = np.pad(t2.reshape(3, 112, 2, 96), ((0, 0), (0, 16), (0, 0), (0, 32)))
    t2 = t2.reshape(384, 256)
    b2h = np.pad(np.repeat(b2, 6), (0, 32))
    b2row = np.concatenate([b2h, b2h]).reshape(1, 256)

    # pool1 stacked even/odd row selection over the BB-interleaved layout.
    s1 = np.zeros((2 * BB * 14, BB * 32), np.float32)
    for b in range(BB):
        for j in range(14):
            s1[b * 14 + j, b * 32 + 2 * j] = 1.0
            s1[BB * 14 + b * 14 + j, b * 32 + 2 * j + 1] = 1.0

    # pool2 selection producing per-h feature blocks:
    # rows h*16 + b = even pick, h*16 + 8 + b = odd pick.
    s2 = np.zeros((6 * 2 * BB, BB * 14), np.float32)
    for h in range(6):
        for b in range(BB):
            s2[h * 16 + b, b * 14 + 2 * h] = 1.0
            s2[h * 16 + BB + b, b * 14 + 2 * h + 1] = 1.0

    # fc1: permute torch (c,h,w) flatten order to the kernel's (h,c,w)+pad
    # feature layout, pad 96->128 per h-block and N 600->640.
    w1p = fc1_w.reshape(600, 16, 6, 6).transpose(2, 1, 3, 0).reshape(6, 96, 600)
    w1p = np.pad(w1p, ((0, 0), (0, 32), (0, 0))).reshape(768, 600)
    w1p = np.pad(w1p, ((0, 0), (0, 40)))                     # (768, 640)
    fb1 = np.pad(fc1_b, (0, 40)).reshape(1, 640)

    # fc2: pad K 600->640, N 120->128 (pad bias 0, pad weights 0).
    w2p = np.pad(fc2_w.T, ((0, 40), (0, 8)))                 # (640, 128)
    fb2 = np.pad(fc2_b, (0, 8)).reshape(1, 128)

    # fc3: pad K 120->128, N 10->128; padded logits get a -1e30 bias so they
    # vanish in the log-softmax normalizer.
    w3p = np.pad(fc3_w.T, ((0, 8), (0, 118)))                # (128, 128)
    fb3 = np.full((1, 128), -1e30, np.float32)
    fb3[0, :10] = fc3_b

    bf16 = lambda a: jnp.asarray(a, jnp.bfloat16)
    f32 = lambda a: jnp.asarray(a, jnp.float32)
    return {
        "t1": bf16(t1), "b1row": f32(b1row), "s1": bf16(s1),
        "t2": bf16(t2), "b2row": f32(b2row), "s2": bf16(s2),
        "w1p": bf16(w1p), "fb1": f32(fb1),
        "w2p": bf16(w2p), "fb2": f32(fb2),
        "w3p": bf16(w3p), "fb3": f32(fb3),
    }


# ------------------------------- forward -----------------------------------

@jax.jit
def cnn_forward(prep, x):
    """x: (B, 1, 28, 28) float32 NCHW -> (B, 10) log-probabilities."""
    B = x.shape[0]
    Bp = ((B + BB - 1) // BB) * BB
    xp = jnp.pad(x[:, 0, :, :], ((0, Bp - B), (2, 2), (2, 2)))  # (Bp, 32, 32)
    out = cnn_pallas(xp, prep)                                  # (Bp, 128)
    return out[:B, :10]


# --------------------------- pure-JAX reference ----------------------------

def _max_pool_2x2_ref(y):
    return jnp.maximum(
        jnp.maximum(y[:, :, 0::2, 0::2], y[:, :, 0::2, 1::2]),
        jnp.maximum(y[:, :, 1::2, 0::2], y[:, :, 1::2, 1::2]))


def cnn_reference(params, x):
    hp = jax.lax.Precision.HIGHEST
    y = jax.lax.conv(x, params["conv1_w"], (1, 1), "SAME", precision=hp)
    y = jnp.maximum(y + params["conv1_b"][None, :, None, None], 0.0)
    y = _max_pool_2x2_ref(y)
    y = jax.lax.conv(y, params["conv2_w"], (1, 1), "VALID", precision=hp)
    y = jnp.maximum(y + params["conv2_b"][None, :, None, None], 0.0)
    y = _max_pool_2x2_ref(y)
    y = y.reshape(y.shape[0], -1)
    y = jnp.maximum(jnp.dot(y, params["fc1_w"].T, precision=hp)
                    + params["fc1_b"], 0.0)
    y = jnp.maximum(jnp.dot(y, params["fc2_w"].T, precision=hp)
                    + params["fc2_b"], 0.0)
    y = jnp.dot(y, params["fc3_w"].T, precision=hp) + params["fc3_b"]
    return jax.nn.log_softmax(y, axis=-1)


if __name__ == "__main__":
    key = jax.random.PRNGKey(0)
    pkey, xkey, xkey2 = jax.random.split(key, 3)
    params = init_params(pkey)
    prep = prepare_params(params)

    # The module's fc1 (576 = 16*6*6) implies 28x28 single-channel inputs.
    x = jax.random.normal(xkey, (2, 1, 28, 28), jnp.float32)

    out = jax.block_until_ready(cnn_forward(prep, x))
    assert out.shape == (2, 10), out.shape
    assert bool(jnp.all(jnp.isfinite(out)))
    # log-softmax rows must exponentiate-sum to ~1
    assert bool(jnp.allclose(jnp.sum(jnp.exp(out), axis=1), 1.0, atol=1e-5))
    # end-to-end check against a pure-JAX reference; tolerance is loose
    # because the kernel feeds the MXU bf16 operands while the reference
    # runs f32 at HIGHEST precision.
    ref = cnn_reference(params, x)
    assert bool(jnp.allclose(out, ref, atol=5e-2, rtol=5e-2)), (
        float(jnp.max(jnp.abs(out - ref))))

    # multi-step grid + batch-padding path (B not a multiple of BB).
    x2 = jax.random.normal(xkey2, (19, 1, 28, 28), jnp.float32)
    out2 = jax.block_until_ready(cnn_forward(prep, x2))
    ref2 = cnn_reference(params, x2)
    assert out2.shape == (19, 10), out2.shape
    assert bool(jnp.all(jnp.isfinite(out2)))
    assert bool(jnp.allclose(out2, ref2, atol=5e-2, rtol=5e-2)), (
        float(jnp.max(jnp.abs(out2 - ref2))))

    print("KERNEL_OK")
</pallas_src>

<mosaic_0001>
module attributes {stable_mosaic.version = 11 : i64} {
  func.func @_cnn_fused_kernel(%arg0: i32, %arg1: memref<8x32x32xf32, #tpu.memory_space<vmem>>, %arg2: memref<160x256xbf16, #tpu.memory_space<vmem>>, %arg3: memref<1x256xf32, #tpu.memory_space<vmem>>, %arg4: memref<224x256xbf16, #tpu.memory_space<vmem>>, %arg5: memref<384x256xbf16, #tpu.memory_space<vmem>>, %arg6: memref<1x256xf32, #tpu.memory_space<vmem>>, %arg7: memref<96x112xbf16, #tpu.memory_space<vmem>>, %arg8: memref<768x640xbf16, #tpu.memory_space<vmem>>, %arg9: memref<1x640xf32, #tpu.memory_space<vmem>>, %arg10: memref<640x128xbf16, #tpu.memory_space<vmem>>, %arg11: memref<1x128xf32, #tpu.memory_space<vmem>>, %arg12: memref<128x128xbf16, #tpu.memory_space<vmem>>, %arg13: memref<1x128xf32, #tpu.memory_space<vmem>>, %arg14: memref<8x128xf32, #tpu.memory_space<vmem>>) attributes {dimension_semantics = [#tpu.dimension_semantics<parallel>], iteration_bounds = array<i64: 1>, scalar_prefetch = 0 : i64, scratch_operands = 0 : i64, tpu.core_type = #tpu.core_type<tc>, window_params = [{transform_indices = @transform_0, window_bounds = array<i64: 8, 32, 32>}, {pipeline_mode = #tpu.pipeline_mode<synchronous>, transform_indices = @transform_1, window_bounds = array<i64: 160, 256>}, {pipeline_mode = #tpu.pipeline_mode<synchronous>, transform_indices = @transform_2, window_bounds = array<i64: 1, 256>}, {pipeline_mode = #tpu.pipeline_mode<synchronous>, transform_indices = @transform_3, window_bounds = array<i64: 224, 256>}, {pipeline_mode = #tpu.pipeline_mode<synchronous>, transform_indices = @transform_4, window_bounds = array<i64: 384, 256>}, {pipeline_mode = #tpu.pipeline_mode<synchronous>, transform_indices = @transform_5, window_bounds = array<i64: 1, 256>}, {pipeline_mode = #tpu.pipeline_mode<synchronous>, transform_indices = @transform_6, window_bounds = array<i64: 96, 112>}, {pipeline_mode = #tpu.pipeline_mode<synchronous>, transform_indices = @transform_7, window_bounds = array<i64: 768, 640>}, {pipeline_mode = #tpu.pipeline_mode<synchronous>, transform_indices = @transform_8, window_bounds = array<i64: 1, 640>}, {pipeline_mode = #tpu.pipeline_mode<synchronous>, transform_indices = @transform_9, window_bounds = array<i64: 640, 128>}, {pipeline_mode = #tpu.pipeline_mode<synchronous>, transform_indices = @transform_10, window_bounds = array<i64: 1, 128>}, {pipeline_mode = #tpu.pipeline_mode<synchronous>, transform_indices = @transform_11, window_bounds = array<i64: 128, 128>}, {pipeline_mode = #tpu.pipeline_mode<synchronous>, transform_indices = @transform_12, window_bounds = array<i64: 1, 128>}, {transform_indices = @transform_13, window_bounds = array<i64: 8, 128>}]} {
    %c0 = arith.constant 0 : index
    %c0_0 = arith.constant 0 : index
    %c0_1 = arith.constant 0 : index
    %0 = vector.load %arg1[%c0, %c0_0, %c0_1] : memref<8x32x32xf32, #tpu.memory_space<vmem>>, vector<1x32x32xf32>
    %1 = vector.shape_cast %0 : vector<1x32x32xf32> to vector<32x32xf32>
    %c1 = arith.constant 1 : index
    %c0_2 = arith.constant 0 : index
    %c0_3 = arith.constant 0 : index
    %2 = vector.load %arg1[%c1, %c0_2, %c0_3] : memref<8x32x32xf32, #tpu.memory_space<vmem>>, vector<1x32x32xf32>
    %3 = vector.shape_cast %2 : vector<1x32x32xf32> to vector<32x32xf32>
    %c2 = arith.constant 2 : index
    %c0_4 = arith.constant 0 : index
    %c0_5 = arith.constant 0 : index
    %4 = vector.load %arg1[%c2, %c0_4, %c0_5] : memref<8x32x32xf32, #tpu.memory_space<vmem>>, vector<1x32x32xf32>
    %5 = vector.shape_cast %4 : vector<1x32x32xf32> to vector<32x32xf32>
    %c3 = arith.constant 3 : index
    %c0_6 = arith.constant 0 : index
    %c0_7 = arith.constant 0 : index
    %6 = vector.load %arg1[%c3, %c0_6, %c0_7] : memref<8x32x32xf32, #tpu.memory_space<vmem>>, vector<1x32x32xf32>
    %7 = vector.shape_cast %6 : vector<1x32x32xf32> to vector<32x32xf32>
    %c4 = arith.constant 4 : index
    %c0_8 = arith.constant 0 : index
    %c0_9 = arith.constant 0 : index
    %8 = vector.load %arg1[%c4, %c0_8, %c0_9] : memref<8x32x32xf32, #tpu.memory_space<vmem>>, vector<1x32x32xf32>
    %9 = vector.shape_cast %8 : vector<1x32x32xf32> to vector<32x32xf32>
    %c5 = arith.constant 5 : index
    %c0_10 = arith.constant 0 : index
    %c0_11 = arith.constant 0 : index
    %10 = vector.load %arg1[%c5, %c0_10, %c0_11] : memref<8x32x32xf32, #tpu.memory_space<vmem>>, vector<1x32x32xf32>
    %11 = vector.shape_cast %10 : vector<1x32x32xf32> to vector<32x32xf32>
    %c6 = arith.constant 6 : index
    %c0_12 = arith.constant 0 : index
    %c0_13 = arith.constant 0 : index
    %12 = vector.load %arg1[%c6, %c0_12, %c0_13] : memref<8x32x32xf32, #tpu.memory_space<vmem>>, vector<1x32x32xf32>
    %13 = vector.shape_cast %12 : vector<1x32x32xf32> to vector<32x32xf32>
    %c7 = arith.constant 7 : index
    %c0_14 = arith.constant 0 : index
    %c0_15 = arith.constant 0 : index
    %14 = vector.load %arg1[%c7, %c0_14, %c0_15] : memref<8x32x32xf32, #tpu.memory_space<vmem>>, vector<1x32x32xf32>
    %15 = vector.shape_cast %14 : vector<1x32x32xf32> to vector<32x32xf32>
    %cst = arith.constant 0.000000e+00 : f32
    %16 = vector.broadcast %cst : f32 to vector<8x32xf32>
    %17 = tpu.concatenate %1, %3, %5, %7, %9, %11, %13, %15, %16 in 0 : vector<32x32xf32>, vector<32x32xf32>, vector<32x32xf32>, vector<32x32xf32>, vector<32x32xf32>, vector<32x32xf32>, vector<32x32xf32>, vector<32x32xf32>, vector<8x32xf32> -> vector<264x32xf32>
    %c0_16 = arith.constant 0 : index
    %c0_17 = arith.constant 0 : index
    %18 = vector.load %arg3[%c0_16, %c0_17] : memref<1x256xf32, #tpu.memory_space<vmem>>, vector<1x256xf32>
    %19 = vector.shape_cast %18 : vector<1x256xf32> to vector<1x256xf32>
    %20 = vector.broadcast %19 : vector<1x256xf32> to vector<256x256xf32>
    %21 = vector.extract_strided_slice %17 {offsets = [0, 0], sizes = [256, 32], strides = [1, 1]} : vector<264x32xf32> to vector<256x32xf32>
    %22 = arith.truncf %21 : vector<256x32xf32> to vector<256x32xbf16>
    %c0_18 = arith.constant 0 : index
    %c0_19 = arith.constant 0 : index
    %23 = vector.load %arg2[%c0_18, %c0_19] : memref<160x256xbf16, #tpu.memory_space<vmem>>, vector<32x256xbf16>
    %cst_20 = arith.constant dense<0.000000e+00> : vector<256x256xf32>
    %24 = tpu.matmul %22, %23, %cst_20 {dimension_numbers = #tpu.dot_dimension_numbers<[1], [0], [0], [1], [0, 0, 1, 1], [], []>} : vector<256x32xbf16>, vector<32x256xbf16>, vector<256x256xf32> -> vector<256x256xf32>
    %25 = arith.addf %20, %24 : vector<256x256xf32>
    %26 = vector.extract_strided_slice %17 {offsets = [1, 0], sizes = [256, 32], strides = [1, 1]} : vector<264x32xf32> to vector<256x32xf32>
    %27 = arith.truncf %26 : vector<256x32xf32> to vector<256x32xbf16>
    %c32 = arith.constant 32 : index
    %c0_21 = arith.constant 0 : index
    %28 = vector.load %arg2[%c32, %c0_21] : memref<160x256xbf16, #tpu.memory_space<vmem>>, vector<32x256xbf16>
    %cst_22 = arith.constant dense<0.000000e+00> : vector<256x256xf32>
    %29 = tpu.matmul %27, %28, %cst_22 {dimension_numbers = #tpu.dot_dimension_numbers<[1], [0], [0], [1], [0, 0, 1, 1], [], []>} : vector<256x32xbf16>, vector<32x256xbf16>, vector<256x256xf32> -> vector<256x256xf32>
    %30 = arith.addf %25, %29 : vector<256x256xf32>
    %31 = vector.extract_strided_slice %17 {offsets = [2, 0], sizes = [256, 32], strides = [1, 1]} : vector<264x32xf32> to vector<256x32xf32>
    %32 = arith.truncf %31 : vector<256x32xf32> to vector<256x32xbf16>
    %c64 = arith.constant 64 : index
    %c0_23 = arith.constant 0 : index
    %33 = vector.load %arg2[%c64, %c0_23] : memref<160x256xbf16, #tpu.memory_space<vmem>>, vector<32x256xbf16>
    %cst_24 = arith.constant dense<0.000000e+00> : vector<256x256xf32>
    %34 = tpu.matmul %32, %33, %cst_24 {dimension_numbers = #tpu.dot_dimension_numbers<[1], [0], [0], [1], [0, 0, 1, 1], [], []>} : vector<256x32xbf16>, vector<32x256xbf16>, vector<256x256xf32> -> vector<256x256xf32>
    %35 = arith.addf %30, %34 : vector<256x256xf32>
    %36 = vector.extract_strided_slice %17 {offsets = [3, 0], sizes = [256, 32], strides = [1, 1]} : vector<264x32xf32> to vector<256x32xf32>
    %37 = arith.truncf %36 : vector<256x32xf32> to vector<256x32xbf16>
    %c96 = arith.constant 96 : index
    %c0_25 = arith.constant 0 : index
    %38 = vector.load %arg2[%c96, %c0_25] : memref<160x256xbf16, #tpu.memory_space<vmem>>, vector<32x256xbf16>
    %cst_26 = arith.constant dense<0.000000e+00> : vector<256x256xf32>
    %39 = tpu.matmul %37, %38, %cst_26 {dimension_numbers = #tpu.dot_dimension_numbers<[1], [0], [0], [1], [0, 0, 1, 1], [], []>} : vector<256x32xbf16>, vector<32x256xbf16>, vector<256x256xf32> -> vector<256x256xf32>
    %40 = arith.addf %35, %39 : vector<256x256xf32>
    %41 = vector.extract_strided_slice %17 {offsets = [4, 0], sizes = [256, 32], strides = [1, 1]} : vector<264x32xf32> to vector<256x32xf32>
    %42 = arith.truncf %41 : vector<256x32xf32> to vector<256x32xbf16>
    %c128 = arith.constant 128 : index
    %c0_27 = arith.constant 0 : index
    %43 = vector.load %arg2[%c128, %c0_27] : memref<160x256xbf16, #tpu.memory_space<vmem>>, vector<32x256xbf16>
    %cst_28 = arith.constant dense<0.000000e+00> : vector<256x256xf32>
    %44 = tpu.matmul %42, %43, %cst_28 {dimension_numbers = #tpu.dot_dimension_numbers<[1], [0], [0], [1], [0, 0, 1, 1], [], []>} : vector<256x32xbf16>, vector<32x256xbf16>, vector<256x256xf32> -> vector<256x256xf32>
    %45 = arith.addf %40, %44 : vector<256x256xf32>
    %cst_29 = arith.constant 0.000000e+00 : f32
    %46 = vector.broadcast %cst_29 : f32 to vector<256x256xf32>
    %47 = arith.maximumf %45, %46 : vector<256x256xf32>
    %48 = vector.extract_strided_slice %47 {offsets = [0, 0], sizes = [256, 128], strides = [1, 1]} : vector<256x256xf32> to vector<256x128xf32>
    %49 = vector.extract_strided_slice %47 {offsets = [0, 128], sizes = [256, 128], strides = [1, 1]} : vector<256x256xf32> to vector<256x128xf32>
    %50 = arith.maximumf %48, %49 : vector<256x128xf32>
    %51 = arith.truncf %50 : vector<256x128xf32> to vector<256x128xbf16>
    %c0_30 = arith.constant 0 : index
    %c0_31 = arith.constant 0 : index
    %52 = vector.load %arg4[%c0_30, %c0_31] : memref<224x256xbf16, #tpu.memory_space<vmem>>, vector<224x256xbf16>
    %cst_32 = arith.constant dense<0.000000e+00> : vector<224x128xf32>
    %53 = tpu.matmul %52, %51, %cst_32 {dimension_numbers = #tpu.dot_dimension_numbers<[1], [0], [0], [1], [0, 0, 1, 1], [], []>} : vector<224x256xbf16>, vector<256x128xbf16>, vector<224x128xf32> -> vector<224x128xf32>
    %54 = vector.extract_strided_slice %53 {offsets = [0, 0], sizes = [112, 128], strides = [1, 1]} : vector<224x128xf32> to vector<112x128xf32>
    %55 = vector.extract_strided_slice %53 {offsets = [112, 0], sizes = [112, 128], strides = [1, 1]} : vector<224x128xf32> to vector<112x128xf32>
    %56 = arith.maximumf %54, %55 : vector<112x128xf32>
    %cst_33 = arith.constant 0.000000e+00 : f32
    %57 = vector.broadcast %cst_33 : f32 to vector<8x128xf32>
    %58 = tpu.concatenate %56, %57 in 0 : vector<112x128xf32>, vector<8x128xf32> -> vector<120x128xf32>
    %c0_34 = arith.constant 0 : index
    %c0_35 = arith.constant 0 : index
    %59 = vector.load %arg6[%c0_34, %c0_35] : memref<1x256xf32, #tpu.memory_space<vmem>>, vector<1x256xf32>
    %60 = vector.shape_cast %59 : vector<1x256xf32> to vector<1x256xf32>
    %61 = vector.broadcast %60 : vector<1x256xf32> to vector<112x256xf32>
    %62 = vector.extract_strided_slice %58 {offsets = [0, 0], sizes = [112, 128], strides = [1, 1]} : vector<120x128xf32> to vector<112x128xf32>
    %63 = arith.truncf %62 : vector<112x128xf32> to vector<112x128xbf16>
    %c0_36 = arith.constant 0 : index
    %c0_37 = arith.constant 0 : index
    %64 = vector.load %arg5[%c0_36, %c0_37] : memref<384x256xbf16, #tpu.memory_space<vmem>>, vector<128x256xbf16>
    %cst_38 = arith.constant dense<0.000000e+00> : vector<112x256xf32>
    %65 = tpu.matmul %63, %64, %cst_38 {dimension_numbers = #tpu.dot_dimension_numbers<[1], [0], [0], [1], [0, 0, 1, 1], [], []>} : vector<112x128xbf16>, vector<128x256xbf16>, vector<112x256xf32> -> vector<112x256xf32>
    %66 = arith.addf %61, %65 : vector<112x256xf32>
    %67 = vector.extract_strided_slice %58 {offsets = [1, 0], sizes = [112, 128], strides = [1, 1]} : vector<120x128xf32> to vector<112x128xf32>
    %68 = arith.truncf %67 : vector<112x128xf32> to vector<112x128xbf16>
    %c128_39 = arith.constant 128 : index
    %c0_40 = arith.constant 0 : index
    %69 = vector.load %arg5[%c128_39, %c0_40] : memref<384x256xbf16, #tpu.memory_space<vmem>>, vector<128x256xbf16>
    %cst_41 = arith.constant dense<0.000000e+00> : vector<112x256xf32>
    %70 = tpu.matmul %68, %69, %cst_41 {dimension_numbers = #tpu.dot_dimension_numbers<[1], [0], [0], [1], [0, 0, 1, 1], [], []>} : vector<112x128xbf16>, vector<128x256xbf16>, vector<112x256xf32> -> vector<112x256xf32>
    %71 = arith.addf %66, %70 : vector<112x256xf32>
    %72 = vector.extract_strided_slice %58 {offsets = [2, 0], sizes = [112, 128], strides = [1, 1]} : vector<120x128xf32> to vector<112x128xf32>
    %73 = arith.truncf %72 : vector<112x128xf32> to vector<112x128xbf16>
    %c256 = arith.constant 256 : index
    %c0_42 = arith.constant 0 : index
    %74 = vector.load %arg5[%c256, %c0_42] : memref<384x256xbf16, #tpu.memory_space<vmem>>, vector<128x256xbf16>
    %cst_43 = arith.constant dense<0.000000e+00> : vector<112x256xf32>
    %75 = tpu.matmul %73, %74, %cst_43 {dimension_numbers = #tpu.dot_dimension_numbers<[1], [0], [0], [1], [0, 0, 1, 1], [], []>} : vector<112x128xbf16>, vector<128x256xbf16>, vector<112x256xf32> -> vector<112x256xf32>
    %76 = arith.addf %71, %75 : vector<112x256xf32>
    %cst_44 = arith.constant 0.000000e+00 : f32
    %77 = vector.broadcast %cst_44 : f32 to vector<112x256xf32>
    %78 = arith.maximumf %76, %77 : vector<112x256xf32>
    %79 = vector.extract_strided_slice %78 {offsets = [0, 0], sizes = [112, 128], strides = [1, 1]} : vector<112x256xf32> to vector<112x128xf32>
    %80 = vector.extract_strided_slice %78 {offsets = [0, 128], sizes = [112, 128], strides = [1, 1]} : vector<112x256xf32> to vector<112x128xf32>
    %81 = arith.maximumf %79, %80 : vector<112x128xf32>
    %82 = arith.truncf %81 : vector<112x128xf32> to vector<112x128xbf16>
    %c0_45 = arith.constant 0 : index
    %c0_46 = arith.constant 0 : index
    %83 = vector.load %arg7[%c0_45, %c0_46] : memref<96x112xbf16, #tpu.memory_space<vmem>>, vector<96x112xbf16>
    %cst_47 = arith.constant dense<0.000000e+00> : vector<96x128xf32>
    %84 = tpu.matmul %83, %82, %cst_47 {dimension_numbers = #tpu.dot_dimension_numbers<[1], [0], [0], [1], [0, 0, 1, 1], [], []>} : vector<96x112xbf16>, vector<112x128xbf16>, vector<96x128xf32> -> vector<96x128xf32>
    %85 = vector.extract_strided_slice %84 {offsets = [0, 0], sizes = [8, 128], strides = [1, 1]} : vector<96x128xf32> to vector<8x128xf32>
    %86 = vector.extract_strided_slice %84 {offsets = [8, 0], sizes = [8, 128], strides = [1, 1]} : vector<96x128xf32> to vector<8x128xf32>
    %87 = arith.maximumf %85, %86 : vector<8x128xf32>
    %88 = vector.extract_strided_slice %84 {offsets = [16, 0], sizes = [8, 128], strides = [1, 1]} : vector<96x128xf32> to vector<8x128xf32>
    %89 = vector.extract_strided_slice %84 {offsets = [24, 0], sizes = [8, 128], strides = [1, 1]} : vector<96x128xf32> to vector<8x128xf32>
    %90 = arith.maximumf %88, %89 : vector<8x128xf32>
    %91 = vector.extract_strided_slice %84 {offsets = [32, 0], sizes = [8, 128], strides = [1, 1]} : vector<96x128xf32> to vector<8x128xf32>
    %92 = vector.extract_strided_slice %84 {offsets = [40, 0], sizes = [8, 128], strides = [1, 1]} : vector<96x128xf32> to vector<8x128xf32>
    %93 = arith.maximumf %91, %92 : vector<8x128xf32>
    %94 = vector.extract_strided_slice %84 {offsets = [48, 0], sizes = [8, 128], strides = [1, 1]} : vector<96x128xf32> to vector<8x128xf32>
    %95 = vector.extract_strided_slice %84 {offsets = [56, 0], sizes = [8, 128], strides = [1, 1]} : vector<96x128xf32> to vector<8x128xf32>
    %96 = arith.maximumf %94, %95 : vector<8x128xf32>
    %97 = vector.extract_strided_slice %84 {offsets = [64, 0], sizes = [8, 128], strides = [1, 1]} : vector<96x128xf32> to vector<8x128xf32>
    %98 = vector.extract_strided_slice %84 {offsets = [72, 0], sizes = [8, 128], strides = [1, 1]} : vector<96x128xf32> to vector<8x128xf32>
    %99 = arith.maximumf %97, %98 : vector<8x128xf32>
    %100 = vector.extract_strided_slice %84 {offsets = [80, 0], sizes = [8, 128], strides = [1, 1]} : vector<96x128xf32> to vector<8x128xf32>
    %101 = vector.extract_strided_slice %84 {offsets = [88, 0], sizes = [8, 128], strides = [1, 1]} : vector<96x128xf32> to vector<8x128xf32>
    %102 = arith.maximumf %100, %101 : vector<8x128xf32>
    %103 = tpu.concatenate %87, %90, %93, %96, %99, %102 in 1 : vector<8x128xf32>, vector<8x128xf32>, vector<8x128xf32>, vector<8x128xf32>, vector<8x128xf32>, vector<8x128xf32> -> vector<8x768xf32>
    %104 = arith.truncf %103 : vector<8x768xf32> to vector<8x768xbf16>
    %c0_48 = arith.constant 0 : index
    %c0_49 = arith.constant 0 : index
    %105 = vector.load %arg8[%c0_48, %c0_49] : memref<768x640xbf16, #tpu.memory_space<vmem>>, vector<768x640xbf16>
    %cst_50 = arith.constant dense<0.000000e+00> : vector<8x640xf32>
    %106 = tpu.matmul %104, %105, %cst_50 {dimension_numbers = #tpu.dot_dimension_numbers<[1], [0], [0], [1], [0, 0, 1, 1], [], []>} : vector<8x768xbf16>, vector<768x640xbf16>, vector<8x640xf32> -> vector<8x640xf32>
    %c0_51 = arith.constant 0 : index
    %c0_52 = arith.constant 0 : index
    %107 = vector.load %arg9[%c0_51, %c0_52] : memref<1x640xf32, #tpu.memory_space<vmem>>, vector<1x640xf32>
    %108 = vector.broadcast %107 : vector<1x640xf32> to vector<8x640xf32>
    %109 = arith.addf %106, %108 : vector<8x640xf32>
    %cst_53 = arith.constant 0.000000e+00 : f32
    %110 = vector.broadcast %cst_53 : f32 to vector<8x640xf32>
    %111 = arith.maximumf %109, %110 : vector<8x640xf32>
    %112 = arith.truncf %111 : vector<8x640xf32> to vector<8x640xbf16>
    %c0_54 = arith.constant 0 : index
    %c0_55 = arith.constant 0 : index
    %113 = vector.load %arg10[%c0_54, %c0_55] : memref<640x128xbf16, #tpu.memory_space<vmem>>, vector<640x128xbf16>
    %cst_56 = arith.constant dense<0.000000e+00> : vector<8x128xf32>
    %114 = tpu.matmul %112, %113, %cst_56 {dimension_numbers = #tpu.dot_dimension_numbers<[1], [0], [0], [1], [0, 0, 1, 1], [], []>} : vector<8x640xbf16>, vector<640x128xbf16>, vector<8x128xf32> -> vector<8x128xf32>
    %c0_57 = arith.constant 0 : index
    %c0_58 = arith.constant 0 : index
    %115 = vector.load %arg11[%c0_57, %c0_58] : memref<1x128xf32, #tpu.memory_space<vmem>>, vector<1x128xf32>
    %116 = vector.broadcast %115 : vector<1x128xf32> to vector<8x128xf32>
    %117 = arith.addf %114, %116 : vector<8x128xf32>
    %cst_59 = arith.constant 0.000000e+00 : f32
    %118 = vector.broadcast %cst_59 : f32 to vector<8x128xf32>
    %119 = arith.maximumf %117, %118 : vector<8x128xf32>
    %120 = arith.truncf %119 : vector<8x128xf32> to vector<8x128xbf16>
    %c0_60 = arith.constant 0 : index
    %c0_61 = arith.constant 0 : index
    %121 = vector.load %arg12[%c0_60, %c0_61] : memref<128x128xbf16, #tpu.memory_space<vmem>>, vector<128x128xbf16>
    %cst_62 = arith.constant dense<0.000000e+00> : vector<8x128xf32>
    %122 = tpu.matmul %120, %121, %cst_62 {dimension_numbers = #tpu.dot_dimension_numbers<[1], [0], [0], [1], [0, 0, 1, 1], [], []>} : vector<8x128xbf16>, vector<128x128xbf16>, vector<8x128xf32> -> vector<8x128xf32>
    %c0_63 = arith.constant 0 : index
    %c0_64 = arith.constant 0 : index
    %123 = vector.load %arg13[%c0_63, %c0_64] : memref<1x128xf32, #tpu.memory_space<vmem>>, vector<1x128xf32>
    %124 = vector.broadcast %123 : vector<1x128xf32> to vector<8x128xf32>
    %125 = arith.addf %122, %124 : vector<8x128xf32>
    %cst_65 = arith.constant dense<0xFF800000> : vector<8xf32>
    %126 = vector.multi_reduction <maximumf>, %125, %cst_65 [1] : vector<8x128xf32> to vector<8xf32>
    %127 = vector.shape_cast %126 : vector<8xf32> to vector<8x1xf32>
    %128 = vector.broadcast %127 : vector<8x1xf32> to vector<8x128xf32>
    %129 = arith.subf %125, %128 : vector<8x128xf32>
    %130 = math.exp %129 : vector<8x128xf32>
    %cst_66 = arith.constant dense<0.000000e+00> : vector<8xf32>
    %131 = vector.multi_reduction <add>, %130, %cst_66 [1] : vector<8x128xf32> to vector<8xf32>
    %132 = vector.shape_cast %131 : vector<8xf32> to vector<8x1xf32>
    %133 = math.log %132 : vector<8x1xf32>
    %134 = vector.broadcast %133 : vector<8x1xf32> to vector<8x128xf32>
    %135 = arith.subf %129, %134 : vector<8x128xf32>
    %c0_67 = arith.constant 0 : index
    %c0_68 = arith.constant 0 : index
    %136 = vector.load %arg14[%c0_67, %c0_68] : memref<8x128xf32, #tpu.memory_space<vmem>>, vector<8x128xf32>
    tpu.vector_store %arg14[%c0_67, %c0_68], %135 {strides = array<i32>} : memref<8x128xf32, #tpu.memory_space<vmem>>, vector<8x128xf32>,
    return
  }
  func.func @transform_0(%arg0: i32) -> (i32, i32, i32) {
    %c0_i32 = arith.constant 0 : i32
    %c0_i32_0 = arith.constant 0 : i32
    %c0_i32_1 = arith.constant 0 : i32
    return %arg0, %c0_i32, %c0_i32_0 : i32, i32, i32
  }
  func.func @transform_1(%arg0: i32) -> (i32, i32) {
    %c0_i32 = arith.constant 0 : i32
    %c0_i32_0 = arith.constant 0 : i32
    %c0_i32_1 = arith.constant 0 : i32
    return %c0_i32, %c0_i32_0 : i32, i32
  }
  func.func @transform_2(%arg0: i32) -> (i32, i32) {
    %c0_i32 = arith.constant 0 : i32
    %c0_i32_0 = arith.constant 0 : i32
    %c0_i32_1 = arith.constant 0 : i32
    return %c0_i32, %c0_i32_0 : i32, i32
  }
  func.func @transform_3(%arg0: i32) -> (i32, i32) {
    %c0_i32 = arith.constant 0 : i32
    %c0_i32_0 = arith.constant 0 : i32
    %c0_i32_1 = arith.constant 0 : i32
    return %c0_i32, %c0_i32_0 : i32, i32
  }
  func.func @transform_4(%arg0: i32) -> (i32, i32) {
    %c0_i32 = arith.constant 0 : i32
    %c0_i32_0 = arith.constant 0 : i32
    %c0_i32_1 = arith.constant 0 : i32
    return %c0_i32, %c0_i32_0 : i32, i32
  }
  func.func @transform_5(%arg0: i32) -> (i32, i32) {
    %c0_i32 = arith.constant 0 : i32
    %c0_i32_0 = arith.constant 0 : i32
    %c0_i32_1 = arith.constant 0 : i32
    return %c0_i32, %c0_i32_0 : i32, i32
  }
  func.func @transform_6(%arg0: i32) -> (i32, i32) {
    %c0_i32 = arith.constant 0 : i32
    %c0_i32_0 = arith.constant 0 : i32
    %c0_i32_1 = arith.constant 0 : i32
    return %c0_i32, %c0_i32_0 : i32, i32
  }
  func.func @transform_7(%arg0: i32) -> (i32, i32) {
    %c0_i32 = arith.constant 0 : i32
    %c0_i32_0 = arith.constant 0 : i32
    %c0_i32_1 = arith.constant 0 : i32
    return %c0_i32, %c0_i32_0 : i32, i32
  }
  func.func @transform_8(%arg0: i32) -> (i32, i32) {
    %c0_i32 = arith.constant 0 : i32
    %c0_i32_0 = arith.constant 0 : i32
    %c0_i32_1 = arith.constant 0 : i32
    return %c0_i32, %c0_i32_0 : i32, i32
  }
  func.func @transform_9(%arg0: i32) -> (i32, i32) {
    %c0_i32 = arith.constant 0 : i32
    %c0_i32_0 = arith.constant 0 : i32
    %c0_i32_1 = arith.constant 0 : i32
    return %c0_i32, %c0_i32_0 : i32, i32
  }
  func.func @transform_10(%arg0: i32) -> (i32, i32) {
    %c0_i32 = arith.constant 0 : i32
    %c0_i32_0 = arith.constant 0 : i32
    %c0_i32_1 = arith.constant 0 : i32
    return %c0_i32, %c0_i32_0 : i32, i32
  }
  func.func @transform_11(%arg0: i32) -> (i32, i32) {
    %c0_i32 = arith.constant 0 : i32
    %c0_i32_0 = arith.constant 0 : i32
    %c0_i32_1 = arith.constant 0 : i32
    return %c0_i32, %c0_i32_0 : i32, i32
  }
  func.func @transform_12(%arg0: i32) -> (i32, i32) {
    %c0_i32 = arith.constant 0 : i32
    %c0_i32_0 = arith.constant 0 : i32
    %c0_i32_1 = arith.constant 0 : i32
    return %c0_i32, %c0_i32_0 : i32, i32
  }
  func.func @transform_13(%arg0: i32) -> (i32, i32) {
    %c0_i32 = arith.constant 0 : i32
    %c0_i32_0 = arith.constant 0 : i32
    return %arg0, %c0_i32 : i32, i32
  }
}

</mosaic_0001>

<llo_original>
// kernel: cnn_forward.1
$region0: #{cnn_forward.1}
  #allocation0 [shape = 'u32[]', space=smem, size = 0x4, offset = 0x4, fixed_abs, tag = 'smem constant byte address 0x4 - core index']
  #allocation1 [shape = 'u32[72,128]{1,0:T(1,128)}', space=vmem, size = 0x9000, scoped, tag = 'internal scratch']
  %s0 = inlined_call_operand.vmem [shape: f32[8,32,32], index: 0, kind: input, shape index: {}]
  %s1 = inlined_call_operand.vmem [shape: bf16[160,256], index: 1, kind: input, shape index: {}]
  %s2 = inlined_call_operand.vmem [shape: f32[1,256], index: 2, kind: input, shape index: {}]
  %s3 = inlined_call_operand.hbm [shape: bf16[224,256], index: 3, kind: input, shape index: {}]
  %s4 = inlined_call_operand.vmem [shape: bf16[384,256], index: 4, kind: input, shape index: {}]
  %s5 = inlined_call_operand.vmem [shape: f32[1,256], index: 5, kind: input, shape index: {}]
  %s6 = inlined_call_operand.hbm [shape: bf16[96,112], index: 6, kind: input, shape index: {}]
  %s7 = inlined_call_operand.hbm [shape: bf16[768,640], index: 7, kind: input, shape index: {}]
  %s8 = inlined_call_operand.vmem [shape: f32[1,640], index: 8, kind: input, shape index: {}]
  %s9 = inlined_call_operand.hbm [shape: bf16[640,128], index: 9, kind: input, shape index: {}]
  %s10 = inlined_call_operand.vmem [shape: f32[1,128], index: 10, kind: input, shape index: {}]
  %s11 = inlined_call_operand.hbm [shape: bf16[128,128], index: 11, kind: input, shape index: {}]
  %s12 = inlined_call_operand.vmem [shape: f32[1,128], index: 12, kind: input, shape index: {}]
  %s13 = inlined_call_operand.vmem [shape: f32[8,128], index: 13, kind: output, shape index: {}]
  %s14 = sld [smem:[#allocation0]]
  $region82: #{cnn_forward.1} parent=0
    _
  %s16 = ssub.s32 1, %s14
  %s17 = scalar_select 0, %s16, %s14
  $region1: #{cnn_forward.1} parent=0
    #allocation2 [shape = 'u8[114688]{0}', space=vmem, size = 0x1c000, scoped, tag = 'input window, operand 3, single buffered']
    #allocation3 [shape = 's32[1]{0}', space=sflag, size = 0x4, scoped, tag = 'scoped memory for cnn_forward.1']
    #allocation4 [shape = 'u8[24576]{0}', space=vmem, size = 0x6000, scoped, tag = 'input window, operand 6, single buffered']
    #allocation5 [shape = 's32[1]{0}', space=sflag, size = 0x4, scoped, tag = 'scoped memory for cnn_forward.1']
    #allocation6 [shape = 'u8[983040]{0}', space=vmem, size = 0xf0000, scoped, tag = 'input window, operand 7, single buffered']
    #allocation7 [shape = 'u8[163840]{0}', space=vmem, size = 0x28000, scoped, tag = 'input window, operand 9, single buffered']
    #allocation8 [shape = 's32[1]{0}', space=sflag, size = 0x4, scoped, tag = 'scoped memory for cnn_forward.1']
    #allocation9 [shape = 'u8[32768]{0}', space=vmem, size = 0x8000, scoped, tag = 'input window, operand 11, single buffered']
    %18 = vsyncpa [#allocation3], 0
    %19 = vsyncpa [#allocation5], 0
    %20 = vsyncpa [#allocation8], 0
    // Predicated region
    $region2: #{cnn_forward.1} parent=1 // pred_check
      _
    $region3: #{cnn_forward.1} parent=1 // pred_check_branch
      %22 = sbr.rel (0) target = $region5
    $region4: #{cnn_forward.1} parent=1 // pred_region
      _
    $region5: #{cnn_forward.1} parent=1 // pred_fallthru
      _
    // Predicated region
    $region6: #{cnn_forward.1} parent=1 // pred_check
      _
    $region7: #{cnn_forward.1} parent=1 // pred_check_branch
      %24 = sbr.rel (0) target = $region9
    $region8: #{cnn_forward.1} parent=1 // pred_region
      _
    $region9: #{cnn_forward.1} parent=1 // pred_fallthru
      _
    // Predicated region
    $region10: #{cnn_forward.1} parent=1 // pred_check
      _
    $region11: #{cnn_forward.1} parent=1 // pred_check_branch
      %26 = sbr.rel (0) target = $region13
    $region12: #{cnn_forward.1} parent=1 // pred_region
      _
    $region13: #{cnn_forward.1} parent=1 // pred_fallthru
      _
    // Predicated region
    $region14: #{cnn_forward.1} parent=1 // pred_check
      _
    $region15: #{cnn_forward.1} parent=1 // pred_check_branch
      %28 = sbr.rel (0) target = $region17
    $region16: #{cnn_forward.1} parent=1 // pred_region
      %30 = vsyncadd [#allocation3], 0
      %s31 = sshll.u32 %s3, 4
      %s32 = int_to_ptr.hbm [resolvable:$true] %s31
      %s33 = sshll.u32 [#allocation2], 4
      %s34 = int_to_ptr.vmem [resolvable:$true] %s33
      %39 = dma.hbm_to_vmem [thread:$0]  %s32, 3584, %s34, [#allocation3], 128, 128, 8
    $region17: #{cnn_forward.1} parent=1 // pred_fallthru
      _
    // Predicated region
    $region18: #{cnn_forward.1} parent=1 // pred_check
      _
    $region19: #{cnn_forward.1} parent=1 // pred_check_branch
      %41 = sbr.rel (0) target = $region21
    $region20: #{cnn_forward.1} parent=1 // pred_region
      _
    $region21: #{cnn_forward.1} parent=1 // pred_fallthru
      _
    // Predicated region
    $region22: #{cnn_forward.1} parent=1 // pred_check
      _
    $region23: #{cnn_forward.1} parent=1 // pred_check_branch
      %43 = sbr.rel (0) target = $region25
    $region24: #{cnn_forward.1} parent=1 // pred_region
      _
    $region25: #{cnn_forward.1} parent=1 // pred_fallthru
      _
    // Predicated region
    $region26: #{cnn_forward.1} parent=1 // pred_check
      _
    $region27: #{cnn_forward.1} parent=1 // pred_check_branch
      %45 = sbr.rel (0) target = $region29
    $region28: #{cnn_forward.1} parent=1 // pred_region
      %47 = vsyncadd [#allocation5], 0
      %s48 = sshll.u32 %s6, 4
      %s49 = int_to_ptr.hbm [resolvable:$true] %s48
      %s50 = sshll.u32 [#allocation4], 4
      %s51 = int_to_ptr.vmem [resolvable:$true] %s50
      %56 = dma.hbm_to_vmem [thread:$0]  %s49, 768, %s51, [#allocation5], 64, 64, 4
    $region29: #{cnn_forward.1} parent=1 // pred_fallthru
      _
    // Predicated region
    $region30: #{cnn_forward.1} parent=1 // pred_check
      _
    $region31: #{cnn_forward.1} parent=1 // pred_check_branch
      %58 = sbr.rel (0) target = $region33
    $region32: #{cnn_forward.1} parent=1 // pred_region
      %60 = vsyncadd [#allocation5], 0
      %s61 = sshll.u32 %s7, 4
      %s62 = int_to_ptr.hbm [resolvable:$true] %s61
      %s63 = sshll.u32 [#allocation6], 4
      %s64 = int_to_ptr.vmem [resolvable:$true] %s63
      %69 = dma.hbm_to_vmem [thread:$0]  %s62, 30720, %s64, [#allocation5], 320, 320, 20
    $region33: #{cnn_forward.1} parent=1 // pred_fallthru
      _
    // Predicated region
    $region34: #{cnn_forward.1} parent=1 // pred_check
      _
    $region35: #{cnn_forward.1} parent=1 // pred_check_branch
      %71 = sbr.rel (0) target = $region37
    $region36: #{cnn_forward.1} parent=1 // pred_region
      _
    $region37: #{cnn_forward.1} parent=1 // pred_fallthru
      _
    // Predicated region
    $region38: #{cnn_forward.1} parent=1 // pred_check
      _
    $region39: #{cnn_forward.1} parent=1 // pred_check_branch
      %73 = sbr.rel (0) target = $region41
    $region40: #{cnn_forward.1} parent=1 // pred_region
      %75 = vsyncadd [#allocation8], 0
      %s76 = sshll.u32 %s9, 4
      %s77 = int_to_ptr.hbm [resolvable:$true] %s76
      %s78 = sshll.u32 [#allocation7], 4
      %s79 = int_to_ptr.vmem [resolvable:$true] %s78
      %84 = dma.hbm_to_vmem [thread:$0]  %s77, 5120, %s79, [#allocation8], 64, 64, 4
    $region41: #{cnn_forward.1} parent=1 // pred_fallthru
      _
    // Predicated region
    $region42: #{cnn_forward.1} parent=1 // pred_check
      _
    $region43: #{cnn_forward.1} parent=1 // pred_check_branch
      %86 = sbr.rel (0) target = $region45
    $region44: #{cnn_forward.1} parent=1 // pred_region
      _
    $region45: #{cnn_forward.1} parent=1 // pred_fallthru
      _
    // Predicated region
    $region46: #{cnn_forward.1} parent=1 // pred_check
      _
    $region47: #{cnn_forward.1} parent=1 // pred_check_branch
      %88 = sbr.rel (0) target = $region49
    $region48: #{cnn_forward.1} parent=1 // pred_region
      %90 = vsyncadd [#allocation8], 0
      %s91 = sshll.u32 %s11, 4
      %s92 = int_to_ptr.hbm [resolvable:$true] %s91
      %s93 = sshll.u32 [#allocation9], 4
      %s94 = int_to_ptr.vmem [resolvable:$true] %s93
      %99 = dma.hbm_to_vmem [thread:$0]  %s92, 1024, %s94, [#allocation8], 64, 64, 4
    $region49: #{cnn_forward.1} parent=1 // pred_fallthru
      _
    // Predicated region
    $region50: #{cnn_forward.1} parent=1 // pred_check
      _
    $region51: #{cnn_forward.1} parent=1 // pred_check_branch
      %101 = sbr.rel (0) target = $region53
    $region52: #{cnn_forward.1} parent=1 // pred_region
      _
    $region53: #{cnn_forward.1} parent=1 // pred_fallthru
      _
    // Predicated region
    $region54: #{cnn_forward.1} parent=1 // pred_check
      _
    $region55: #{cnn_forward.1} parent=1 // pred_check_branch
      %103 = sbr.rel (0) target = $region57
    $region56: #{cnn_forward.1} parent=1 // pred_region
      %105 = dma.done [#allocation3], 3584
    $region57: #{cnn_forward.1} parent=1 // pred_fallthru
      _
    // Predicated region
    $region58: #{cnn_forward.1} parent=1 // pred_check
      _
    $region59: #{cnn_forward.1} parent=1 // pred_check_branch
      %107 = sbr.rel (0) target = $region61
    $region60: #{cnn_forward.1} parent=1 // pred_region
      %109 = dma.done [#allocation5], 768
    $region61: #{cnn_forward.1} parent=1 // pred_fallthru
      _
    // Predicated region
    $region62: #{cnn_forward.1} parent=1 // pred_check
      _
    $region63: #{cnn_forward.1} parent=1 // pred_check_branch
      %111 = sbr.rel (0) target = $region65
    $region64: #{cnn_forward.1} parent=1 // pred_region
      %113 = dma.done [#allocation5], 30720
    $region65: #{cnn_forward.1} parent=1 // pred_fallthru
      _
    // Predicated region
    $region66: #{cnn_forward.1} parent=1 // pred_check
      _
    $region67: #{cnn_forward.1} parent=1 // pred_check_branch
      %115 = sbr.rel (0) target = $region69
    $region68: #{cnn_forward.1} parent=1 // pred_region
      %117 = dma.done [#allocation8], 5120
    $region69: #{cnn_forward.1} parent=1 // pred_fallthru
      _
    // Predicated region
    $region70: #{cnn_forward.1} parent=1 // pred_check
      _
    $region71: #{cnn_forward.1} parent=1 // pred_check_branch
      %119 = sbr.rel (0) target = $region73
    $region72: #{cnn_forward.1} parent=1 // pred_region
      %121 = dma.done [#allocation8], 1024
    $region73: #{cnn_forward.1} parent=1 // pred_fallthru
      _
    %v123 = vld [vmem:[%s0] sm:$0xff]
    %v124 = vld [vmem:[%s0 + $0x8] sm:$0xff]
    %v125 = vld [vmem:[%s0 + $0x10] sm:$0xff]
    %v126 = vld [vmem:[%s0 + $0x18] sm:$0xff]
    %s127 = scalar_lea.vmem %s0, 32
    %v128 = vld [vmem:[%s127] sm:$0xff]
    %v129 = vld [vmem:[%s127 + $0x8] sm:$0xff]
    %v130 = vld [vmem:[%s127 + $0x10] sm:$0xff]
    %v131 = vld [vmem:[%s127 + $0x18] sm:$0xff]
    %s132 = scalar_lea.vmem %s0, 64
    %v133 = vld [vmem:[%s132] sm:$0xff]
    %v134 = vld [vmem:[%s132 + $0x8] sm:$0xff]
    %v135 = vld [vmem:[%s132 + $0x10] sm:$0xff]
    %v136 = vld [vmem:[%s132 + $0x18] sm:$0xff]
    %s137 = scalar_lea.vmem %s0, 96
    %v138 = vld [vmem:[%s137] sm:$0xff]
    %v139 = vld [vmem:[%s137 + $0x8] sm:$0xff]
    %v140 = vld [vmem:[%s137 + $0x10] sm:$0xff]
    %v141 = vld [vmem:[%s137 + $0x18] sm:$0xff]
    %s142 = scalar_lea.vmem %s0, 128
    %v143 = vld [vmem:[%s142] sm:$0xff]
    %v144 = vld [vmem:[%s142 + $0x8] sm:$0xff]
    %v145 = vld [vmem:[%s142 + $0x10] sm:$0xff]
    %v146 = vld [vmem:[%s142 + $0x18] sm:$0xff]
    %s147 = scalar_lea.vmem %s0, 160
    %v148 = vld [vmem:[%s147] sm:$0xff]
    %v149 = vld [vmem:[%s147 + $0x8] sm:$0xff]
    %v150 = vld [vmem:[%s147 + $0x10] sm:$0xff]
    %v151 = vld [vmem:[%s147 + $0x18] sm:$0xff]
    %s152 = scalar_lea.vmem %s0, 192
    %v153 = vld [vmem:[%s152] sm:$0xff]
    %v154 = vld [vmem:[%s152 + $0x8] sm:$0xff]
    %v155 = vld [vmem:[%s152 + $0x10] sm:$0xff]
    %v156 = vld [vmem:[%s152 + $0x18] sm:$0xff]
    %s157 = scalar_lea.vmem %s0, 224
    %v158 = vld [vmem:[%s157] sm:$0xff]
    %v159 = vld [vmem:[%s157 + $0x8] sm:$0xff]
    %v160 = vld [vmem:[%s157 + $0x10] sm:$0xff]
    %v161 = vld [vmem:[%s157 + $0x18] sm:$0xff]
    %v162 = vld [vmem:[%s2] sm:$0x3]
    %v164 = vperm.slane %v162, 0
    %v165 = vperm.slane %v162, 1
    %v168 = vpack.c.bf16 %v124, %v123
    %v169 = vpack.c.bf16 %v126, %v125
    %v170 = vpack.c.bf16 %v129, %v128
    %v171 = vpack.c.bf16 %v131, %v130
    %v172 = vpack.c.bf16 %v134, %v133
    %v173 = vpack.c.bf16 %v136, %v135
    %v174 = vpack.c.bf16 %v139, %v138
    %v175 = vpack.c.bf16 %v141, %v140
    %v176 = vpack.c.bf16 %v144, %v143
    %v177 = vpack.c.bf16 %v146, %v145
    %v178 = vpack.c.bf16 %v149, %v148
    %v179 = vpack.c.bf16 %v151, %v150
    %v180 = vpack.c.bf16 %v154, %v153
    %v181 = vpack.c.bf16 %v156, %v155
    %v182 = vpack.c.bf16 %v159, %v158
    %v183 = vpack.c.bf16 %v161, %v160
    %v184 = vld [vmem:[%s1] sm:$0xff]
    %v185 = vld [vmem:[%s1 + $0x8] sm:$0xff]
    %v186 = vld [vmem:[%s1 + $0x10] sm:$0xff]
    %v187 = vld [vmem:[%s1 + $0x18] sm:$0xff]
    %v192 = vunpack.c.l.b16 %v184
    %v193 = vunpack.c.h.b16 %v184
    %v194 = vunpack.c.l.b16 %v185
    %v195 = vunpack.c.h.b16 %v185
    %v196 = vunpack.c.l.b16 %v186
    %v197 = vunpack.c.h.b16 %v186
    %v198 = vunpack.c.l.b16 %v187
    %v199 = vunpack.c.h.b16 %v187
    %v200 = vpack.c.b16 %v194, %v192
    %v201 = vpack.c.b16 %v195, %v193
    %v202 = vpack.c.b16 %v198, %v196
    %v203 = vpack.c.b16 %v199, %v197
    %vm208 = vcmask 261120
    %v210 = vsel %vm208, %v168, 0
    %v213 = vsel %vm208, %v169, 0
    %v216 = vsel %vm208, %v170, 0
    %v219 = vsel %vm208, %v171, 0
    %v222 = vsel %vm208, %v172, 0
    %v225 = vsel %vm208, %v173, 0
    %v228 = vsel %vm208, %v174, 0
    %v231 = vsel %vm208, %v175, 0
    %v234 = vsel %vm208, %v176, 0
    %v237 = vsel %vm208, %v177, 0
    %v240 = vsel %vm208, %v178, 0
    %v243 = vsel %vm208, %v179, 0
    %v246 = vsel %vm208, %v180, 0
    %v249 = vsel %vm208, %v181, 0
    %v252 = vsel %vm208, %v182, 0
    %v255 = vsel %vm208, %v183, 0
    %257 = vmatpush.bf16.msra.mxu0 0
    %258 = vmatpush.bf16.msra.mxu0 0
    %259 = vmatpush.bf16.msra.mxu0 0
    %260 = vmatpush.bf16.msra.mxu0 0
    %261 = vmatpush.bf16.msra.mxu0 0
    %262 = vmatpush.bf16.msra.mxu0 0
    %263 = vmatpush.bf16.msra.mxu0 %v202
    %264 = vmatpush.bf16.msra.mxu0 %v200
    %265 = vmatmul.bf16.gmra.mxu0 %v210
    %v266 = vpop.f32.mrf.mxu0
    %v267 = vadd.f32 0.0, %v266
    %v268 = vpop.f32.mrf.mxu0
    %v269 = vadd.f32 0.0, %v268
    %270 = vmatmul.bf16.gmra.mxu0 %v213
    %v271 = vpop.f32.mrf.mxu0
    %v272 = vadd.f32 0.0, %v271
    %v273 = vpop.f32.mrf.mxu0
    %v274 = vadd.f32 0.0, %v273
    %275 = vmatmul.bf16.gmra.mxu0 %v216
    %v276 = vpop.f32.mrf.mxu0
    %v277 = vadd.f32 0.0, %v276
    %v278 = vpop.f32.mrf.mxu0
    %v279 = vadd.f32 0.0, %v278
    %280 = vmatmul.bf16.gmra.mxu0 %v219
    %v281 = vpop.f32.mrf.mxu0
    %v282 = vadd.f32 0.0, %v281
    %v283 = vpop.f32.mrf.mxu0
    %v284 = vadd.f32 0.0, %v283
    %285 = vmatmul.bf16.gmra.mxu0 %v222
    %v286 = vpop.f32.mrf.mxu0
    %v287 = vadd.f32 0.0, %v286
    %v288 = vpop.f32.mrf.mxu0
    %v289 = vadd.f32 0.0, %v288
    %290 = vmatmul.bf16.gmra.mxu0 %v225
    %v291 = vpop.f32.mrf.mxu0
    %v292 = vadd.f32 0.0, %v291
    %v293 = vpop.f32.mrf.mxu0
    %v294 = vadd.f32 0.0, %v293
    %295 = vmatmul.bf16.gmra.mxu0 %v228
    %v296 = vpop.f32.mrf.mxu0
    %v297 = vadd.f32 0.0, %v296
    %v298 = vpop.f32.mrf.mxu0
    %v299 = vadd.f32 0.0, %v298
    %300 = vmatmul.bf16.gmra.mxu0 %v231
    %v301 = vpop.f32.mrf.mxu0
    %v302 = vadd.f32 0.0, %v301
    %v303 = vpop.f32.mrf.mxu0
    %v304 = vadd.f32 0.0, %v303
    %305 = vmatmul.bf16.gmra.mxu0 %v234
    %v306 = vpop.f32.mrf.mxu0
    %v307 = vadd.f32 0.0, %v306
    %v308 = vpop.f32.mrf.mxu0
    %v309 = vadd.f32 0.0, %v308
    %310 = vmatmul.bf16.gmra.mxu0 %v237
    %v311 = vpop.f32.mrf.mxu0
    %v312 = vadd.f32 0.0, %v311
    %v313 = vpop.f32.mrf.mxu0
    %v314 = vadd.f32 0.0, %v313
    %315 = vmatmul.bf16.gmra.mxu0 %v240
    %v316 = vpop.f32.mrf.mxu0
    %v317 = vadd.f32 0.0, %v316
    %v318 = vpop.f32.mrf.mxu0
    %v319 = vadd.f32 0.0, %v318
    %320 = vmatmul.bf16.gmra.mxu0 %v243
    %v321 = vpop.f32.mrf.mxu0
    %v322 = vadd.f32 0.0, %v321
    %v323 = vpop.f32.mrf.mxu0
    %v324 = vadd.f32 0.0, %v323
    %325 = vmatmul.bf16.gmra.mxu0 %v246
    %v326 = vpop.f32.mrf.mxu0
    %v327 = vadd.f32 0.0, %v326
    %v328 = vpop.f32.mrf.mxu0
    %v329 = vadd.f32 0.0, %v328
    %330 = vmatmul.bf16.gmra.mxu0 %v249
    %v331 = vpop.f32.mrf.mxu0
    %v332 = vadd.f32 0.0, %v331
    %v333 = vpop.f32.mrf.mxu0
    %v334 = vadd.f32 0.0, %v333
    %335 = vmatmul.bf16.gmra.mxu0 %v252
    %v336 = vpop.f32.mrf.mxu0
    %v337 = vadd.f32 0.0, %v336
    %v338 = vpop.f32.mrf.mxu0
    %v339 = vadd.f32 0.0, %v338
    %340 = vmatmul.bf16.gmra.mxu0 %v255
    %v341 = vpop.f32.mrf.mxu0
    %v342 = vadd.f32 0.0, %v341
    %v343 = vpop.f32.mrf.mxu0
    %v344 = vadd.f32 0.0, %v343
    %345 = vdwg.mxu0
    %346 = vmatpush.bf16.msra.mxu0 0
    %347 = vmatpush.bf16.msra.mxu0 0
    %348 = vmatpush.bf16.msra.mxu0 0
    %349 = vmatpush.bf16.msra.mxu0 0
    %350 = vmatpush.bf16.msra.mxu0 0
    %351 = vmatpush.bf16.msra.mxu0 0
    %352 = vmatpush.bf16.msra.mxu0 %v203
    %353 = vmatpush.bf16.msra.mxu0 %v201
    %354 = vmatmul.bf16.gmra.mxu0 %v210
    %v355 = vpop.f32.mrf.mxu0
    %v356 = vadd.f32 0.0, %v355
    %v357 = vpop.f32.mrf.mxu0
    %v358 = vadd.f32 0.0, %v357
    %359 = vmatmul.bf16.gmra.mxu0 %v213
    %v360 = vpop.f32.mrf.mxu0
    %v361 = vadd.f32 0.0, %v360
    %v362 = vpop.f32.mrf.mxu0
    %v363 = vadd.f32 0.0, %v362
    %364 = vmatmul.bf16.gmra.mxu0 %v216
    %v365 = vpop.f32.mrf.mxu0
    %v366 = vadd.f32 0.0, %v365
    %v367 = vpop.f32.mrf.mxu0
    %v368 = vadd.f32 0.0, %v367
    %369 = vmatmul.bf16.gmra.mxu0 %v219
    %v370 = vpop.f32.mrf.mxu0
    %v371 = vadd.f32 0.0, %v370
    %v372 = vpop.f32.mrf.mxu0
    %v373 = vadd.f32 0.0, %v372
    %374 = vmatmul.bf16.gmra.mxu0 %v222
    %v375 = vpop.f32.mrf.mxu0
    %v376 = vadd.f32 0.0, %v375
    %v377 = vpop.f32.mrf.mxu0
    %v378 = vadd.f32 0.0, %v377
    %379 = vmatmul.bf16.gmra.mxu0 %v225
    %v380 = vpop.f32.mrf.mxu0
    %v381 = vadd.f32 0.0, %v380
    %v382 = vpop.f32.mrf.mxu0
    %v383 = vadd.f32 0.0, %v382
    %384 = vmatmul.bf16.gmra.mxu0 %v228
    %v385 = vpop.f32.mrf.mxu0
    %v386 = vadd.f32 0.0, %v385
    %v387 = vpop.f32.mrf.mxu0
    %v388 = vadd.f32 0.0, %v387
    %389 = vmatmul.bf16.gmra.mxu0 %v231
    %v390 = vpop.f32.mrf.mxu0
    %v391 = vadd.f32 0.0, %v390
    %v392 = vpop.f32.mrf.mxu0
    %v393 = vadd.f32 0.0, %v392
    %394 = vmatmul.bf16.gmra.mxu0 %v234
    %v395 = vpop.f32.mrf.mxu0
    %v396 = vadd.f32 0.0, %v395
    %v397 = vpop.f32.mrf.mxu0
    %v398 = vadd.f32 0.0, %v397
    %399 = vmatmul.bf16.gmra.mxu0 %v237
    %v400 = vpop.f32.mrf.mxu0
    %v401 = vadd.f32 0.0, %v400
    %v402 = vpop.f32.mrf.mxu0
    %v403 = vadd.f32 0.0, %v402
    %404 = vmatmul.bf16.gmra.mxu0 %v240
    %v405 = vpop.f32.mrf.mxu0
    %v406 = vadd.f32 0.0, %v405
    %v407 = vpop.f32.mrf.mxu0
    %v408 = vadd.f32 0.0, %v407
    %409 = vmatmul.bf16.gmra.mxu0 %v243
    %v410 = vpop.f32.mrf.mxu0
    %v411 = vadd.f32 0.0, %v410
    %v412 = vpop.f32.mrf.mxu0
    %v413 = vadd.f32 0.0, %v412
    %414 = vmatmul.bf16.gmra.mxu0 %v246
    %v415 = vpop.f32.mrf.mxu0
    %v416 = vadd.f32 0.0, %v415
    %v417 = vpop.f32.mrf.mxu0
    %v418 = vadd.f32 0.0, %v417
    %419 = vmatmul.bf16.gmra.mxu0 %v249
    %v420 = vpop.f32.mrf.mxu0
    %v421 = vadd.f32 0.0, %v420
    %v422 = vpop.f32.mrf.mxu0
    %v423 = vadd.f32 0.0, %v422
    %424 = vmatmul.bf16.gmra.mxu0 %v252
    %v425 = vpop.f32.mrf.mxu0
    %v426 = vadd.f32 0.0, %v425
    %v427 = vpop.f32.mrf.mxu0
    %v428 = vadd.f32 0.0, %v427
    %429 = vmatmul.bf16.gmra.mxu0 %v255
    %v430 = vpop.f32.mrf.mxu0
    %v431 = vadd.f32 0.0, %v430
    %v432 = vpop.f32.mrf.mxu0
    %v433 = vadd.f32 0.0, %v432
    %434 = vdwg.mxu0
    %v435 = vadd.f32 %v164, %v267
    %v436 = vadd.f32 %v165, %v356
    %v437 = vadd.f32 %v164, %v269
    %v438 = vadd.f32 %v165, %v358
    %v439 = vadd.f32 %v164, %v272
    %v440 = vadd.f32 %v165, %v361
    %v441 = vadd.f32 %v164, %v274
    %v442 = vadd.f32 %v165, %v363
    %v443 = vadd.f32 %v164, %v277
    %v444 = vadd.f32 %v165, %v366
    %v445 = vadd.f32 %v164, %v279
    %v446 = vadd.f32 %v165, %v368
    %v447 = vadd.f32 %v164, %v282
    %v448 = vadd.f32 %v165, %v371
    %v449 = vadd.f32 %v164, %v284
    %v450 = vadd.f32 %v165, %v373
    %v451 = vadd.f32 %v164, %v287
    %v452 = vadd.f32 %v165, %v376
    %v453 = vadd.f32 %v164, %v289
    %v454 = vadd.f32 %v165, %v378
    %v455 = vadd.f32 %v164, %v292
    %v456 = vadd.f32 %v165, %v381
    %v457 = vadd.f32 %v164, %v294
    %v458 = vadd.f32 %v165, %v383
    %v459 = vadd.f32 %v164, %v297
    %v460 = vadd.f32 %v165, %v386
    %v461 = vadd.f32 %v164, %v299
    %v462 = vadd.f32 %v165, %v388
    %v463 = vadd.f32 %v164, %v302
    %v464 = vadd.f32 %v165, %v391
    %v465 = vadd.f32 %v164, %v304
    %v466 = vadd.f32 %v165, %v393
    %v467 = vadd.f32 %v164, %v307
    %v468 = vadd.f32 %v165, %v396
    %v469 = vadd.f32 %v164, %v309
    %v470 = vadd.f32 %v165, %v398
    %v471 = vadd.f32 %v164, %v312
    %v472 = vadd.f32 %v165, %v401
    %v473 = vadd.f32 %v164, %v314
    %v474 = vadd.f32 %v165, %v403
    %v475 = vadd.f32 %v164, %v317
    %v476 = vadd.f32 %v165, %v406
    %v477 = vadd.f32 %v164, %v319
    %v478 = vadd.f32 %v165, %v408
    %v479 = vadd.f32 %v164, %v322
    %v480 = vadd.f32 %v165, %v411
    %v481 = vadd.f32 %v164, %v324
    %v482 = vadd.f32 %v165, %v413
    %v483 = vadd.f32 %v164, %v327
    %v484 = vadd.f32 %v165, %v416
    %v485 = vadd.f32 %v164, %v329
    %v486 = vadd.f32 %v165, %v418
    %v487 = vadd.f32 %v164, %v332
    %v488 = vadd.f32 %v165, %v421
    %v489 = vadd.f32 %v164, %v334
    %v490 = vadd.f32 %v165, %v423
    %v491 = vadd.f32 %v164, %v337
    %v492 = vadd.f32 %v165, %v426
    %v493 = vadd.f32 %v164, %v339
    %v494 = vadd.f32 %v165, %v428
    %v495 = vadd.f32 %v164, %v342
    %v496 = vadd.f32 %v165, %v431
    %v497 = vadd.f32 %v164, %v344
    %v498 = vadd.f32 %v165, %v433
    %v499 = vpack.c.bf16 0.0, 0.0
    %v500 = vld [vmem:[%s1 + $0x20] sm:$0xff]
    %v501 = vld [vmem:[%s1 + $0x28] sm:$0xff]
    %v502 = vld [vmem:[%s1 + $0x30] sm:$0xff]
    %v503 = vld [vmem:[%s1 + $0x38] sm:$0xff]
    %vm504 = vsmask.f32 7424
    %v505 = vshrl.u32 %v168, 16
    %v507 = vshll.u32 %v168, 16
    %v509 = vrot.slane %v507, 1
    %v510 = vor.u32 %v505, %v509
    %v511 = vshll.u32 %v169, 16
    %v513 = vrot.slane %v511, 1
    %v514 = vsel %vm504, %v510, %v513
    %v515 = vshrl.u32 %v169, 16
    %v517 = vor.u32 %v515, %v513
    %v518 = vshll.u32 %v170, 16
    %v520 = vrot.slane %v518, 1
    %v521 = vsel %vm504, %v517, %v520
    %v522 = vshrl.u32 %v170, 16
    %v524 = vor.u32 %v522, %v520
    %v525 = vshll.u32 %v171, 16
    %v527 = vrot.slane %v525, 1
    %v528 = vsel %vm504, %v524, %v527
    %v529 = vshrl.u32 %v171, 16
    %v531 = vor.u32 %v529, %v527
    %v532 = vshll.u32 %v172, 16
    %v534 = vrot.slane %v532, 1
    %v535 = vsel %vm504, %v531, %v534
    %v536 = vshrl.u32 %v172, 16
    %v538 = vor.u32 %v536, %v534
    %v539 = vshll.u32 %v173, 16
    %v541 = vrot.slane %v539, 1
    %v542 = vsel %vm504, %v538, %v541
    %v543 = vshrl.u32 %v173, 16
    %v545 = vor.u32 %v543, %v541
    %v546 = vshll.u32 %v174, 16
    %v548 = vrot.slane %v546, 1
    %v549 = vsel %vm504, %v545, %v548
    %v550 = vshrl.u32 %v174, 16
    %v552 = vor.u32 %v550, %v548
    %v553 = vshll.u32 %v175, 16
    %v555 = vrot.slane %v553, 1
    %v556 = vsel %vm504, %v552, %v555
    %v557 = vshrl.u32 %v175, 16
    %v559 = vor.u32 %v557, %v555
    %v560 = vshll.u32 %v176, 16
    %v562 = vrot.slane %v560, 1
    %v563 = vsel %vm504, %v559, %v562
    %v564 = vshrl.u32 %v176, 16
    %v566 = vor.u32 %v564, %v562
    %v567 = vshll.u32 %v177, 16
    %v569 = vrot.slane %v567, 1
    %v570 = vsel %vm504, %v566, %v569
    %v571 = vshrl.u32 %v177, 16
    %v573 = vor.u32 %v571, %v569
    %v574 = vshll.u32 %v178, 16
    %v576 = vrot.slane %v574, 1
    %v577 = vsel %vm504, %v573, %v576
    %v578 = vshrl.u32 %v178, 16
    %v580 = vor.u32 %v578, %v576
    %v581 = vshll.u32 %v179, 16
    %v583 = vrot.slane %v581, 1
    %v584 = vsel %vm504, %v580, %v583
    %v585 = vshrl.u32 %v179, 16
    %v587 = vor.u32 %v585, %v583
    %v588 = vshll.u32 %v180, 16
    %v590 = vrot.slane %v588, 1
    %v591 = vsel %vm504, %v587, %v590
    %v592 = vshrl.u32 %v180, 16
    %v594 = vor.u32 %v592, %v590
    %v595 = vshll.u32 %v181, 16
    %v597 = vrot.slane %v595, 1
    %v598 = vsel %vm504, %v594, %v597
    %v599 = vshrl.u32 %v181, 16
    %v601 = vor.u32 %v599, %v597
    %v602 = vshll.u32 %v182, 16
    %v604 = vrot.slane %v602, 1
    %v605 = vsel %vm504, %v601, %v604
    %v606 = vshrl.u32 %v182, 16
    %v608 = vor.u32 %v606, %v604
    %v609 = vshll.u32 %v183, 16
    %v611 = vrot.slane %v609, 1
    %v612 = vsel %vm504, %v608, %v611
    %v613 = vshrl.u32 %v183, 16
    %v615 = vor.u32 %v613, %v611
    %v617 = vshll.u32 %v499, 16
    %v619 = vrot.slane %v617, 1
    %v620 = vsel %vm504, %v615, %v619
    %v625 = vunpack.c.l.b16 %v500
    %v626 = vunpack.c.h.b16 %v500
    %v627 = vunpack.c.l.b16 %v501
    %v628 = vunpack.c.h.b16 %v501
    %v629 = vunpack.c.l.b16 %v502
    %v630 = vunpack.c.h.b16 %v502
    %v631 = vunpack.c.l.b16 %v503
    %v632 = vunpack.c.h.b16 %v503
    %v633 = vpack.c.b16 %v627, %v625
    %v634 = vpack.c.b16 %v628, %v626
    %v635 = vpack.c.b16 %v631, %v629
    %v636 = vpack.c.b16 %v632, %v630
    %v642 = vsel %vm208, %v514, 0
    %v645 = vsel %vm208, %v521, 0
    %v648 = vsel %vm208, %v528, 0
    %v651 = vsel %vm208, %v535, 0
    %v654 = vsel %vm208, %v542, 0
    %v657 = vsel %vm208, %v549, 0
    %v660 = vsel %vm208, %v556, 0
    %v663 = vsel %vm208, %v563, 0
    %v666 = vsel %vm208, %v570, 0
    %v669 = vsel %vm208, %v577, 0
    %v672 = vsel %vm208, %v584, 0
    %v675 = vsel %vm208, %v591, 0
    %v678 = vsel %vm208, %v598, 0
    %v681 = vsel %vm208, %v605, 0
    %v684 = vsel %vm208, %v612, 0
    %v687 = vsel %vm208, %v620, 0
    %689 = vmatpush.bf16.msra.mxu0 0
    %690 = vmatpush.bf16.msra.mxu0 0
    %691 = vmatpush.bf16.msra.mxu0 0
    %692 = vmatpush.bf16.msra.mxu0 0
    %693 = vmatpush.bf16.msra.mxu0 0
    %694 = vmatpush.bf16.msra.mxu0 0
    %695 = vmatpush.bf16.msra.mxu0 %v635
    %696 = vmatpush.bf16.msra.mxu0 %v633
    %697 = vmatmul.bf16.gmra.mxu0 %v642
    %v698 = vpop.f32.mrf.mxu0
    %v699 = vadd.f32 0.0, %v698
    %v700 = vpop.f32.mrf.mxu0
    %v701 = vadd.f32 0.0, %v700
    %702 = vmatmul.bf16.gmra.mxu0 %v645
    %v703 = vpop.f32.mrf.mxu0
    %v704 = vadd.f32 0.0, %v703
    %v705 = vpop.f32.mrf.mxu0
    %v706 = vadd.f32 0.0, %v705
    %707 = vmatmul.bf16.gmra.mxu0 %v648
    %v708 = vpop.f32.mrf.mxu0
    %v709 = vadd.f32 0.0, %v708
    %v710 = vpop.f32.mrf.mxu0
    %v711 = vadd.f32 0.0, %v710
    %712 = vmatmul.bf16.gmra.mxu0 %v651
    %v713 = vpop.f32.mrf.mxu0
    %v714 = vadd.f32 0.0, %v713
    %v715 = vpop.f32.mrf.mxu0
    %v716 = vadd.f32 0.0, %v715
    %717 = vmatmul.bf16.gmra.mxu0 %v654
    %v718 = vpop.f32.mrf.mxu0
    %v719 = vadd.f32 0.0, %v718
    %v720 = vpop.f32.mrf.mxu0
    %v721 = vadd.f32 0.0, %v720
    %722 = vmatmul.bf16.gmra.mxu0 %v657
    %v723 = vpop.f32.mrf.mxu0
    %v724 = vadd.f32 0.0, %v723
    %v725 = vpop.f32.mrf.mxu0
    %v726 = vadd.f32 0.0, %v725
    %727 = vmatmul.bf16.gmra.mxu0 %v660
    %v728 = vpop.f32.mrf.mxu0
    %v729 = vadd.f32 0.0, %v728
    %v730 = vpop.f32.mrf.mxu0
    %v731 = vadd.f32 0.0, %v730
    %732 = vmatmul.bf16.gmra.mxu0 %v663
    %v733 = vpop.f32.mrf.mxu0
    %v734 = vadd.f32 0.0, %v733
    %v735 = vpop.f32.mrf.mxu0
    %v736 = vadd.f32 0.0, %v735
    %737 = vmatmul.bf16.gmra.mxu0 %v666
    %v738 = vpop.f32.mrf.mxu0
    %v739 = vadd.f32 0.0, %v738
    %v740 = vpop.f32.mrf.mxu0
    %v741 = vadd.f32 0.0, %v740
    %742 = vmatmul.bf16.gmra.mxu0 %v669
    %v743 = vpop.f32.mrf.mxu0
    %v744 = vadd.f32 0.0, %v743
    %v745 = vpop.f32.mrf.mxu0
    %v746 = vadd.f32 0.0, %v745
    %747 = vmatmul.bf16.gmra.mxu0 %v672
    %v748 = vpop.f32.mrf.mxu0
    %v749 = vadd.f32 0.0, %v748
    %v750 = vpop.f32.mrf.mxu0
    %v751 = vadd.f32 0.0, %v750
    %752 = vmatmul.bf16.gmra.mxu0 %v675
    %v753 = vpop.f32.mrf.mxu0
    %v754 = vadd.f32 0.0, %v753
    %v755 = vpop.f32.mrf.mxu0
    %v756 = vadd.f32 0.0, %v755
    %757 = vmatmul.bf16.gmra.mxu0 %v678
    %v758 = vpop.f32.mrf.mxu0
    %v759 = vadd.f32 0.0, %v758
    %v760 = vpop.f32.mrf.mxu0
    %v761 = vadd.f32 0.0, %v760
    %762 = vmatmul.bf16.gmra.mxu0 %v681
    %v763 = vpop.f32.mrf.mxu0
    %v764 = vadd.f32 0.0, %v763
    %v765 = vpop.f32.mrf.mxu0
    %v766 = vadd.f32 0.0, %v765
    %767 = vmatmul.bf16.gmra.mxu0 %v684
    %v768 = vpop.f32.mrf.mxu0
    %v769 = vadd.f32 0.0, %v768
    %v770 = vpop.f32.mrf.mxu0
    %v771 = vadd.f32 0.0, %v770
    %772 = vmatmul.bf16.gmra.mxu0 %v687
    %v773 = vpop.f32.mrf.mxu0
    %v774 = vadd.f32 0.0, %v773
    %v775 = vpop.f32.mrf.mxu0
    %v776 = vadd.f32 0.0, %v775
    %777 = vdwg.mxu0
    %778 = vmatpush.bf16.msra.mxu0 0
    %779 = vmatpush.bf16.msra.mxu0 0
    %780 = vmatpush.bf16.msra.mxu0 0
    %781 = vmatpush.bf16.msra.mxu0 0
    %782 = vmatpush.bf16.msra.mxu0 0
    %783 = vmatpush.bf16.msra.mxu0 0
    %784 = vmatpush.bf16.msra.mxu0 %v636
    %785 = vmatpush.bf16.msra.mxu0 %v634
    %786 = vmatmul.bf16.gmra.mxu0 %v642
    %v787 = vpop.f32.mrf.mxu0
    %v788 = vadd.f32 0.0, %v787
    %v789 = vpop.f32.mrf.mxu0
    %v790 = vadd.f32 0.0, %v789
    %791 = vmatmul.bf16.gmra.mxu0 %v645
    %v792 = vpop.f32.mrf.mxu0
    %v793 = vadd.f32 0.0, %v792
    %v794 = vpop.f32.mrf.mxu0
    %v795 = vadd.f32 0.0, %v794
    %796 = vmatmul.bf16.gmra.mxu0 %v648
    %v797 = vpop.f32.mrf.mxu0
    %v798 = vadd.f32 0.0, %v797
    %v799 = vpop.f32.mrf.mxu0
    %v800 = vadd.f32 0.0, %v799
    %801 = vmatmul.bf16.gmra.mxu0 %v651
    %v802 = vpop.f32.mrf.mxu0
    %v803 = vadd.f32 0.0, %v802
    %v804 = vpop.f32.mrf.mxu0
    %v805 = vadd.f32 0.0, %v804
    %806 = vmatmul.bf16.gmra.mxu0 %v654
    %v807 = vpop.f32.mrf.mxu0
    %v808 = vadd.f32 0.0, %v807
    %v809 = vpop.f32.mrf.mxu0
    %v810 = vadd.f32 0.0, %v809
    %811 = vmatmul.bf16.gmra.mxu0 %v657
    %v812 = vpop.f32.mrf.mxu0
    %v813 = vadd.f32 0.0, %v812
    %v814 = vpop.f32.mrf.mxu0
    %v815 = vadd.f32 0.0, %v814
    %816 = vmatmul.bf16.gmra.mxu0 %v660
    %v817 = vpop.f32.mrf.mxu0
    %v818 = vadd.f32 0.0, %v817
    %v819 = vpop.f32.mrf.mxu0
    %v820 = vadd.f32 0.0, %v819
    %821 = vmatmul.bf16.gmra.mxu0 %v663
    %v822 = vpop.f32.mrf.mxu0
    %v823 = vadd.f32 0.0, %v822
    %v824 = vpop.f32.mrf.mxu0
    %v825 = vadd.f32 0.0, %v824
    %826 = vmatmul.bf16.gmra.mxu0 %v666
    %v827 = vpop.f32.mrf.mxu0
    %v828 = vadd.f32 0.0, %v827
    %v829 = vpop.f32.mrf.mxu0
    %v830 = vadd.f32 0.0, %v829
    %831 = vmatmul.bf16.gmra.mxu0 %v669
    %v832 = vpop.f32.mrf.mxu0
    %v833 = vadd.f32 0.0, %v832
    %v834 = vpop.f32.mrf.mxu0
    %v835 = vadd.f32 0.0, %v834
    %836 = vmatmul.bf16.gmra.mxu0 %v672
    %v837 = vpop.f32.mrf.mxu0
    %v838 = vadd.f32 0.0, %v837
    %v839 = vpop.f32.mrf.mxu0
    %v840 = vadd.f32 0.0, %v839
    %841 = vmatmul.bf16.gmra.mxu0 %v675
    %v842 = vpop.f32.mrf.mxu0
    %v843 = vadd.f32 0.0, %v842
    %v844 = vpop.f32.mrf.mxu0
    %v845 = vadd.f32 0.0, %v844
    %846 = vmatmul.bf16.gmra.mxu0 %v678
    %v847 = vpop.f32.mrf.mxu0
    %v848 = vadd.f32 0.0, %v847
    %v849 = vpop.f32.mrf.mxu0
    %v850 = vadd.f32 0.0, %v849
    %851 = vmatmul.bf16.gmra.mxu0 %v681
    %v852 = vpop.f32.mrf.mxu0
    %v853 = vadd.f32 0.0, %v852
    %v854 = vpop.f32.mrf.mxu0
    %v855 = vadd.f32 0.0, %v854
    %856 = vmatmul.bf16.gmra.mxu0 %v684
    %v857 = vpop.f32.mrf.mxu0
    %v858 = vadd.f32 0.0, %v857
    %v859 = vpop.f32.mrf.mxu0
    %v860 = vadd.f32 0.0, %v859
    %861 = vmatmul.bf16.gmra.mxu0 %v687
    %v862 = vpop.f32.mrf.mxu0
    %v863 = vadd.f32 0.0, %v862
    %v864 = vpop.f32.mrf.mxu0
    %v865 = vadd.f32 0.0, %v864
    %866 = vdwg.mxu0
    %v867 = vadd.f32 %v435, %v699
    %v868 = vadd.f32 %v436, %v788
    %v869 = vadd.f32 %v437, %v701
    %v870 = vadd.f32 %v438, %v790
    %v871 = vadd.f32 %v439, %v704
    %v872 = vadd.f32 %v440, %v793
    %v873 = vadd.f32 %v441, %v706
    %v874 = vadd.f32 %v442, %v795
    %v875 = vadd.f32 %v443, %v709
    %v876 = vadd.f32 %v444, %v798
    %v877 = vadd.f32 %v445, %v711
    %v878 = vadd.f32 %v446, %v800
    %v879 = vadd.f32 %v447, %v714
    %v880 = vadd.f32 %v448, %v803
    %v881 = vadd.f32 %v449, %v716
    %v882 = vadd.f32 %v450, %v805
    %v883 = vadd.f32 %v451, %v719
    %v884 = vadd.f32 %v452, %v808
    %v885 = vadd.f32 %v453, %v721
    %v886 = vadd.f32 %v454, %v810
    %v887 = vadd.f32 %v455, %v724
    %v888 = vadd.f32 %v456, %v813
    %v889 = vadd.f32 %v457, %v726
    %v890 = vadd.f32 %v458, %v815
    %v891 = vadd.f32 %v459, %v729
    %v892 = vadd.f32 %v460, %v818
    %v893 = vadd.f32 %v461, %v731
    %v894 = vadd.f32 %v462, %v820
    %v895 = vadd.f32 %v463, %v734
    %v896 = vadd.f32 %v464, %v823
    %v897 = vadd.f32 %v465, %v736
    %v898 = vadd.f32 %v466, %v825
    %v899 = vadd.f32 %v467, %v739
    %v900 = vadd.f32 %v468, %v828
    %v901 = vadd.f32 %v469, %v741
    %v902 = vadd.f32 %v470, %v830
    %v903 = vadd.f32 %v471, %v744
    %v904 = vadd.f32 %v472, %v833
    %v905 = vadd.f32 %v473, %v746
    %v906 = vadd.f32 %v474, %v835
    %v907 = vadd.f32 %v475, %v749
    %v908 = vadd.f32 %v476, %v838
    %v909 = vadd.f32 %v477, %v751
    %v910 = vadd.f32 %v478, %v840
    %v911 = vadd.f32 %v479, %v754
    %v912 = vadd.f32 %v480, %v843
    %v913 = vadd.f32 %v481, %v756
    %v914 = vadd.f32 %v482, %v845
    %v915 = vadd.f32 %v483, %v759
    %v916 = vadd.f32 %v484, %v848
    %v917 = vadd.f32 %v485, %v761
    %v918 = vadd.f32 %v486, %v850
    %v919 = vadd.f32 %v487, %v764
    %v920 = vadd.f32 %v488, %v853
    %v921 = vadd.f32 %v489, %v766
    %v922 = vadd.f32 %v490, %v855
    %v923 = vadd.f32 %v491, %v769
    %v924 = vadd.f32 %v492, %v858
    %v925 = vadd.f32 %v493, %v771
    %v926 = vadd.f32 %v494, %v860
    %v927 = vadd.f32 %v495, %v774
    %v928 = vadd.f32 %v496, %v863
    %v929 = vadd.f32 %v497, %v776
    %v930 = vadd.f32 %v498, %v865
    %v931 = vld [vmem:[%s1 + $0x40] sm:$0xff]
    %v932 = vld [vmem:[%s1 + $0x48] sm:$0xff]
    %v933 = vld [vmem:[%s1 + $0x50] sm:$0xff]
    %v934 = vld [vmem:[%s1 + $0x58] sm:$0xff]
    %vm952 = vcmask 1046528
    %v953 = vrot.slane %v168, 1
    %v954 = vrot.slane %v169, 1
    %v955 = vsel %vm952, %v953, %v954
    %v956 = vrot.slane %v170, 1
    %v957 = vsel %vm952, %v954, %v956
    %v958 = vrot.slane %v171, 1
    %v959 = vsel %vm952, %v956, %v958
    %v960 = vrot.slane %v172, 1
    %v961 = vsel %vm952, %v958, %v960
    %v962 = vrot.slane %v173, 1
    %v963 = vsel %vm952, %v960, %v962
    %v964 = vrot.slane %v174, 1
    %v965 = vsel %vm952, %v962, %v964
    %v966 = vrot.slane %v175, 1
    %v967 = vsel %vm952, %v964, %v966
    %v968 = vrot.slane %v176, 1
    %v969 = vsel %vm952, %v966, %v968
    %v970 = vrot.slane %v177, 1
    %v971 = vsel %vm952, %v968, %v970
    %v972 = vrot.slane %v178, 1
    %v973 = vsel %vm952, %v970, %v972
    %v974 = vrot.slane %v179, 1
    %v975 = vsel %vm952, %v972, %v974
    %v976 = vrot.slane %v180, 1
    %v977 = vsel %vm952, %v974, %v976
    %v978 = vrot.slane %v181, 1
    %v979 = vsel %vm952, %v976, %v978
    %v980 = vrot.slane %v182, 1
    %v981 = vsel %vm952, %v978, %v980
    %v982 = vrot.slane %v183, 1
    %v983 = vsel %vm952, %v980, %v982
    %v984 = vrot.slane %v499, 1
    %v985 = vsel %vm952, %v982, %v984
    %v990 = vunpack.c.l.b16 %v931
    %v991 = vunpack.c.h.b16 %v931
    %v992 = vunpack.c.l.b16 %v932
    %v993 = vunpack.c.h.b16 %v932
    %v994 = vunpack.c.l.b16 %v933
    %v995 = vunpack.c.h.b16 %v933
    %v996 = vunpack.c.l.b16 %v934
    %v997 = vunpack.c.h.b16 %v934
    %v998 = vpack.c.b16 %v992, %v990
    %v999 = vpack.c.b16 %v993, %v991
    %v1000 = vpack.c.b16 %v996, %v994
    %v1001 = vpack.c.b16 %v997, %v995
    %v1007 = vsel %vm208, %v955, 0
    %v1010 = vsel %vm208, %v957, 0
    %v1013 = vsel %vm208, %v959, 0
    %v1016 = vsel %vm208, %v961, 0
    %v1019 = vsel %vm208, %v963, 0
    %v1022 = vsel %vm208, %v965, 0
    %v1025 = vsel %vm208, %v967, 0
    %v1028 = vsel %vm208, %v969, 0
    %v1031 = vsel %vm208, %v971, 0
    %v1034 = vsel %vm208, %v973, 0
    %v1037 = vsel %vm208, %v975, 0
    %v1040 = vsel %vm208, %v977, 0
    %v1043 = vsel %vm208, %v979, 0
    %v1046 = vsel %vm208, %v981, 0
    %v1049 = vsel %vm208, %v983, 0
    %v1052 = vsel %vm208, %v985, 0
    %1054 = vmatpush.bf16.msra.mxu0 0
    %1055 = vmatpush.bf16.msra.mxu0 0
    %1056 = vmatpush.bf16.msra.mxu0 0
    %1057 = vmatpush.bf16.msra.mxu0 0
    %1058 = vmatpush.bf16.msra.mxu0 0
    %1059 = vmatpush.bf16.msra.mxu0 0
    %1060 = vmatpush.bf16.msra.mxu0 %v1000
    %1061 = vmatpush.bf16.msra.mxu0 %v998
    %1062 = vmatmul.bf16.gmra.mxu0 %v1007
    %v1063 = vpop.f32.mrf.mxu0
    %v1064 = vadd.f32 0.0, %v1063
    %v1065 = vpop.f32.mrf.mxu0
    %v1066 = vadd.f32 0.0, %v1065
    %1067 = vmatmul.bf16.gmra.mxu0 %v1010
    %v1068 = vpop.f32.mrf.mxu0
    %v1069 = vadd.f32 0.0, %v1068
    %v1070 = vpop.f32.mrf.mxu0
    %v1071 = vadd.f32 0.0, %v1070
    %1072 = vmatmul.bf16.gmra.mxu0 %v1013
    %v1073 = vpop.f32.mrf.mxu0
    %v1074 = vadd.f32 0.0, %v1073
    %v1075 = vpop.f32.mrf.mxu0
    %v1076 = vadd.f32 0.0, %v1075
    %1077 = vmatmul.bf16.gmra.mxu0 %v1016
    %v1078 = vpop.f32.mrf.mxu0
    %v1079 = vadd.f32 0.0, %v1078
    %v1080 = vpop.f32.mrf.mxu0
    %v1081 = vadd.f32 0.0, %v1080
    %1082 = vmatmul.bf16.gmra.mxu0 %v1019
    %v1083 = vpop.f32.mrf.mxu0
    %v1084 = vadd.f32 0.0, %v1083
    %v1085 = vpop.f32.mrf.mxu0
    %v1086 = vadd.f32 0.0, %v1085
    %1087 = vmatmul.bf16.gmra.mxu0 %v1022
    %v1088 = vpop.f32.mrf.mxu0
    %v1089 = vadd.f32 0.0, %v1088
    %v1090 = vpop.f32.mrf.mxu0
    %v1091 = vadd.f32 0.0, %v1090
    %1092 = vmatmul.bf16.gmra.mxu0 %v1025
    %v1093 = vpop.f32.mrf.mxu0
    %v1094 = vadd.f32 0.0, %v1093
    %v1095 = vpop.f32.mrf.mxu0
    %v1096 = vadd.f32 0.0, %v1095
    %1097 = vmatmul.bf16.gmra.mxu0 %v1028
    %v1098 = vpop.f32.mrf.mxu0
    %v1099 = vadd.f32 0.0, %v1098
    %v1100 = vpop.f32.mrf.mxu0
    %v1101 = vadd.f32 0.0, %v1100
    %1102 = vmatmul.bf16.gmra.mxu0 %v1031
    %v1103 = vpop.f32.mrf.mxu0
    %v1104 = vadd.f32 0.0, %v1103
    %v1105 = vpop.f32.mrf.mxu0
    %v1106 = vadd.f32 0.0, %v1105
    %1107 = vmatmul.bf16.gmra.mxu0 %v1034
    %v1108 = vpop.f32.mrf.mxu0
    %v1109 = vadd.f32 0.0, %v1108
    %v1110 = vpop.f32.mrf.mxu0
    %v1111 = vadd.f32 0.0, %v1110
    %1112 = vmatmul.bf16.gmra.mxu0 %v1037
    %v1113 = vpop.f32.mrf.mxu0
    %v1114 = vadd.f32 0.0, %v1113
    %v1115 = vpop.f32.mrf.mxu0
    %v1116 = vadd.f32 0.0, %v1115
    %1117 = vmatmul.bf16.gmra.mxu0 %v1040
    %v1118 = vpop.f32.mrf.mxu0
    %v1119 = vadd.f32 0.0, %v1118
    %v1120 = vpop.f32.mrf.mxu0
    %v1121 = vadd.f32 0.0, %v1120
    %1122 = vmatmul.bf16.gmra.mxu0 %v1043
    %v1123 = vpop.f32.mrf.mxu0
    %v1124 = vadd.f32 0.0, %v1123
    %v1125 = vpop.f32.mrf.mxu0
    %v1126 = vadd.f32 0.0, %v1125
    %1127 = vmatmul.bf16.gmra.mxu0 %v1046
    %v1128 = vpop.f32.mrf.mxu0
    %v1129 = vadd.f32 0.0, %v1128
    %v1130 = vpop.f32.mrf.mxu0
    %v1131 = vadd.f32 0.0, %v1130
    %1132 = vmatmul.bf16.gmra.mxu0 %v1049
    %v1133 = vpop.f32.mrf.mxu0
    %v1134 = vadd.f32 0.0, %v1133
    %v1135 = vpop.f32.mrf.mxu0
    %v1136 = vadd.f32 0.0, %v1135
    %1137 = vmatmul.bf16.gmra.mxu0 %v1052
    %v1138 = vpop.f32.mrf.mxu0
    %v1139 = vadd.f32 0.0, %v1138
    %v1140 = vpop.f32.mrf.mxu0
    %v1141 = vadd.f32 0.0, %v1140
    %1142 = vdwg.mxu0
    %1143 = vmatpush.bf16.msra.mxu0 0
    %1144 = vmatpush.bf16.msra.mxu0 0
    %1145 = vmatpush.bf16.msra.mxu0 0
    %1146 = vmatpush.bf16.msra.mxu0 0
    %1147 = vmatpush.bf16.msra.mxu0 0
    %1148 = vmatpush.bf16.msra.mxu0 0
    %1149 = vmatpush.bf16.msra.mxu0 %v1001
    %1150 = vmatpush.bf16.msra.mxu0 %v999
    %1151 = vmatmul.bf16.gmra.mxu0 %v1007
    %v1152 = vpop.f32.mrf.mxu0
    %v1153 = vadd.f32 0.0, %v1152
    %v1154 = vpop.f32.mrf.mxu0
    %v1155 = vadd.f32 0.0, %v1154
    %1156 = vmatmul.bf16.gmra.mxu0 %v1010
    %v1157 = vpop.f32.mrf.mxu0
    %v1158 = vadd.f32 0.0, %v1157
    %v1159 = vpop.f32.mrf.mxu0
    %v1160 = vadd.f32 0.0, %v1159
    %1161 = vmatmul.bf16.gmra.mxu0 %v1013
    %v1162 = vpop.f32.mrf.mxu0
    %v1163 = vadd.f32 0.0, %v1162
    %v1164 = vpop.f32.mrf.mxu0
    %v1165 = vadd.f32 0.0, %v1164
    %1166 = vmatmul.bf16.gmra.mxu0 %v1016
    %v1167 = vpop.f32.mrf.mxu0
    %v1168 = vadd.f32 0.0, %v1167
    %v1169 = vpop.f32.mrf.mxu0
    %v1170 = vadd.f32 0.0, %v1169
    %1171 = vmatmul.bf16.gmra.mxu0 %v1019
    %v1172 = vpop.f32.mrf.mxu0
    %v1173 = vadd.f32 0.0, %v1172
    %v1174 = vpop.f32.mrf.mxu0
    %v1175 = vadd.f32 0.0, %v1174
    %1176 = vmatmul.bf16.gmra.mxu0 %v1022
    %v1177 = vpop.f32.mrf.mxu0
    %v1178 = vadd.f32 0.0, %v1177
    %v1179 = vpop.f32.mrf.mxu0
    %v1180 = vadd.f32 0.0, %v1179
    %1181 = vmatmul.bf16.gmra.mxu0 %v1025
    %v1182 = vpop.f32.mrf.mxu0
    %v1183 = vadd.f32 0.0, %v1182
    %v1184 = vpop.f32.mrf.mxu0
    %v1185 = vadd.f32 0.0, %v1184
    %1186 = vmatmul.bf16.gmra.mxu0 %v1028
    %v1187 = vpop.f32.mrf.mxu0
    %v1188 = vadd.f32 0.0, %v1187
    %v1189 = vpop.f32.mrf.mxu0
    %v1190 = vadd.f32 0.0, %v1189
    %1191 = vmatmul.bf16.gmra.mxu0 %v1031
    %v1192 = vpop.f32.mrf.mxu0
    %v1193 = vadd.f32 0.0, %v1192
    %v1194 = vpop.f32.mrf.mxu0
    %v1195 = vadd.f32 0.0, %v1194
    %1196 = vmatmul.bf16.gmra.mxu0 %v1034
    %v1197 = vpop.f32.mrf.mxu0
    %v1198 = vadd.f32 0.0, %v1197
    %v1199 = vpop.f32.mrf.mxu0
    %v1200 = vadd.f32 0.0, %v1199
    %1201 = vmatmul.bf16.gmra.mxu0 %v1037
    %v1202 = vpop.f32.mrf.mxu0
    %v1203 = vadd.f32 0.0, %v1202
    %v1204 = vpop.f32.mrf.mxu0
    %v1205 = vadd.f32 0.0, %v1204
    %1206 = vmatmul.bf16.gmra.mxu0 %v1040
    %v1207 = vpop.f32.mrf.mxu0
    %v1208 = vadd.f32 0.0, %v1207
    %v1209 = vpop.f32.mrf.mxu0
    %v1210 = vadd.f32 0.0, %v1209
    %1211 = vmatmul.bf16.gmra.mxu0 %v1043
    %v1212 = vpop.f32.mrf.mxu0
    %v1213 = vadd.f32 0.0, %v1212
    %v1214 = vpop.f32.mrf.mxu0
    %v1215 = vadd.f32 0.0, %v1214
    %1216 = vmatmul.bf16.gmra.mxu0 %v1046
    %v1217 = vpop.f32.mrf.mxu0
    %v1218 = vadd.f32 0.0, %v1217
    %v1219 = vpop.f32.mrf.mxu0
    %v1220 = vadd.f32 0.0, %v1219
    %1221 = vmatmul.bf16.gmra.mxu0 %v1049
    %v1222 = vpop.f32.mrf.mxu0
    %v1223 = vadd.f32 0.0, %v1222
    %v1224 = vpop.f32.mrf.mxu0
    %v1225 = vadd.f32 0.0, %v1224
    %1226 = vmatmul.bf16.gmra.mxu0 %v1052
    %v1227 = vpop.f32.mrf.mxu0
    %v1228 = vadd.f32 0.0, %v1227
    %v1229 = vpop.f32.mrf.mxu0
    %v1230 = vadd.f32 0.0, %v1229
    %1231 = vdwg.mxu0
    %v1232 = vadd.f32 %v867, %v1064
    %v1233 = vadd.f32 %v868, %v1153
    %v1234 = vadd.f32 %v869, %v1066
    %v1235 = vadd.f32 %v870, %v1155
    %v1236 = vadd.f32 %v871, %v1069
    %v1237 = vadd.f32 %v872, %v1158
    %v1238 = vadd.f32 %v873, %v1071
    %v1239 = vadd.f32 %v874, %v1160
    %v1240 = vadd.f32 %v875, %v1074
    %v1241 = vadd.f32 %v876, %v1163
    %v1242 = vadd.f32 %v877, %v1076
    %v1243 = vadd.f32 %v878, %v1165
    %v1244 = vadd.f32 %v879, %v1079
    %v1245 = vadd.f32 %v880, %v1168
    %v1246 = vadd.f32 %v881, %v1081
    %v1247 = vadd.f32 %v882, %v1170
    %v1248 = vadd.f32 %v883, %v1084
    %v1249 = vadd.f32 %v884, %v1173
    %v1250 = vadd.f32 %v885, %v1086
    %v1251 = vadd.f32 %v886, %v1175
    %v1252 = vadd.f32 %v887, %v1089
    %v1253 = vadd.f32 %v888, %v1178
    %v1254 = vadd.f32 %v889, %v1091
    %v1255 = vadd.f32 %v890, %v1180
    %v1256 = vadd.f32 %v891, %v1094
    %v1257 = vadd.f32 %v892, %v1183
    %v1258 = vadd.f32 %v893, %v1096
    %v1259 = vadd.f32 %v894, %v1185
    %v1260 = vadd.f32 %v895, %v1099
    %v1261 = vadd.f32 %v896, %v1188
    %v1262 = vadd.f32 %v897, %v1101
    %v1263 = vadd.f32 %v898, %v1190
    %v1264 = vadd.f32 %v899, %v1104
    %v1265 = vadd.f32 %v900, %v1193
    %v1266 = vadd.f32 %v901, %v1106
    %v1267 = vadd.f32 %v902, %v1195
    %v1268 = vadd.f32 %v903, %v1109
    %v1269 = vadd.f32 %v904, %v1198
    %v1270 = vadd.f32 %v905, %v1111
    %v1271 = vadd.f32 %v906, %v1200
    %v1272 = vadd.f32 %v907, %v1114
    %v1273 = vadd.f32 %v908, %v1203
    %v1274 = vadd.f32 %v909, %v1116
    %v1275 = vadd.f32 %v910, %v1205
    %v1276 = vadd.f32 %v911, %v1119
    %v1277 = vadd.f32 %v912, %v1208
    %v1278 = vadd.f32 %v913, %v1121
    %v1279 = vadd.f32 %v914, %v1210
    %v1280 = vadd.f32 %v915, %v1124
    %v1281 = vadd.f32 %v916, %v1213
    %v1282 = vadd.f32 %v917, %v1126
    %v1283 = vadd.f32 %v918, %v1215
    %v1284 = vadd.f32 %v919, %v1129
    %v1285 = vadd.f32 %v920, %v1218
    %v1286 = vadd.f32 %v921, %v1131
    %v1287 = vadd.f32 %v922, %v1220
    %v1288 = vadd.f32 %v923, %v1134
    %v1289 = vadd.f32 %v924, %v1223
    %v1290 = vadd.f32 %v925, %v1136
    %v1291 = vadd.f32 %v926, %v1225
    %v1292 = vadd.f32 %v927, %v1139
    %v1293 = vadd.f32 %v928, %v1228
    %v1294 = vadd.f32 %v929, %v1141
    %v1295 = vadd.f32 %v930, %v1230
    %v1296 = vld [vmem:[%s1 + $0x60] sm:$0xff]
    %v1297 = vld [vmem:[%s1 + $0x68] sm:$0xff]
    %v1298 = vld [vmem:[%s1 + $0x70] sm:$0xff]
    %v1299 = vld [vmem:[%s1 + $0x78] sm:$0xff]
    %vm1300 = vsmask.f32 6400
    %v1301 = vrot.slane %v505, 1
    %v1302 = vrot.slane %v507, 2
    %v1303 = vor.u32 %v1301, %v1302
    %v1304 = vrot.slane %v515, 1
    %v1305 = vrot.slane %v511, 2
    %v1306 = vor.u32 %v1304, %v1305
    %v1307 = vsel %vm1300, %v1303, %v1306
    %v1308 = vrot.slane %v522, 1
    %v1309 = vrot.slane %v518, 2
    %v1310 = vor.u32 %v1308, %v1309
    %v1311 = vsel %vm1300, %v1306, %v1310
    %v1312 = vrot.slane %v529, 1
    %v1313 = vrot.slane %v525, 2
    %v1314 = vor.u32 %v1312, %v1313
    %v1315 = vsel %vm1300, %v1310, %v1314
    %v1316 = vrot.slane %v536, 1
    %v1317 = vrot.slane %v532, 2
    %v1318 = vor.u32 %v1316, %v1317
    %v1319 = vsel %vm1300, %v1314, %v1318
    %v1320 = vrot.slane %v543, 1
    %v1321 = vrot.slane %v539, 2
    %v1322 = vor.u32 %v1320, %v1321
    %v1323 = vsel %vm1300, %v1318, %v1322
    %v1324 = vrot.slane %v550, 1
    %v1325 = vrot.slane %v546, 2
    %v1326 = vor.u32 %v1324, %v1325
    %v1327 = vsel %vm1300, %v1322, %v1326
    %v1328 = vrot.slane %v557, 1
    %v1329 = vrot.slane %v553, 2
    %v1330 = vor.u32 %v1328, %v1329
    %v1331 = vsel %vm1300, %v1326, %v1330
    %v1332 = vrot.slane %v564, 1
    %v1333 = vrot.slane %v560, 2
    %v1334 = vor.u32 %v1332, %v1333
    %v1335 = vsel %vm1300, %v1330, %v1334
    %v1336 = vrot.slane %v571, 1
    %v1337 = vrot.slane %v567, 2
    %v1338 = vor.u32 %v1336, %v1337
    %v1339 = vsel %vm1300, %v1334, %v1338
    %v1340 = vrot.slane %v578, 1
    %v1341 = vrot.slane %v574, 2
    %v1342 = vor.u32 %v1340, %v1341
    %v1343 = vsel %vm1300, %v1338, %v1342
    %v1344 = vrot.slane %v585, 1
    %v1345 = vrot.slane %v581, 2
    %v1346 = vor.u32 %v1344, %v1345
    %v1347 = vsel %vm1300, %v1342, %v1346
    %v1348 = vrot.slane %v592, 1
    %v1349 = vrot.slane %v588, 2
    %v1350 = vor.u32 %v1348, %v1349
    %v1351 = vsel %vm1300, %v1346, %v1350
    %v1352 = vrot.slane %v599, 1
    %v1353 = vrot.slane %v595, 2
    %v1354 = vor.u32 %v1352, %v1353
    %v1355 = vsel %vm1300, %v1350, %v1354
    %v1356 = vrot.slane %v606, 1
    %v1357 = vrot.slane %v602, 2
    %v1358 = vor.u32 %v1356, %v1357
    %v1359 = vsel %vm1300, %v1354, %v1358
    %v1360 = vrot.slane %v613, 1
    %v1361 = vrot.slane %v609, 2
    %v1362 = vor.u32 %v1360, %v1361
    %v1363 = vsel %vm1300, %v1358, %v1362
    %v1364 = vshrl.u32 %v499, 16
    %v1366 = vrot.slane %v1364, 1
    %v1367 = vrot.slane %v617, 2
    %v1368 = vor.u32 %v1366, %v1367
    %v1369 = vsel %vm1300, %v1362, %v1368
    %v1374 = vunpack.c.l.b16 %v1296
    %v1375 = vunpack.c.h.b16 %v1296
    %v1376 = vunpack.c.l.b16 %v1297
    %v1377 = vunpack.c.h.b16 %v1297
    %v1378 = vunpack.c.l.b16 %v1298
    %v1379 = vunpack.c.h.b16 %v1298
    %v1380 = vunpack.c.l.b16 %v1299
    %v1381 = vunpack.c.h.b16 %v1299
    %v1382 = vpack.c.b16 %v1376, %v1374
    %v1383 = vpack.c.b16 %v1377, %v1375
    %v1384 = vpack.c.b16 %v1380, %v1378
    %v1385 = vpack.c.b16 %v1381, %v1379
    %v1391 = vsel %vm208, %v1307, 0
    %v1394 = vsel %vm208, %v1311, 0
    %v1397 = vsel %vm208, %v1315, 0
    %v1400 = vsel %vm208, %v1319, 0
    %v1403 = vsel %vm208, %v1323, 0
    %v1406 = vsel %vm208, %v1327, 0
    %v1409 = vsel %vm208, %v1331, 0
    %v1412 = vsel %vm208, %v1335, 0
    %v1415 = vsel %vm208, %v1339, 0
    %v1418 = vsel %vm208, %v1343, 0
    %v1421 = vsel %vm208, %v1347, 0
    %v1424 = vsel %vm208, %v1351, 0
    %v1427 = vsel %vm208, %v1355, 0
    %v1430 = vsel %vm208, %v1359, 0
    %v1433 = vsel %vm208, %v1363, 0
    %v1436 = vsel %vm208, %v1369, 0
    %1438 = vmatpush.bf16.msra.mxu0 0
    %1439 = vmatpush.bf16.msra.mxu0 0
    %1440 = vmatpush.bf16.msra.mxu0 0
    %1441 = vmatpush.bf16.msra.mxu0 0
    %1442 = vmatpush.bf16.msra.mxu0 0
    %1443 = vmatpush.bf16.msra.mxu0 0
    %1444 = vmatpush.bf16.msra.mxu0 %v1384
    %1445 = vmatpush.bf16.msra.mxu0 %v1382
    %1446 = vmatmul.bf16.gmra.mxu0 %v1391
    %v1447 = vpop.f32.mrf.mxu0
    %v1448 = vadd.f32 0.0, %v1447
    %v1449 = vpop.f32.mrf.mxu0
    %v1450 = vadd.f32 0.0, %v1449
    %1451 = vmatmul.bf16.gmra.mxu0 %v1394
    %v1452 = vpop.f32.mrf.mxu0
    %v1453 = vadd.f32 0.0, %v1452
    %v1454 = vpop.f32.mrf.mxu0
    %v1455 = vadd.f32 0.0, %v1454
    %1456 = vmatmul.bf16.gmra.mxu0 %v1397
    %v1457 = vpop.f32.mrf.mxu0
    %v1458 = vadd.f32 0.0, %v1457
    %v1459 = vpop.f32.mrf.mxu0
    %v1460 = vadd.f32 0.0, %v1459
    %1461 = vmatmul.bf16.gmra.mxu0 %v1400
    %v1462 = vpop.f32.mrf.mxu0
    %v1463 = vadd.f32 0.0, %v1462
    %v1464 = vpop.f32.mrf.mxu0
    %v1465 = vadd.f32 0.0, %v1464
    %1466 = vmatmul.bf16.gmra.mxu0 %v1403
    %v1467 = vpop.f32.mrf.mxu0
    %v1468 = vadd.f32 0.0, %v1467
    %v1469 = vpop.f32.mrf.mxu0
    %v1470 = vadd.f32 0.0, %v1469
    %1471 = vmatmul.bf16.gmra.mxu0 %v1406
    %v1472 = vpop.f32.mrf.mxu0
    %v1473 = vadd.f32 0.0, %v1472
    %v1474 = vpop.f32.mrf.mxu0
    %v1475 = vadd.f32 0.0, %v1474
    %1476 = vmatmul.bf16.gmra.mxu0 %v1409
    %v1477 = vpop.f32.mrf.mxu0
    %v1478 = vadd.f32 0.0, %v1477
    %v1479 = vpop.f32.mrf.mxu0
    %v1480 = vadd.f32 0.0, %v1479
    %1481 = vmatmul.bf16.gmra.mxu0 %v1412
    %v1482 = vpop.f32.mrf.mxu0
    %v1483 = vadd.f32 0.0, %v1482
    %v1484 = vpop.f32.mrf.mxu0
    %v1485 = vadd.f32 0.0, %v1484
    %1486 = vmatmul.bf16.gmra.mxu0 %v1415
    %v1487 = vpop.f32.mrf.mxu0
    %v1488 = vadd.f32 0.0, %v1487
    %v1489 = vpop.f32.mrf.mxu0
    %v1490 = vadd.f32 0.0, %v1489
    %1491 = vmatmul.bf16.gmra.mxu0 %v1418
    %v1492 = vpop.f32.mrf.mxu0
    %v1493 = vadd.f32 0.0, %v1492
    %v1494 = vpop.f32.mrf.mxu0
    %v1495 = vadd.f32 0.0, %v1494
    %1496 = vmatmul.bf16.gmra.mxu0 %v1421
    %v1497 = vpop.f32.mrf.mxu0
    %v1498 = vadd.f32 0.0, %v1497
    %v1499 = vpop.f32.mrf.mxu0
    %v1500 = vadd.f32 0.0, %v1499
    %1501 = vmatmul.bf16.gmra.mxu0 %v1424
    %v1502 = vpop.f32.mrf.mxu0
    %v1503 = vadd.f32 0.0, %v1502
    %v1504 = vpop.f32.mrf.mxu0
    %v1505 = vadd.f32 0.0, %v1504
    %1506 = vmatmul.bf16.gmra.mxu0 %v1427
    %v1507 = vpop.f32.mrf.mxu0
    %v1508 = vadd.f32 0.0, %v1507
    %v1509 = vpop.f32.mrf.mxu0
    %v1510 = vadd.f32 0.0, %v1509
    %1511 = vmatmul.bf16.gmra.mxu0 %v1430
    %v1512 = vpop.f32.mrf.mxu0
    %v1513 = vadd.f32 0.0, %v1512
    %v1514 = vpop.f32.mrf.mxu0
    %v1515 = vadd.f32 0.0, %v1514
    %1516 = vmatmul.bf16.gmra.mxu0 %v1433
    %v1517 = vpop.f32.mrf.mxu0
    %v1518 = vadd.f32 0.0, %v1517
    %v1519 = vpop.f32.mrf.mxu0
    %v1520 = vadd.f32 0.0, %v1519
    %1521 = vmatmul.bf16.gmra.mxu0 %v1436
    %v1522 = vpop.f32.mrf.mxu0
    %v1523 = vadd.f32 0.0, %v1522
    %v1524 = vpop.f32.mrf.mxu0
    %v1525 = vadd.f32 0.0, %v1524
    %1526 = vdwg.mxu0
    %1527 = vmatpush.bf16.msra.mxu0 0
    %1528 = vmatpush.bf16.msra.mxu0 0
    %1529 = vmatpush.bf16.msra.mxu0 0
    %1530 = vmatpush.bf16.msra.mxu0 0
    %1531 = vmatpush.bf16.msra.mxu0 0
    %1532 = vmatpush.bf16.msra.mxu0 0
    %1533 = vmatpush.bf16.msra.mxu0 %v1385
    %1534 = vmatpush.bf16.msra.mxu0 %v1383
    %1535 = vmatmul.bf16.gmra.mxu0 %v1391
    %v1536 = vpop.f32.mrf.mxu0
    %v1537 = vadd.f32 0.0, %v1536
    %v1538 = vpop.f32.mrf.mxu0
    %v1539 = vadd.f32 0.0, %v1538
    %1540 = vmatmul.bf16.gmra.mxu0 %v1394
    %v1541 = vpop.f32.mrf.mxu0
    %v1542 = vadd.f32 0.0, %v1541
    %v1543 = vpop.f32.mrf.mxu0
    %v1544 = vadd.f32 0.0, %v1543
    %1545 = vmatmul.bf16.gmra.mxu0 %v1397
    %v1546 = vpop.f32.mrf.mxu0
    %v1547 = vadd.f32 0.0, %v1546
    %v1548 = vpop.f32.mrf.mxu0
    %v1549 = vadd.f32 0.0, %v1548
    %1550 = vmatmul.bf16.gmra.mxu0 %v1400
    %v1551 = vpop.f32.mrf.mxu0
    %v1552 = vadd.f32 0.0, %v1551
    %v1553 = vpop.f32.mrf.mxu0
    %v1554 = vadd.f32 0.0, %v1553
    %1555 = vmatmul.bf16.gmra.mxu0 %v1403
    %v1556 = vpop.f32.mrf.mxu0
    %v1557 = vadd.f32 0.0, %v1556
    %v1558 = vpop.f32.mrf.mxu0
    %v1559 = vadd.f32 0.0, %v1558
    %1560 = vmatmul.bf16.gmra.mxu0 %v1406
    %v1561 = vpop.f32.mrf.mxu0
    %v1562 = vadd.f32 0.0, %v1561
    %v1563 = vpop.f32.mrf.mxu0
    %v1564 = vadd.f32 0.0, %v1563
    %1565 = vmatmul.bf16.gmra.mxu0 %v1409
    %v1566 = vpop.f32.mrf.mxu0
    %v1567 = vadd.f32 0.0, %v1566
    %v1568 = vpop.f32.mrf.mxu0
    %v1569 = vadd.f32 0.0, %v1568
    %1570 = vmatmul.bf16.gmra.mxu0 %v1412
    %v1571 = vpop.f32.mrf.mxu0
    %v1572 = vadd.f32 0.0, %v1571
    %v1573 = vpop.f32.mrf.mxu0
    %v1574 = vadd.f32 0.0, %v1573
    %1575 = vmatmul.bf16.gmra.mxu0 %v1415
    %v1576 = vpop.f32.mrf.mxu0
    %v1577 = vadd.f32 0.0, %v1576
    %v1578 = vpop.f32.mrf.mxu0
    %v1579 = vadd.f32 0.0, %v1578
    %1580 = vmatmul.bf16.gmra.mxu0 %v1418
    %v1581 = vpop.f32.mrf.mxu0
    %v1582 = vadd.f32 0.0, %v1581
    %v1583 = vpop.f32.mrf.mxu0
    %v1584 = vadd.f32 0.0, %v1583
    %1585 = vmatmul.bf16.gmra.mxu0 %v1421
    %v1586 = vpop.f32.mrf.mxu0
    %v1587 = vadd.f32 0.0, %v1586
    %v1588 = vpop.f32.mrf.mxu0
    %v1589 = vadd.f32 0.0, %v1588
    %1590 = vmatmul.bf16.gmra.mxu0 %v1424
    %v1591 = vpop.f32.mrf.mxu0
    %v1592 = vadd.f32 0.0, %v1591
    %v1593 = vpop.f32.mrf.mxu0
    %v1594 = vadd.f32 0.0, %v1593
    %1595 = vmatmul.bf16.gmra.mxu0 %v1427
    %v1596 = vpop.f32.mrf.mxu0
    %v1597 = vadd.f32 0.0, %v1596
    %v1598 = vpop.f32.mrf.mxu0
    %v1599 = vadd.f32 0.0, %v1598
    %1600 = vmatmul.bf16.gmra.mxu0 %v1430
    %v1601 = vpop.f32.mrf.mxu0
    %v1602 = vadd.f32 0.0, %v1601
    %v1603 = vpop.f32.mrf.mxu0
    %v1604 = vadd.f32 0.0, %v1603
    %1605 = vmatmul.bf16.gmra.mxu0 %v1433
    %v1606 = vpop.f32.mrf.mxu0
    %v1607 = vadd.f32 0.0, %v1606
    %v1608 = vpop.f32.mrf.mxu0
    %v1609 = vadd.f32 0.0, %v1608
    %1610 = vmatmul.bf16.gmra.mxu0 %v1436
    %v1611 = vpop.f32.mrf.mxu0
    %v1612 = vadd.f32 0.0, %v1611
    %v1613 = vpop.f32.mrf.mxu0
    %v1614 = vadd.f32 0.0, %v1613
    %1615 = vdwg.mxu0
    %v1616 = vadd.f32 %v1232, %v1448
    %v1617 = vadd.f32 %v1233, %v1537
    %v1618 = vadd.f32 %v1234, %v1450
    %v1619 = vadd.f32 %v1235, %v1539
    %v1620 = vadd.f32 %v1236, %v1453
    %v1621 = vadd.f32 %v1237, %v1542
    %v1622 = vadd.f32 %v1238, %v1455
    %v1623 = vadd.f32 %v1239, %v1544
    %v1624 = vadd.f32 %v1240, %v1458
    %v1625 = vadd.f32 %v1241, %v1547
    %v1626 = vadd.f32 %v1242, %v1460
    %v1627 = vadd.f32 %v1243, %v1549
    %v1628 = vadd.f32 %v1244, %v1463
    %v1629 = vadd.f32 %v1245, %v1552
    %v1630 = vadd.f32 %v1246, %v1465
    %v1631 = vadd.f32 %v1247, %v1554
    %v1632 = vadd.f32 %v1248, %v1468
    %v1633 = vadd.f32 %v1249, %v1557
    %v1634 = vadd.f32 %v1250, %v1470
    %v1635 = vadd.f32 %v1251, %v1559
    %v1636 = vadd.f32 %v1252, %v1473
    %v1637 = vadd.f32 %v1253, %v1562
    %v1638 = vadd.f32 %v1254, %v1475
    %v1639 = vadd.f32 %v1255, %v1564
    %v1640 = vadd.f32 %v1256, %v1478
    %v1641 = vadd.f32 %v1257, %v1567
    %v1642 = vadd.f32 %v1258, %v1480
    %v1643 = vadd.f32 %v1259, %v1569
    %v1644 = vadd.f32 %v1260, %v1483
    %v1645 = vadd.f32 %v1261, %v1572
    %v1646 = vadd.f32 %v1262, %v1485
    %v1647 = vadd.f32 %v1263, %v1574
    %v1648 = vadd.f32 %v1264, %v1488
    %v1649 = vadd.f32 %v1265, %v1577
    %v1650 = vadd.f32 %v1266, %v1490
    %v1651 = vadd.f32 %v1267, %v1579
    %v1652 = vadd.f32 %v1268, %v1493
    %v1653 = vadd.f32 %v1269, %v1582
    %v1654 = vadd.f32 %v1270, %v1495
    %v1655 = vadd.f32 %v1271, %v1584
    %v1656 = vadd.f32 %v1272, %v1498
    %v1657 = vadd.f32 %v1273, %v1587
    %v1658 = vadd.f32 %v1274, %v1500
    %v1659 = vadd.f32 %v1275, %v1589
    %v1660 = vadd.f32 %v1276, %v1503
    %v1661 = vadd.f32 %v1277, %v1592
    %v1662 = vadd.f32 %v1278, %v1505
    %v1663 = vadd.f32 %v1279, %v1594
    %v1664 = vadd.f32 %v1280, %v1508
    %v1665 = vadd.f32 %v1281, %v1597
    %v1666 = vadd.f32 %v1282, %v1510
    %v1667 = vadd.f32 %v1283, %v1599
    %v1668 = vadd.f32 %v1284, %v1513
    %v1669 = vadd.f32 %v1285, %v1602
    %v1670 = vadd.f32 %v1286, %v1515
    %v1671 = vadd.f32 %v1287, %v1604
    %v1672 = vadd.f32 %v1288, %v1518
    %v1673 = vadd.f32 %v1289, %v1607
    %v1674 = vadd.f32 %v1290, %v1520
    %v1675 = vadd.f32 %v1291, %v1609
    %v1676 = vadd.f32 %v1292, %v1523
    %v1677 = vadd.f32 %v1293, %v1612
    %v1678 = vadd.f32 %v1294, %v1525
    %v1679 = vadd.f32 %v1295, %v1614
    %v1680 = vld [vmem:[%s1 + $0x80] sm:$0xff]
    %v1681 = vld [vmem:[%s1 + $0x88] sm:$0xff]
    %v1682 = vld [vmem:[%s1 + $0x90] sm:$0xff]
    %v1683 = vld [vmem:[%s1 + $0x98] sm:$0xff]
    %vm1684 = vcmask 1045504
    %v1685 = vrot.slane %v168, 2
    %v1686 = vrot.slane %v169, 2
    %v1687 = vsel %vm1684, %v1685, %v1686
    %v1688 = vrot.slane %v170, 2
    %v1689 = vsel %vm1684, %v1686, %v1688
    %v1690 = vrot.slane %v171, 2
    %v1691 = vsel %vm1684, %v1688, %v1690
    %v1692 = vrot.slane %v172, 2
    %v1693 = vsel %vm1684, %v1690, %v1692
    %v1694 = vrot.slane %v173, 2
    %v1695 = vsel %vm1684, %v1692, %v1694
    %v1696 = vrot.slane %v174, 2
    %v1697 = vsel %vm1684, %v1694, %v1696
    %v1698 = vrot.slane %v175, 2
    %v1699 = vsel %vm1684, %v1696, %v1698
    %v1700 = vrot.slane %v176, 2
    %v1701 = vsel %vm1684, %v1698, %v1700
    %v1702 = vrot.slane %v177, 2
    %v1703 = vsel %vm1684, %v1700, %v1702
    %v1704 = vrot.slane %v178, 2
    %v1705 = vsel %vm1684, %v1702, %v1704
    %v1706 = vrot.slane %v179, 2
    %v1707 = vsel %vm1684, %v1704, %v1706
    %v1708 = vrot.slane %v180, 2
    %v1709 = vsel %vm1684, %v1706, %v1708
    %v1710 = vrot.slane %v181, 2
    %v1711 = vsel %vm1684, %v1708, %v1710
    %v1712 = vrot.slane %v182, 2
    %v1713 = vsel %vm1684, %v1710, %v1712
    %v1714 = vrot.slane %v183, 2
    %v1715 = vsel %vm1684, %v1712, %v1714
    %v1716 = vrot.slane %v499, 2
    %v1717 = vsel %vm1684, %v1714, %v1716
    %v1722 = vunpack.c.l.b16 %v1680
    %v1723 = vunpack.c.h.b16 %v1680
    %v1724 = vunpack.c.l.b16 %v1681
    %v1725 = vunpack.c.h.b16 %v1681
    %v1726 = vunpack.c.l.b16 %v1682
    %v1727 = vunpack.c.h.b16 %v1682
    %v1728 = vunpack.c.l.b16 %v1683
    %v1729 = vunpack.c.h.b16 %v1683
    %v1730 = vpack.c.b16 %v1724, %v1722
    %v1731 = vpack.c.b16 %v1725, %v1723
    %v1732 = vpack.c.b16 %v1728, %v1726
    %v1733 = vpack.c.b16 %v1729, %v1727
    %v1739 = vsel %vm208, %v1687, 0
    %v1742 = vsel %vm208, %v1689, 0
    %v1745 = vsel %vm208, %v1691, 0
    %v1748 = vsel %vm208, %v1693, 0
    %v1751 = vsel %vm208, %v1695, 0
    %v1754 = vsel %vm208, %v1697, 0
    %v1757 = vsel %vm208, %v1699, 0
    %v1760 = vsel %vm208, %v1701, 0
    %v1763 = vsel %vm208, %v1703, 0
    %v1766 = vsel %vm208, %v1705, 0
    %v1769 = vsel %vm208, %v1707, 0
    %v1772 = vsel %vm208, %v1709, 0
    %v1775 = vsel %vm208, %v1711, 0
    %v1778 = vsel %vm208, %v1713, 0
    %v1781 = vsel %vm208, %v1715, 0
    %v1784 = vsel %vm208, %v1717, 0
    %1786 = vmatpush.bf16.msra.mxu0 0
    %1787 = vmatpush.bf16.msra.mxu0 0
    %1788 = vmatpush.bf16.msra.mxu0 0
    %1789 = vmatpush.bf16.msra.mxu0 0
    %1790 = vmatpush.bf16.msra.mxu0 0
    %1791 = vmatpush.bf16.msra.mxu0 0
    %1792 = vmatpush.bf16.msra.mxu0 %v1732
    %1793 = vmatpush.bf16.msra.mxu0 %v1730
    %1794 = vmatmul.bf16.gmra.mxu0 %v1739
    %v1795 = vpop.f32.mrf.mxu0
    %v1796 = vadd.f32 0.0, %v1795
    %v1797 = vpop.f32.mrf.mxu0
    %v1798 = vadd.f32 0.0, %v1797
    %1799 = vmatmul.bf16.gmra.mxu0 %v1742
    %v1800 = vpop.f32.mrf.mxu0
    %v1801 = vadd.f32 0.0, %v1800
    %v1802 = vpop.f32.mrf.mxu0
    %v1803 = vadd.f32 0.0, %v1802
    %1804 = vmatmul.bf16.gmra.mxu0 %v1745
    %v1805 = vpop.f32.mrf.mxu0
    %v1806 = vadd.f32 0.0, %v1805
    %v1807 = vpop.f32.mrf.mxu0
    %v1808 = vadd.f32 0.0, %v1807
    %1809 = vmatmul.bf16.gmra.mxu0 %v1748
    %v1810 = vpop.f32.mrf.mxu0
    %v1811 = vadd.f32 0.0, %v1810
    %v1812 = vpop.f32.mrf.mxu0
    %v1813 = vadd.f32 0.0, %v1812
    %1814 = vmatmul.bf16.gmra.mxu0 %v1751
    %v1815 = vpop.f32.mrf.mxu0
    %v1816 = vadd.f32 0.0, %v1815
    %v1817 = vpop.f32.mrf.mxu0
    %v1818 = vadd.f32 0.0, %v1817
    %1819 = vmatmul.bf16.gmra.mxu0 %v1754
    %v1820 = vpop.f32.mrf.mxu0
    %v1821 = vadd.f32 0.0, %v1820
    %v1822 = vpop.f32.mrf.mxu0
    %v1823 = vadd.f32 0.0, %v1822
    %1824 = vmatmul.bf16.gmra.mxu0 %v1757
    %v1825 = vpop.f32.mrf.mxu0
    %v1826 = vadd.f32 0.0, %v1825
    %v1827 = vpop.f32.mrf.mxu0
    %v1828 = vadd.f32 0.0, %v1827
    %1829 = vmatmul.bf16.gmra.mxu0 %v1760
    %v1830 = vpop.f32.mrf.mxu0
    %v1831 = vadd.f32 0.0, %v1830
    %v1832 = vpop.f32.mrf.mxu0
    %v1833 = vadd.f32 0.0, %v1832
    %1834 = vmatmul.bf16.gmra.mxu0 %v1763
    %v1835 = vpop.f32.mrf.mxu0
    %v1836 = vadd.f32 0.0, %v1835
    %v1837 = vpop.f32.mrf.mxu0
    %v1838 = vadd.f32 0.0, %v1837
    %1839 = vmatmul.bf16.gmra.mxu0 %v1766
    %v1840 = vpop.f32.mrf.mxu0
    %v1841 = vadd.f32 0.0, %v1840
    %v1842 = vpop.f32.mrf.mxu0
    %v1843 = vadd.f32 0.0, %v1842
    %1844 = vmatmul.bf16.gmra.mxu0 %v1769
    %v1845 = vpop.f32.mrf.mxu0
    %v1846 = vadd.f32 0.0, %v1845
    %v1847 = vpop.f32.mrf.mxu0
    %v1848 = vadd.f32 0.0, %v1847
    %1849 = vmatmul.bf16.gmra.mxu0 %v1772
    %v1850 = vpop.f32.mrf.mxu0
    %v1851 = vadd.f32 0.0, %v1850
    %v1852 = vpop.f32.mrf.mxu0
    %v1853 = vadd.f32 0.0, %v1852
    %1854 = vmatmul.bf16.gmra.mxu0 %v1775
    %v1855 = vpop.f32.mrf.mxu0
    %v1856 = vadd.f32 0.0, %v1855
    %v1857 = vpop.f32.mrf.mxu0
    %v1858 = vadd.f32 0.0, %v1857
    %1859 = vmatmul.bf16.gmra.mxu0 %v1778
    %v1860 = vpop.f32.mrf.mxu0
    %v1861 = vadd.f32 0.0, %v1860
    %v1862 = vpop.f32.mrf.mxu0
    %v1863 = vadd.f32 0.0, %v1862
    %1864 = vmatmul.bf16.gmra.mxu0 %v1781
    %v1865 = vpop.f32.mrf.mxu0
    %v1866 = vadd.f32 0.0, %v1865
    %v1867 = vpop.f32.mrf.mxu0
    %v1868 = vadd.f32 0.0, %v1867
    %1869 = vmatmul.bf16.gmra.mxu0 %v1784
    %v1870 = vpop.f32.mrf.mxu0
    %v1871 = vadd.f32 0.0, %v1870
    %v1872 = vpop.f32.mrf.mxu0
    %v1873 = vadd.f32 0.0, %v1872
    %1874 = vdwg.mxu0
    %1875 = vmatpush.bf16.msra.mxu0 0
    %1876 = vmatpush.bf16.msra.mxu0 0
    %1877 = vmatpush.bf16.msra.mxu0 0
    %1878 = vmatpush.bf16.msra.mxu0 0
    %1879 = vmatpush.bf16.msra.mxu0 0
    %1880 = vmatpush.bf16.msra.mxu0 0
    %1881 = vmatpush.bf16.msra.mxu0 %v1733
    %1882 = vmatpush.bf16.msra.mxu0 %v1731
    %1883 = vmatmul.bf16.gmra.mxu0 %v1739
    %v1884 = vpop.f32.mrf.mxu0
    %v1885 = vadd.f32 0.0, %v1884
    %v1886 = vpop.f32.mrf.mxu0
    %v1887 = vadd.f32 0.0, %v1886
    %1888 = vmatmul.bf16.gmra.mxu0 %v1742
    %v1889 = vpop.f32.mrf.mxu0
    %v1890 = vadd.f32 0.0, %v1889
    %v1891 = vpop.f32.mrf.mxu0
    %v1892 = vadd.f32 0.0, %v1891
    %1893 = vmatmul.bf16.gmra.mxu0 %v1745
    %v1894 = vpop.f32.mrf.mxu0
    %v1895 = vadd.f32 0.0, %v1894
    %v1896 = vpop.f32.mrf.mxu0
    %v1897 = vadd.f32 0.0, %v1896
    %1898 = vmatmul.bf16.gmra.mxu0 %v1748
    %v1899 = vpop.f32.mrf.mxu0
    %v1900 = vadd.f32 0.0, %v1899
    %v1901 = vpop.f32.mrf.mxu0
    %v1902 = vadd.f32 0.0, %v1901
    %1903 = vmatmul.bf16.gmra.mxu0 %v1751
    %v1904 = vpop.f32.mrf.mxu0
    %v1905 = vadd.f32 0.0, %v1904
    %v1906 = vpop.f32.mrf.mxu0
    %v1907 = vadd.f32 0.0, %v1906
    %1908 = vmatmul.bf16.gmra.mxu0 %v1754
    %v1909 = vpop.f32.mrf.mxu0
    %v1910 = vadd.f32 0.0, %v1909
    %v1911 = vpop.f32.mrf.mxu0
    %v1912 = vadd.f32 0.0, %v1911
    %1913 = vmatmul.bf16.gmra.mxu0 %v1757
    %v1914 = vpop.f32.mrf.mxu0
    %v1915 = vadd.f32 0.0, %v1914
    %v1916 = vpop.f32.mrf.mxu0
    %v1917 = vadd.f32 0.0, %v1916
    %1918 = vmatmul.bf16.gmra.mxu0 %v1760
    %v1919 = vpop.f32.mrf.mxu0
    %v1920 = vadd.f32 0.0, %v1919
    %v1921 = vpop.f32.mrf.mxu0
    %v1922 = vadd.f32 0.0, %v1921
    %1923 = vmatmul.bf16.gmra.mxu0 %v1763
    %v1924 = vpop.f32.mrf.mxu0
    %v1925 = vadd.f32 0.0, %v1924
    %v1926 = vpop.f32.mrf.mxu0
    %v1927 = vadd.f32 0.0, %v1926
    %1928 = vmatmul.bf16.gmra.mxu0 %v1766
    %v1929 = vpop.f32.mrf.mxu0
    %v1930 = vadd.f32 0.0, %v1929
    %v1931 = vpop.f32.mrf.mxu0
    %v1932 = vadd.f32 0.0, %v1931
    %1933 = vmatmul.bf16.gmra.mxu0 %v1769
    %v1934 = vpop.f32.mrf.mxu0
    %v1935 = vadd.f32 0.0, %v1934
    %v1936 = vpop.f32.mrf.mxu0
    %v1937 = vadd.f32 0.0, %v1936
    %1938 = vmatmul.bf16.gmra.mxu0 %v1772
    %v1939 = vpop.f32.mrf.mxu0
    %v1940 = vadd.f32 0.0, %v1939
    %v1941 = vpop.f32.mrf.mxu0
    %v1942 = vadd.f32 0.0, %v1941
    %1943 = vmatmul.bf16.gmra.mxu0 %v1775
    %v1944 = vpop.f32.mrf.mxu0
    %v1945 = vadd.f32 0.0, %v1944
    %v1946 = vpop.f32.mrf.mxu0
    %v1947 = vadd.f32 0.0, %v1946
    %1948 = vmatmul.bf16.gmra.mxu0 %v1778
    %v1949 = vpop.f32.mrf.mxu0
    %v1950 = vadd.f32 0.0, %v1949
    %v1951 = vpop.f32.mrf.mxu0
    %v1952 = vadd.f32 0.0, %v1951
    %1953 = vmatmul.bf16.gmra.mxu0 %v1781
    %v1954 = vpop.f32.mrf.mxu0
    %v1955 = vadd.f32 0.0, %v1954
    %v1956 = vpop.f32.mrf.mxu0
    %v1957 = vadd.f32 0.0, %v1956
    %1958 = vmatmul.bf16.gmra.mxu0 %v1784
    %v1959 = vpop.f32.mrf.mxu0
    %v1960 = vadd.f32 0.0, %v1959
    %v1961 = vpop.f32.mrf.mxu0
    %v1962 = vadd.f32 0.0, %v1961
    %1963 = vdwg.mxu0
    %v1964 = vadd.f32 %v1616, %v1796
    %v1965 = vadd.f32 %v1617, %v1885
    %v1966 = vadd.f32 %v1618, %v1798
    %v1967 = vadd.f32 %v1619, %v1887
    %v1968 = vadd.f32 %v1620, %v1801
    %v1969 = vadd.f32 %v1621, %v1890
    %v1970 = vadd.f32 %v1622, %v1803
    %v1971 = vadd.f32 %v1623, %v1892
    %v1972 = vadd.f32 %v1624, %v1806
    %v1973 = vadd.f32 %v1625, %v1895
    %v1974 = vadd.f32 %v1626, %v1808
    %v1975 = vadd.f32 %v1627, %v1897
    %v1976 = vadd.f32 %v1628, %v1811
    %v1977 = vadd.f32 %v1629, %v1900
    %v1978 = vadd.f32 %v1630, %v1813
    %v1979 = vadd.f32 %v1631, %v1902
    %v1980 = vadd.f32 %v1632, %v1816
    %v1981 = vadd.f32 %v1633, %v1905
    %v1982 = vadd.f32 %v1634, %v1818
    %v1983 = vadd.f32 %v1635, %v1907
    %v1984 = vadd.f32 %v1636, %v1821
    %v1985 = vadd.f32 %v1637, %v1910
    %v1986 = vadd.f32 %v1638, %v1823
    %v1987 = vadd.f32 %v1639, %v1912
    %v1988 = vadd.f32 %v1640, %v1826
    %v1989 = vadd.f32 %v1641, %v1915
    %v1990 = vadd.f32 %v1642, %v1828
    %v1991 = vadd.f32 %v1643, %v1917
    %v1992 = vadd.f32 %v1644, %v1831
    %v1993 = vadd.f32 %v1645, %v1920
    %v1994 = vadd.f32 %v1646, %v1833
    %v1995 = vadd.f32 %v1647, %v1922
    %v1996 = vadd.f32 %v1648, %v1836
    %v1997 = vadd.f32 %v1649, %v1925
    %v1998 = vadd.f32 %v1650, %v1838
    %v1999 = vadd.f32 %v1651, %v1927
    %v2000 = vadd.f32 %v1652, %v1841
    %v2001 = vadd.f32 %v1653, %v1930
    %v2002 = vadd.f32 %v1654, %v1843
    %v2003 = vadd.f32 %v1655, %v1932
    %v2004 = vadd.f32 %v1656, %v1846
    %v2005 = vadd.f32 %v1657, %v1935
    %v2006 = vadd.f32 %v1658, %v1848
    %v2007 = vadd.f32 %v1659, %v1937
    %v2008 = vadd.f32 %v1660, %v1851
    %v2009 = vadd.f32 %v1661, %v1940
    %v2010 = vadd.f32 %v1662, %v1853
    %v2011 = vadd.f32 %v1663, %v1942
    %v2012 = vadd.f32 %v1664, %v1856
    %v2013 = vadd.f32 %v1665, %v1945
    %v2014 = vadd.f32 %v1666, %v1858
    %v2015 = vadd.f32 %v1667, %v1947
    %v2016 = vadd.f32 %v1668, %v1861
    %v2017 = vadd.f32 %v1669, %v1950
    %v2018 = vadd.f32 %v1670, %v1863
    %v2019 = vadd.f32 %v1671, %v1952
    %v2020 = vadd.f32 %v1672, %v1866
    %v2021 = vadd.f32 %v1673, %v1955
    %v2022 = vadd.f32 %v1674, %v1868
    %v2023 = vadd.f32 %v1675, %v1957
    %v2024 = vadd.f32 %v1676, %v1871
    %v2025 = vadd.f32 %v1677, %v1960
    %v2026 = vadd.f32 %v1678, %v1873
    %v2027 = vadd.f32 %v1679, %v1962
    %v2028 = vmax.f32 %v1964, 0.0
    %v2029 = vmax.f32 %v1965, 0.0
    %v2030 = vmax.f32 %v1966, 0.0
    %v2031 = vmax.f32 %v1967, 0.0
    %v2032 = vmax.f32 %v1968, 0.0
    %v2033 = vmax.f32 %v1969, 0.0
    %v2034 = vmax.f32 %v1970, 0.0
    %v2035 = vmax.f32 %v1971, 0.0
    %v2036 = vmax.f32 %v1972, 0.0
    %v2037 = vmax.f32 %v1973, 0.0
    %v2038 = vmax.f32 %v1974, 0.0
    %v2039 = vmax.f32 %v1975, 0.0
    %v2040 = vmax.f32 %v1976, 0.0
    %v2041 = vmax.f32 %v1977, 0.0
    %v2042 = vmax.f32 %v1978, 0.0
    %v2043 = vmax.f32 %v1979, 0.0
    %v2044 = vmax.f32 %v1980, 0.0
    %v2045 = vmax.f32 %v1981, 0.0
    %v2046 = vmax.f32 %v1982, 0.0
    %v2047 = vmax.f32 %v1983, 0.0
    %v2048 = vmax.f32 %v1984, 0.0
    %v2049 = vmax.f32 %v1985, 0.0
    %v2050 = vmax.f32 %v1986, 0.0
    %v2051 = vmax.f32 %v1987, 0.0
    %v2052 = vmax.f32 %v1988, 0.0
    %v2053 = vmax.f32 %v1989, 0.0
    %v2054 = vmax.f32 %v1990, 0.0
    %v2055 = vmax.f32 %v1991, 0.0
    %v2056 = vmax.f32 %v1992, 0.0
    %v2057 = vmax.f32 %v1993, 0.0
    %v2058 = vmax.f32 %v1994, 0.0
    %v2059 = vmax.f32 %v1995, 0.0
    %v2060 = vmax.f32 %v1996, 0.0
    %v2061 = vmax.f32 %v1997, 0.0
    %v2062 = vmax.f32 %v1998, 0.0
    %v2063 = vmax.f32 %v1999, 0.0
    %v2064 = vmax.f32 %v2000, 0.0
    %v2065 = vmax.f32 %v2001, 0.0
    %v2066 = vmax.f32 %v2002, 0.0
    %v2067 = vmax.f32 %v2003, 0.0
    %v2068 = vmax.f32 %v2004, 0.0
    %v2069 = vmax.f32 %v2005, 0.0
    %v2070 = vmax.f32 %v2006, 0.0
    %v2071 = vmax.f32 %v2007, 0.0
    %v2072 = vmax.f32 %v2008, 0.0
    %v2073 = vmax.f32 %v2009, 0.0
    %v2074 = vmax.f32 %v2010, 0.0
    %v2075 = vmax.f32 %v2011, 0.0
    %v2076 = vmax.f32 %v2012, 0.0
    %v2077 = vmax.f32 %v2013, 0.0
    %v2078 = vmax.f32 %v2014, 0.0
    %v2079 = vmax.f32 %v2015, 0.0
    %v2080 = vmax.f32 %v2016, 0.0
    %v2081 = vmax.f32 %v2017, 0.0
    %v2082 = vmax.f32 %v2018, 0.0
    %v2083 = vmax.f32 %v2019, 0.0
    %v2084 = vmax.f32 %v2020, 0.0
    %v2085 = vmax.f32 %v2021, 0.0
    %v2086 = vmax.f32 %v2022, 0.0
    %v2087 = vmax.f32 %v2023, 0.0
    %v2088 = vmax.f32 %v2024, 0.0
    %v2089 = vmax.f32 %v2025, 0.0
    %v2090 = vmax.f32 %v2026, 0.0
    %v2091 = vmax.f32 %v2027, 0.0
    %v2092 = vmax.f32 %v2028, %v2029
    %v2093 = vmax.f32 %v2030, %v2031
    %v2094 = vmax.f32 %v2032, %v2033
    %v2095 = vmax.f32 %v2034, %v2035
    %v2096 = vmax.f32 %v2036, %v2037
    %v2097 = vmax.f32 %v2038, %v2039
    %v2098 = vmax.f32 %v2040, %v2041
    %v2099 = vmax.f32 %v2042, %v2043
    %v2100 = vmax.f32 %v2044, %v2045
    %v2101 = vmax.f32 %v2046, %v2047
    %v2102 = vmax.f32 %v2048, %v2049
    %v2103 = vmax.f32 %v2050, %v2051
    %v2104 = vmax.f32 %v2052, %v2053
    %v2105 = vmax.f32 %v2054, %v2055
    %v2106 = vmax.f32 %v2056, %v2057
    %v2107 = vmax.f32 %v2058, %v2059
    %v2108 = vmax.f32 %v2060, %v2061
    %v2109 = vmax.f32 %v2062, %v2063
    %v2110 = vmax.f32 %v2064, %v2065
    %v2111 = vmax.f32 %v2066, %v2067
    %v2112 = vmax.f32 %v2068, %v2069
    %v2113 = vmax.f32 %v2070, %v2071
    %v2114 = vmax.f32 %v2072, %v2073
    %v2115 = vmax.f32 %v2074, %v2075
    %v2116 = vmax.f32 %v2076, %v2077
    %v2117 = vmax.f32 %v2078, %v2079
    %v2118 = vmax.f32 %v2080, %v2081
    %v2119 = vmax.f32 %v2082, %v2083
    %v2120 = vmax.f32 %v2084, %v2085
    %v2121 = vmax.f32 %v2086, %v2087
    %v2122 = vmax.f32 %v2088, %v2089
    %v2123 = vmax.f32 %v2090, %v2091
    %v2124 = vpack.c.bf16 %v2093, %v2092
    %v2125 = vpack.c.bf16 %v2095, %v2094
    %v2126 = vpack.c.bf16 %v2097, %v2096
    %v2127 = vpack.c.bf16 %v2099, %v2098
    %v2128 = vpack.c.bf16 %v2101, %v2100
    %v2129 = vpack.c.bf16 %v2103, %v2102
    %v2130 = vpack.c.bf16 %v2105, %v2104
    %v2131 = vpack.c.bf16 %v2107, %v2106
    %v2132 = vpack.c.bf16 %v2109, %v2108
    %v2133 = vpack.c.bf16 %v2111, %v2110
    %v2134 = vpack.c.bf16 %v2113, %v2112
    %v2135 = vpack.c.bf16 %v2115, %v2114
    %v2136 = vpack.c.bf16 %v2117, %v2116
    %v2137 = vpack.c.bf16 %v2119, %v2118
    %v2138 = vpack.c.bf16 %v2121, %v2120
    %v2139 = vpack.c.bf16 %v2123, %v2122
    %v2140 = vld [vmem:[#allocation2] sm:$0xff]
    %v2141 = vld [vmem:[#allocation2 + $0x8] sm:$0xff]
    %v2142 = vld [vmem:[#allocation2 + $0x10] sm:$0xff]
    %v2143 = vld [vmem:[#allocation2 + $0x18] sm:$0xff]
    %v2144 = vld [vmem:[#allocation2 + $0x20] sm:$0xff]
    %v2145 = vld [vmem:[#allocation2 + $0x28] sm:$0xff]
    %v2146 = vld [vmem:[#allocation2 + $0x30] sm:$0xff]
    %v2147 = vld [vmem:[#allocation2 + $0x38] sm:$0xff]
    %v2148 = vld [vmem:[#allocation2 + $0x40] sm:$0xff]
    %v2149 = vld [vmem:[#allocation2 + $0x48] sm:$0xff]
    %v2150 = vld [vmem:[#allocation2 + $0x50] sm:$0xff]
    %v2151 = vld [vmem:[#allocation2 + $0x58] sm:$0xff]
    %v2152 = vld [vmem:[#allocation2 + $0x60] sm:$0xff]
    %v2153 = vld [vmem:[#allocation2 + $0x68] sm:$0xff]
    %v2154 = vld [vmem:[#allocation2 + $0x70] sm:$0xff]
    %v2155 = vld [vmem:[#allocation2 + $0x78] sm:$0xff]
    %v2156 = vld [vmem:[#allocation2 + $0x80] sm:$0xff]
    %v2157 = vld [vmem:[#allocation2 + $0x88] sm:$0xff]
    %v2158 = vld [vmem:[#allocation2 + $0x90] sm:$0xff]
    %v2159 = vld [vmem:[#allocation2 + $0x98] sm:$0xff]
    %v2160 = vld [vmem:[#allocation2 + $0xa0] sm:$0xff]
    %v2161 = vld [vmem:[#allocation2 + $0xa8] sm:$0xff]
    %v2162 = vld [vmem:[#allocation2 + $0xb0] sm:$0xff]
    %v2163 = vld [vmem:[#allocation2 + $0xb8] sm:$0xff]
    %v2164 = vld [vmem:[#allocation2 + $0xc0] sm:$0xff]
    %v2165 = vld [vmem:[#allocation2 + $0xc8] sm:$0xff]
    %v2166 = vld [vmem:[#allocation2 + $0xd0] sm:$0xff]
    %v2167 = vld [vmem:[#allocation2 + $0xd8] sm:$0xff]
    %v2196 = vunpack.c.l.b16 %v2140
    %v2197 = vunpack.c.h.b16 %v2140
    %v2198 = vunpack.c.l.b16 %v2141
    %v2199 = vunpack.c.h.b16 %v2141
    %v2200 = vunpack.c.l.b16 %v2142
    %v2201 = vunpack.c.h.b16 %v2142
    %v2202 = vunpack.c.l.b16 %v2143
    %v2203 = vunpack.c.h.b16 %v2143
    %v2204 = vunpack.c.l.b16 %v2144
    %v2205 = vunpack.c.h.b16 %v2144
    %v2206 = vunpack.c.l.b16 %v2145
    %v2207 = vunpack.c.h.b16 %v2145
    %v2208 = vunpack.c.l.b16 %v2146
    %v2209 = vunpack.c.h.b16 %v2146
    %v2210 = vunpack.c.l.b16 %v2147
    %v2211 = vunpack.c.h.b16 %v2147
    %v2212 = vunpack.c.l.b16 %v2148
    %v2213 = vunpack.c.h.b16 %v2148
    %v2214 = vunpack.c.l.b16 %v2149
    %v2215 = vunpack.c.h.b16 %v2149
    %v2216 = vunpack.c.l.b16 %v2150
    %v2217 = vunpack.c.h.b16 %v2150
    %v2218 = vunpack.c.l.b16 %v2151
    %v2219 = vunpack.c.h.b16 %v2151
    %v2220 = vunpack.c.l.b16 %v2152
    %v2221 = vunpack.c.h.b16 %v2152
    %v2222 = vunpack.c.l.b16 %v2153
    %v2223 = vunpack.c.h.b16 %v2153
    %v2224 = vunpack.c.l.b16 %v2154
    %v2225 = vunpack.c.h.b16 %v2154
    %v2226 = vunpack.c.l.b16 %v2155
    %v2227 = vunpack.c.h.b16 %v2155
    %v2228 = vunpack.c.l.b16 %v2156
    %v2229 = vunpack.c.h.b16 %v2156
    %v2230 = vunpack.c.l.b16 %v2157
    %v2231 = vunpack.c.h.b16 %v2157
    %v2232 = vunpack.c.l.b16 %v2158
    %v2233 = vunpack.c.h.b16 %v2158
    %v2234 = vunpack.c.l.b16 %v2159
    %v2235 = vunpack.c.h.b16 %v2159
    %v2236 = vunpack.c.l.b16 %v2160
    %v2237 = vunpack.c.h.b16 %v2160
    %v2238 = vunpack.c.l.b16 %v2161
    %v2239 = vunpack.c.h.b16 %v2161
    %v2240 = vunpack.c.l.b16 %v2162
    %v2241 = vunpack.c.h.b16 %v2162
    %v2242 = vunpack.c.l.b16 %v2163
    %v2243 = vunpack.c.h.b16 %v2163
    %v2244 = vunpack.c.l.b16 %v2164
    %v2245 = vunpack.c.h.b16 %v2164
    %v2246 = vunpack.c.l.b16 %v2165
    %v2247 = vunpack.c.h.b16 %v2165
    %v2248 = vunpack.c.l.b16 %v2166
    %v2249 = vunpack.c.h.b16 %v2166
    %v2250 = vunpack.c.l.b16 %v2167
    %v2251 = vunpack.c.h.b16 %v2167
    %v2252 = vpack.c.b16 %v2198, %v2196
    %v2253 = vpack.c.b16 %v2199, %v2197
    %v2254 = vpack.c.b16 %v2202, %v2200
    %v2255 = vpack.c.b16 %v2203, %v2201
    %v2256 = vpack.c.b16 %v2206, %v2204
    %v2257 = vpack.c.b16 %v2207, %v2205
    %v2258 = vpack.c.b16 %v2210, %v2208
    %v2259 = vpack.c.b16 %v2211, %v2209
    %v2260 = vpack.c.b16 %v2214, %v2212
    %v2261 = vpack.c.b16 %v2215, %v2213
    %v2262 = vpack.c.b16 %v2218, %v2216
    %v2263 = vpack.c.b16 %v2219, %v2217
    %v2264 = vpack.c.b16 %v2222, %v2220
    %v2265 = vpack.c.b16 %v2223, %v2221
    %v2266 = vpack.c.b16 %v2226, %v2224
    %v2267 = vpack.c.b16 %v2227, %v2225
    %v2268 = vpack.c.b16 %v2230, %v2228
    %v2269 = vpack.c.b16 %v2231, %v2229
    %v2270 = vpack.c.b16 %v2234, %v2232
    %v2271 = vpack.c.b16 %v2235, %v2233
    %v2272 = vpack.c.b16 %v2238, %v2236
    %v2273 = vpack.c.b16 %v2239, %v2237
    %v2274 = vpack.c.b16 %v2242, %v2240
    %v2275 = vpack.c.b16 %v2243, %v2241
    %v2276 = vpack.c.b16 %v2246, %v2244
    %v2277 = vpack.c.b16 %v2247, %v2245
    %v2278 = vpack.c.b16 %v2250, %v2248
    %v2279 = vpack.c.b16 %v2251, %v2249
    %2308 = vmatpush.bf16.msra.mxu0 %v2131
    %2309 = vmatpush.bf16.msra.mxu0 %v2130
    %2310 = vmatpush.bf16.msra.mxu0 %v2129
    %2311 = vmatpush.bf16.msra.mxu0 %v2128
    %2312 = vmatpush.bf16.msra.mxu0 %v2127
    %2313 = vmatpush.bf16.msra.mxu0 %v2126
    %2314 = vmatpush.bf16.msra.mxu0 %v2125
    %2315 = vmatpush.bf16.msra.mxu0 %v2124
    %2316 = vmatmul.bf16.gmra.mxu0 %v2252
    %v2317 = vpop.f32.mrf.mxu0
    %v2318 = vadd.f32 0.0, %v2317
    %v2319 = vpop.f32.mrf.mxu0
    %v2320 = vadd.f32 0.0, %v2319
    %2321 = vmatmul.bf16.gmra.mxu0 %v2254
    %v2322 = vpop.f32.mrf.mxu0
    %v2323 = vadd.f32 0.0, %v2322
    %v2324 = vpop.f32.mrf.mxu0
    %v2325 = vadd.f32 0.0, %v2324
    %2326 = vmatmul.bf16.gmra.mxu0 %v2256
    %v2327 = vpop.f32.mrf.mxu0
    %v2328 = vadd.f32 0.0, %v2327
    %v2329 = vpop.f32.mrf.mxu0
    %v2330 = vadd.f32 0.0, %v2329
    %2331 = vmatmul.bf16.gmra.mxu0 %v2258
    %v2332 = vpop.f32.mrf.mxu0
    %v2333 = vadd.f32 0.0, %v2332
    %v2334 = vpop.f32.mrf.mxu0
    %v2335 = vadd.f32 0.0, %v2334
    %2336 = vmatmul.bf16.gmra.mxu0 %v2260
    %v2337 = vpop.f32.mrf.mxu0
    %v2338 = vadd.f32 0.0, %v2337
    %v2339 = vpop.f32.mrf.mxu0
    %v2340 = vadd.f32 0.0, %v2339
    %2341 = vmatmul.bf16.gmra.mxu0 %v2262
    %v2342 = vpop.f32.mrf.mxu0
    %v2343 = vadd.f32 0.0, %v2342
    %v2344 = vpop.f32.mrf.mxu0
    %v2345 = vadd.f32 0.0, %v2344
    %2346 = vmatmul.bf16.gmra.mxu0 %v2264
    %v2347 = vpop.f32.mrf.mxu0
    %v2348 = vadd.f32 0.0, %v2347
    %v2349 = vpop.f32.mrf.mxu0
    %v2350 = vadd.f32 0.0, %v2349
    %2351 = vmatmul.bf16.gmra.mxu0 %v2266
    %v2352 = vpop.f32.mrf.mxu0
    %v2353 = vadd.f32 0.0, %v2352
    %v2354 = vpop.f32.mrf.mxu0
    %v2355 = vadd.f32 0.0, %v2354
    %2356 = vmatmul.bf16.gmra.mxu0 %v2268
    %v2357 = vpop.f32.mrf.mxu0
    %v2358 = vadd.f32 0.0, %v2357
    %v2359 = vpop.f32.mrf.mxu0
    %v2360 = vadd.f32 0.0, %v2359
    %2361 = vmatmul.bf16.gmra.mxu0 %v2270
    %v2362 = vpop.f32.mrf.mxu0
    %v2363 = vadd.f32 0.0, %v2362
    %v2364 = vpop.f32.mrf.mxu0
    %v2365 = vadd.f32 0.0, %v2364
    %2366 = vmatmul.bf16.gmra.mxu0 %v2272
    %v2367 = vpop.f32.mrf.mxu0
    %v2368 = vadd.f32 0.0, %v2367
    %v2369 = vpop.f32.mrf.mxu0
    %v2370 = vadd.f32 0.0, %v2369
    %2371 = vmatmul.bf16.gmra.mxu0 %v2274
    %v2372 = vpop.f32.mrf.mxu0
    %v2373 = vadd.f32 0.0, %v2372
    %v2374 = vpop.f32.mrf.mxu0
    %v2375 = vadd.f32 0.0, %v2374
    %2376 = vmatmul.bf16.gmra.mxu0 %v2276
    %v2377 = vpop.f32.mrf.mxu0
    %v2378 = vadd.f32 0.0, %v2377
    %v2379 = vpop.f32.mrf.mxu0
    %v2380 = vadd.f32 0.0, %v2379
    %2381 = vmatmul.bf16.gmra.mxu0 %v2278
    %v2382 = vpop.f32.mrf.mxu0
    %v2383 = vadd.f32 0.0, %v2382
    %v2384 = vpop.f32.mrf.mxu0
    %v2385 = vadd.f32 0.0, %v2384
    %2386 = vdwg.mxu0
    %2387 = vmatpush.bf16.msra.mxu0 %v2139
    %2388 = vmatpush.bf16.msra.mxu0 %v2138
    %2389 = vmatpush.bf16.msra.mxu0 %v2137
    %2390 = vmatpush.bf16.msra.mxu0 %v2136
    %2391 = vmatpush.bf16.msra.mxu0 %v2135
    %2392 = vmatpush.bf16.msra.mxu0 %v2134
    %2393 = vmatpush.bf16.msra.mxu0 %v2133
    %2394 = vmatpush.bf16.msra.mxu0 %v2132
    %2395 = vmatmul.bf16.gmra.mxu0 %v2253
    %v2396 = vpop.f32.mrf.mxu0
    %v2397 = vadd.f32 %v2318, %v2396
    %v2398 = vpop.f32.mrf.mxu0
    %v2399 = vadd.f32 %v2320, %v2398
    %2400 = vmatmul.bf16.gmra.mxu0 %v2255
    %v2401 = vpop.f32.mrf.mxu0
    %v2402 = vadd.f32 %v2323, %v2401
    %v2403 = vpop.f32.mrf.mxu0
    %v2404 = vadd.f32 %v2325, %v2403
    %2405 = vmatmul.bf16.gmra.mxu0 %v2257
    %v2406 = vpop.f32.mrf.mxu0
    %v2407 = vadd.f32 %v2328, %v2406
    %v2408 = vpop.f32.mrf.mxu0
    %v2409 = vadd.f32 %v2330, %v2408
    %2410 = vmatmul.bf16.gmra.mxu0 %v2259
    %v2411 = vpop.f32.mrf.mxu0
    %v2412 = vadd.f32 %v2333, %v2411
    %v2413 = vpop.f32.mrf.mxu0
    %v2414 = vadd.f32 %v2335, %v2413
    %2415 = vmatmul.bf16.gmra.mxu0 %v2261
    %v2416 = vpop.f32.mrf.mxu0
    %v2417 = vadd.f32 %v2338, %v2416
    %v2418 = vpop.f32.mrf.mxu0
    %v2419 = vadd.f32 %v2340, %v2418
    %2420 = vmatmul.bf16.gmra.mxu0 %v2263
    %v2421 = vpop.f32.mrf.mxu0
    %v2422 = vadd.f32 %v2343, %v2421
    %v2423 = vpop.f32.mrf.mxu0
    %v2424 = vadd.f32 %v2345, %v2423
    %2425 = vmatmul.bf16.gmra.mxu0 %v2265
    %v2426 = vpop.f32.mrf.mxu0
    %v2427 = vadd.f32 %v2348, %v2426
    %v2428 = vpop.f32.mrf.mxu0
    %v2429 = vadd.f32 %v2350, %v2428
    %2430 = vmatmul.bf16.gmra.mxu0 %v2267
    %v2431 = vpop.f32.mrf.mxu0
    %v2432 = vadd.f32 %v2353, %v2431
    %v2433 = vpop.f32.mrf.mxu0
    %v2434 = vadd.f32 %v2355, %v2433
    %2435 = vmatmul.bf16.gmra.mxu0 %v2269
    %v2436 = vpop.f32.mrf.mxu0
    %v2437 = vadd.f32 %v2358, %v2436
    %v2438 = vpop.f32.mrf.mxu0
    %v2439 = vadd.f32 %v2360, %v2438
    %2440 = vmatmul.bf16.gmra.mxu0 %v2271
    %v2441 = vpop.f32.mrf.mxu0
    %v2442 = vadd.f32 %v2363, %v2441
    %v2443 = vpop.f32.mrf.mxu0
    %v2444 = vadd.f32 %v2365, %v2443
    %2445 = vmatmul.bf16.gmra.mxu0 %v2273
    %v2446 = vpop.f32.mrf.mxu0
    %v2447 = vadd.f32 %v2368, %v2446
    %v2448 = vpop.f32.mrf.mxu0
    %v2449 = vadd.f32 %v2370, %v2448
    %2450 = vmatmul.bf16.gmra.mxu0 %v2275
    %v2451 = vpop.f32.mrf.mxu0
    %v2452 = vadd.f32 %v2373, %v2451
    %v2453 = vpop.f32.mrf.mxu0
    %v2454 = vadd.f32 %v2375, %v2453
    %2455 = vmatmul.bf16.gmra.mxu0 %v2277
    %v2456 = vpop.f32.mrf.mxu0
    %v2457 = vadd.f32 %v2378, %v2456
    %v2458 = vpop.f32.mrf.mxu0
    %v2459 = vadd.f32 %v2380, %v2458
    %2460 = vmatmul.bf16.gmra.mxu0 %v2279
    %v2461 = vpop.f32.mrf.mxu0
    %v2462 = vadd.f32 %v2383, %v2461
    %v2463 = vpop.f32.mrf.mxu0
    %v2464 = vadd.f32 %v2385, %v2463
    %2465 = vdwg.mxu0
    %v2466 = vmax.f32 %v2397, %v2432
    %v2467 = vmax.f32 %v2399, %v2434
    %v2468 = vmax.f32 %v2402, %v2437
    %v2469 = vmax.f32 %v2404, %v2439
    %v2470 = vmax.f32 %v2407, %v2442
    %v2471 = vmax.f32 %v2409, %v2444
    %v2472 = vmax.f32 %v2412, %v2447
    %v2473 = vmax.f32 %v2414, %v2449
    %v2474 = vmax.f32 %v2417, %v2452
    %v2475 = vmax.f32 %v2419, %v2454
    %v2476 = vmax.f32 %v2422, %v2457
    %v2477 = vmax.f32 %v2424, %v2459
    %v2478 = vmax.f32 %v2427, %v2462
    %v2479 = vmax.f32 %v2429, %v2464
    %v2480 = vld [vmem:[%s5] sm:$0x3]
    %v2482 = vperm.slane %v2480, 0
    %v2483 = vperm.slane %v2480, 1
    %v2486 = vpack.c.bf16 %v2467, %v2466
    %v2487 = vpack.c.bf16 %v2469, %v2468
    %v2488 = vpack.c.bf16 %v2471, %v2470
    %v2489 = vpack.c.bf16 %v2473, %v2472
    %v2490 = vpack.c.bf16 %v2475, %v2474
    %v2491 = vpack.c.bf16 %v2477, %v2476
    %v2492 = vpack.c.bf16 %v2479, %v2478
    %v2493 = vld [vmem:[%s4] sm:$0xff]
    %v2494 = vld [vmem:[%s4 + $0x8] sm:$0xff]
    %v2495 = vld [vmem:[%s4 + $0x10] sm:$0xff]
    %v2496 = vld [vmem:[%s4 + $0x18] sm:$0xff]
    %v2497 = vld [vmem:[%s4 + $0x20] sm:$0xff]
    %v2498 = vld [vmem:[%s4 + $0x28] sm:$0xff]
    %v2499 = vld [vmem:[%s4 + $0x30] sm:$0xff]
    %v2500 = vld [vmem:[%s4 + $0x38] sm:$0xff]
    %v2501 = vld [vmem:[%s4 + $0x40] sm:$0xff]
    %v2502 = vld [vmem:[%s4 + $0x48] sm:$0xff]
    %v2503 = vld [vmem:[%s4 + $0x50] sm:$0xff]
    %v2504 = vld [vmem:[%s4 + $0x58] sm:$0xff]
    %v2505 = vld [vmem:[%s4 + $0x60] sm:$0xff]
    %v2506 = vld [vmem:[%s4 + $0x68] sm:$0xff]
    %v2507 = vld [vmem:[%s4 + $0x70] sm:$0xff]
    %v2508 = vld [vmem:[%s4 + $0x78] sm:$0xff]
    %v2525 = vunpack.c.l.b16 %v2493
    %v2526 = vunpack.c.h.b16 %v2493
    %v2527 = vunpack.c.l.b16 %v2494
    %v2528 = vunpack.c.h.b16 %v2494
    %v2529 = vunpack.c.l.b16 %v2495
    %v2530 = vunpack.c.h.b16 %v2495
    %v2531 = vunpack.c.l.b16 %v2496
    %v2532 = vunpack.c.h.b16 %v2496
    %v2533 = vunpack.c.l.b16 %v2497
    %v2534 = vunpack.c.h.b16 %v2497
    %v2535 = vunpack.c.l.b16 %v2498
    %v2536 = vunpack.c.h.b16 %v2498
    %v2537 = vunpack.c.l.b16 %v2499
    %v2538 = vunpack.c.h.b16 %v2499
    %v2539 = vunpack.c.l.b16 %v2500
    %v2540 = vunpack.c.h.b16 %v2500
    %v2541 = vunpack.c.l.b16 %v2501
    %v2542 = vunpack.c.h.b16 %v2501
    %v2543 = vunpack.c.l.b16 %v2502
    %v2544 = vunpack.c.h.b16 %v2502
    %v2545 = vunpack.c.l.b16 %v2503
    %v2546 = vunpack.c.h.b16 %v2503
    %v2547 = vunpack.c.l.b16 %v2504
    %v2548 = vunpack.c.h.b16 %v2504
    %v2549 = vunpack.c.l.b16 %v2505
    %v2550 = vunpack.c.h.b16 %v2505
    %v2551 = vunpack.c.l.b16 %v2506
    %v2552 = vunpack.c.h.b16 %v2506
    %v2553 = vunpack.c.l.b16 %v2507
    %v2554 = vunpack.c.h.b16 %v2507
    %v2555 = vunpack.c.l.b16 %v2508
    %v2556 = vunpack.c.h.b16 %v2508
    %v2557 = vpack.c.b16 %v2527, %v2525
    %v2558 = vpack.c.b16 %v2528, %v2526
    %v2559 = vpack.c.b16 %v2531, %v2529
    %v2560 = vpack.c.b16 %v2532, %v2530
    %v2561 = vpack.c.b16 %v2535, %v2533
    %v2562 = vpack.c.b16 %v2536, %v2534
    %v2563 = vpack.c.b16 %v2539, %v2537
    %v2564 = vpack.c.b16 %v2540, %v2538
    %v2565 = vpack.c.b16 %v2543, %v2541
    %v2566 = vpack.c.b16 %v2544, %v2542
    %v2567 = vpack.c.b16 %v2547, %v2545
    %v2568 = vpack.c.b16 %v2548, %v2546
    %v2569 = vpack.c.b16 %v2551, %v2549
    %v2570 = vpack.c.b16 %v2552, %v2550
    %v2571 = vpack.c.b16 %v2555, %v2553
    %v2572 = vpack.c.b16 %v2556, %v2554
    %2589 = vmatpush.bf16.msra.mxu0 %v2571
    %2590 = vmatpush.bf16.msra.mxu0 %v2569
    %2591 = vmatpush.bf16.msra.mxu0 %v2567
    %2592 = vmatpush.bf16.msra.mxu0 %v2565
    %2593 = vmatpush.bf16.msra.mxu0 %v2563
    %2594 = vmatpush.bf16.msra.mxu0 %v2561
    %2595 = vmatpush.bf16.msra.mxu0 %v2559
    %2596 = vmatpush.bf16.msra.mxu0 %v2557
    %2597 = vmatmul.bf16.gmra.mxu0 %v2486
    %v2598 = vpop.f32.mrf.mxu0
    %v2599 = vadd.f32 0.0, %v2598
    %v2600 = vpop.f32.mrf.mxu0
    %v2601 = vadd.f32 0.0, %v2600
    %2602 = vmatmul.bf16.gmra.mxu0 %v2487
    %v2603 = vpop.f32.mrf.mxu0
    %v2604 = vadd.f32 0.0, %v2603
    %v2605 = vpop.f32.mrf.mxu0
    %v2606 = vadd.f32 0.0, %v2605
    %2607 = vmatmul.bf16.gmra.mxu0 %v2488
    %v2608 = vpop.f32.mrf.mxu0
    %v2609 = vadd.f32 0.0, %v2608
    %v2610 = vpop.f32.mrf.mxu0
    %v2611 = vadd.f32 0.0, %v2610
    %2612 = vmatmul.bf16.gmra.mxu0 %v2489
    %v2613 = vpop.f32.mrf.mxu0
    %v2614 = vadd.f32 0.0, %v2613
    %v2615 = vpop.f32.mrf.mxu0
    %v2616 = vadd.f32 0.0, %v2615
    %2617 = vmatmul.bf16.gmra.mxu0 %v2490
    %v2618 = vpop.f32.mrf.mxu0
    %v2619 = vadd.f32 0.0, %v2618
    %v2620 = vpop.f32.mrf.mxu0
    %v2621 = vadd.f32 0.0, %v2620
    %2622 = vmatmul.bf16.gmra.mxu0 %v2491
    %v2623 = vpop.f32.mrf.mxu0
    %v2624 = vadd.f32 0.0, %v2623
    %v2625 = vpop.f32.mrf.mxu0
    %v2626 = vadd.f32 0.0, %v2625
    %2627 = vmatmul.bf16.gmra.mxu0 %v2492
    %v2628 = vpop.f32.mrf.mxu0
    %v2629 = vadd.f32 0.0, %v2628
    %v2630 = vpop.f32.mrf.mxu0
    %v2631 = vadd.f32 0.0, %v2630
    %2632 = vdwg.mxu0
    %2633 = vmatpush.bf16.msra.mxu0 %v2572
    %2634 = vmatpush.bf16.msra.mxu0 %v2570
    %2635 = vmatpush.bf16.msra.mxu0 %v2568
    %2636 = vmatpush.bf16.msra.mxu0 %v2566
    %2637 = vmatpush.bf16.msra.mxu0 %v2564
    %2638 = vmatpush.bf16.msra.mxu0 %v2562
    %2639 = vmatpush.bf16.msra.mxu0 %v2560
    %2640 = vmatpush.bf16.msra.mxu0 %v2558
    %2641 = vmatmul.bf16.gmra.mxu0 %v2486
    %v2642 = vpop.f32.mrf.mxu0
    %v2643 = vadd.f32 0.0, %v2642
    %v2644 = vpop.f32.mrf.mxu0
    %v2645 = vadd.f32 0.0, %v2644
    %2646 = vmatmul.bf16.gmra.mxu0 %v2487
    %v2647 = vpop.f32.mrf.mxu0
    %v2648 = vadd.f32 0.0, %v2647
    %v2649 = vpop.f32.mrf.mxu0
    %v2650 = vadd.f32 0.0, %v2649
    %2651 = vmatmul.bf16.gmra.mxu0 %v2488
    %v2652 = vpop.f32.mrf.mxu0
    %v2653 = vadd.f32 0.0, %v2652
    %v2654 = vpop.f32.mrf.mxu0
    %v2655 = vadd.f32 0.0, %v2654
    %2656 = vmatmul.bf16.gmra.mxu0 %v2489
    %v2657 = vpop.f32.mrf.mxu0
    %v2658 = vadd.f32 0.0, %v2657
    %v2659 = vpop.f32.mrf.mxu0
    %v2660 = vadd.f32 0.0, %v2659
    %2661 = vmatmul.bf16.gmra.mxu0 %v2490
    %v2662 = vpop.f32.mrf.mxu0
    %v2663 = vadd.f32 0.0, %v2662
    %v2664 = vpop.f32.mrf.mxu0
    %v2665 = vadd.f32 0.0, %v2664
    %2666 = vmatmul.bf16.gmra.mxu0 %v2491
    %v2667 = vpop.f32.mrf.mxu0
    %v2668 = vadd.f32 0.0, %v2667
    %v2669 = vpop.f32.mrf.mxu0
    %v2670 = vadd.f32 0.0, %v2669
    %2671 = vmatmul.bf16.gmra.mxu0 %v2492
    %v2672 = vpop.f32.mrf.mxu0
    %v2673 = vadd.f32 0.0, %v2672
    %v2674 = vpop.f32.mrf.mxu0
    %v2675 = vadd.f32 0.0, %v2674
    %2676 = vdwg.mxu0
    %v2677 = vadd.f32 %v2482, %v2599
    %v2678 = vadd.f32 %v2483, %v2643
    %v2679 = vadd.f32 %v2482, %v2601
    %v2680 = vadd.f32 %v2483, %v2645
    %v2681 = vadd.f32 %v2482, %v2604
    %v2682 = vadd.f32 %v2483, %v2648
    %v2683 = vadd.f32 %v2482, %v2606
    %v2684 = vadd.f32 %v2483, %v2650
    %v2685 = vadd.f32 %v2482, %v2609
    %v2686 = vadd.f32 %v2483, %v2653
    %v2687 = vadd.f32 %v2482, %v2611
    %v2688 = vadd.f32 %v2483, %v2655
    %v2689 = vadd.f32 %v2482, %v2614
    %v2690 = vadd.f32 %v2483, %v2658
    %v2691 = vadd.f32 %v2482, %v2616
    %v2692 = vadd.f32 %v2483, %v2660
    %v2693 = vadd.f32 %v2482, %v2619
    %v2694 = vadd.f32 %v2483, %v2663
    %v2695 = vadd.f32 %v2482, %v2621
    %v2696 = vadd.f32 %v2483, %v2665
    %v2697 = vadd.f32 %v2482, %v2624
    %v2698 = vadd.f32 %v2483, %v2668
    %v2699 = vadd.f32 %v2482, %v2626
    %v2700 = vadd.f32 %v2483, %v2670
    %v2701 = vadd.f32 %v2482, %v2629
    %v2702 = vadd.f32 %v2483, %v2673
    %v2703 = vadd.f32 %v2482, %v2631
    %v2704 = vadd.f32 %v2483, %v2675
    %v2705 = vld [vmem:[%s4 + $0x80] sm:$0xff]
    %v2706 = vld [vmem:[%s4 + $0x88] sm:$0xff]
    %v2707 = vld [vmem:[%s4 + $0x90] sm:$0xff]
    %v2708 = vld [vmem:[%s4 + $0x98] sm:$0xff]
    %v2709 = vld [vmem:[%s4 + $0xa0] sm:$0xff]
    %v2710 = vld [vmem:[%s4 + $0xa8] sm:$0xff]
    %v2711 = vld [vmem:[%s4 + $0xb0] sm:$0xff]
    %v2712 = vld [vmem:[%s4 + $0xb8] sm:$0xff]
    %v2713 = vld [vmem:[%s4 + $0xc0] sm:$0xff]
    %v2714 = vld [vmem:[%s4 + $0xc8] sm:$0xff]
    %v2715 = vld [vmem:[%s4 + $0xd0] sm:$0xff]
    %v2716 = vld [vmem:[%s4 + $0xd8] sm:$0xff]
    %v2717 = vld [vmem:[%s4 + $0xe0] sm:$0xff]
    %v2718 = vld [vmem:[%s4 + $0xe8] sm:$0xff]
    %v2719 = vld [vmem:[%s4 + $0xf0] sm:$0xff]
    %v2720 = vld [vmem:[%s4 + $0xf8] sm:$0xff]
    %v2722 = vshrl.u32 %v2486, 16
    %v2724 = vshll.u32 %v2486, 16
    %v2726 = vrot.slane %v2724, 1
    %v2727 = vor.u32 %v2722, %v2726
    %v2729 = vshll.u32 %v2487, 16
    %v2731 = vrot.slane %v2729, 1
    %v2732 = vsel %vm504, %v2727, %v2731
    %v2733 = vshrl.u32 %v2487, 16
    %v2735 = vor.u32 %v2733, %v2731
    %v2737 = vshll.u32 %v2488, 16
    %v2739 = vrot.slane %v2737, 1
    %v2740 = vsel %vm504, %v2735, %v2739
    %v2741 = vshrl.u32 %v2488, 16
    %v2743 = vor.u32 %v2741, %v2739
    %v2745 = vshll.u32 %v2489, 16
    %v2747 = vrot.slane %v2745, 1
    %v2748 = vsel %vm504, %v2743, %v2747
    %v2749 = vshrl.u32 %v2489, 16
    %v2751 = vor.u32 %v2749, %v2747
    %v2753 = vshll.u32 %v2490, 16
    %v2755 = vrot.slane %v2753, 1
    %v2756 = vsel %vm504, %v2751, %v2755
    %v2757 = vshrl.u32 %v2490, 16
    %v2759 = vor.u32 %v2757, %v2755
    %v2761 = vshll.u32 %v2491, 16
    %v2763 = vrot.slane %v2761, 1
    %v2764 = vsel %vm504, %v2759, %v2763
    %v2765 = vshrl.u32 %v2491, 16
    %v2767 = vor.u32 %v2765, %v2763
    %v2769 = vshll.u32 %v2492, 16
    %v2771 = vrot.slane %v2769, 1
    %v2772 = vsel %vm504, %v2767, %v2771
    %v2773 = vshrl.u32 %v2492, 16
    %v2775 = vor.u32 %v2773, %v2771
    %v2776 = vsel %vm504, %v2775, %v619
    %v2800 = vunpack.c.l.b16 %v2705
    %v2801 = vunpack.c.h.b16 %v2705
    %v2802 = vunpack.c.l.b16 %v2706
    %v2803 = vunpack.c.h.b16 %v2706
    %v2804 = vunpack.c.l.b16 %v2707
    %v2805 = vunpack.c.h.b16 %v2707
    %v2806 = vunpack.c.l.b16 %v2708
    %v2807 = vunpack.c.h.b16 %v2708
    %v2808 = vunpack.c.l.b16 %v2709
    %v2809 = vunpack.c.h.b16 %v2709
    %v2810 = vunpack.c.l.b16 %v2710
    %v2811 = vunpack.c.h.b16 %v2710
    %v2812 = vunpack.c.l.b16 %v2711
    %v2813 = vunpack.c.h.b16 %v2711
    %v2814 = vunpack.c.l.b16 %v2712
    %v2815 = vunpack.c.h.b16 %v2712
    %v2816 = vunpack.c.l.b16 %v2713
    %v2817 = vunpack.c.h.b16 %v2713
    %v2818 = vunpack.c.l.b16 %v2714
    %v2819 = vunpack.c.h.b16 %v2714
    %v2820 = vunpack.c.l.b16 %v2715
    %v2821 = vunpack.c.h.b16 %v2715
    %v2822 = vunpack.c.l.b16 %v2716
    %v2823 = vunpack.c.h.b16 %v2716
    %v2824 = vunpack.c.l.b16 %v2717
    %v2825 = vunpack.c.h.b16 %v2717
    %v2826 = vunpack.c.l.b16 %v2718
    %v2827 = vunpack.c.h.b16 %v2718
    %v2828 = vunpack.c.l.b16 %v2719
    %v2829 = vunpack.c.h.b16 %v2719
    %v2830 = vunpack.c.l.b16 %v2720
    %v2831 = vunpack.c.h.b16 %v2720
    %v2832 = vpack.c.b16 %v2802, %v2800
    %v2833 = vpack.c.b16 %v2803, %v2801
    %v2834 = vpack.c.b16 %v2806, %v2804
    %v2835 = vpack.c.b16 %v2807, %v2805
    %v2836 = vpack.c.b16 %v2810, %v2808
    %v2837 = vpack.c.b16 %v2811, %v2809
    %v2838 = vpack.c.b16 %v2814, %v2812
    %v2839 = vpack.c.b16 %v2815, %v2813
    %v2840 = vpack.c.b16 %v2818, %v2816
    %v2841 = vpack.c.b16 %v2819, %v2817
    %v2842 = vpack.c.b16 %v2822, %v2820
    %v2843 = vpack.c.b16 %v2823, %v2821
    %v2844 = vpack.c.b16 %v2826, %v2824
    %v2845 = vpack.c.b16 %v2827, %v2825
    %v2846 = vpack.c.b16 %v2830, %v2828
    %v2847 = vpack.c.b16 %v2831, %v2829
    %2864 = vmatpush.bf16.msra.mxu0 %v2846
    %2865 = vmatpush.bf16.msra.mxu0 %v2844
    %2866 = vmatpush.bf16.msra.mxu0 %v2842
    %2867 = vmatpush.bf16.msra.mxu0 %v2840
    %2868 = vmatpush.bf16.msra.mxu0 %v2838
    %2869 = vmatpush.bf16.msra.mxu0 %v2836
    %2870 = vmatpush.bf16.msra.mxu0 %v2834
    %2871 = vmatpush.bf16.msra.mxu0 %v2832
    %2872 = vmatmul.bf16.gmra.mxu0 %v2732
    %v2873 = vpop.f32.mrf.mxu0
    %v2874 = vadd.f32 0.0, %v2873
    %v2875 = vpop.f32.mrf.mxu0
    %v2876 = vadd.f32 0.0, %v2875
    %2877 = vmatmul.bf16.gmra.mxu0 %v2740
    %v2878 = vpop.f32.mrf.mxu0
    %v2879 = vadd.f32 0.0, %v2878
    %v2880 = vpop.f32.mrf.mxu0
    %v2881 = vadd.f32 0.0, %v2880
    %2882 = vmatmul.bf16.gmra.mxu0 %v2748
    %v2883 = vpop.f32.mrf.mxu0
    %v2884 = vadd.f32 0.0, %v2883
    %v2885 = vpop.f32.mrf.mxu0
    %v2886 = vadd.f32 0.0, %v2885
    %2887 = vmatmul.bf16.gmra.mxu0 %v2756
    %v2888 = vpop.f32.mrf.mxu0
    %v2889 = vadd.f32 0.0, %v2888
    %v2890 = vpop.f32.mrf.mxu0
    %v2891 = vadd.f32 0.0, %v2890
    %2892 = vmatmul.bf16.gmra.mxu0 %v2764
    %v2893 = vpop.f32.mrf.mxu0
    %v2894 = vadd.f32 0.0, %v2893
    %v2895 = vpop.f32.mrf.mxu0
    %v2896 = vadd.f32 0.0, %v2895
    %2897 = vmatmul.bf16.gmra.mxu0 %v2772
    %v2898 = vpop.f32.mrf.mxu0
    %v2899 = vadd.f32 0.0, %v2898
    %v2900 = vpop.f32.mrf.mxu0
    %v2901 = vadd.f32 0.0, %v2900
    %2902 = vmatmul.bf16.gmra.mxu0 %v2776
    %v2903 = vpop.f32.mrf.mxu0
    %v2904 = vadd.f32 0.0, %v2903
    %v2905 = vpop.f32.mrf.mxu0
    %v2906 = vadd.f32 0.0, %v2905
    %2907 = vdwg.mxu0
    %2908 = vmatpush.bf16.msra.mxu0 %v2847
    %2909 = vmatpush.bf16.msra.mxu0 %v2845
    %2910 = vmatpush.bf16.msra.mxu0 %v2843
    %2911 = vmatpush.bf16.msra.mxu0 %v2841
    %2912 = vmatpush.bf16.msra.mxu0 %v2839
    %2913 = vmatpush.bf16.msra.mxu0 %v2837
    %2914 = vmatpush.bf16.msra.mxu0 %v2835
    %2915 = vmatpush.bf16.msra.mxu0 %v2833
    %2916 = vmatmul.bf16.gmra.mxu0 %v2732
    %v2917 = vpop.f32.mrf.mxu0
    %v2918 = vadd.f32 0.0, %v2917
    %v2919 = vpop.f32.mrf.mxu0
    %v2920 = vadd.f32 0.0, %v2919
    %2921 = vmatmul.bf16.gmra.mxu0 %v2740
    %v2922 = vpop.f32.mrf.mxu0
    %v2923 = vadd.f32 0.0, %v2922
    %v2924 = vpop.f32.mrf.mxu0
    %v2925 = vadd.f32 0.0, %v2924
    %2926 = vmatmul.bf16.gmra.mxu0 %v2748
    %v2927 = vpop.f32.mrf.mxu0
    %v2928 = vadd.f32 0.0, %v2927
    %v2929 = vpop.f32.mrf.mxu0
    %v2930 = vadd.f32 0.0, %v2929
    %2931 = vmatmul.bf16.gmra.mxu0 %v2756
    %v2932 = vpop.f32.mrf.mxu0
    %v2933 = vadd.f32 0.0, %v2932
    %v2934 = vpop.f32.mrf.mxu0
    %v2935 = vadd.f32 0.0, %v2934
    %2936 = vmatmul.bf16.gmra.mxu0 %v2764
    %v2937 = vpop.f32.mrf.mxu0
    %v2938 = vadd.f32 0.0, %v2937
    %v2939 = vpop.f32.mrf.mxu0
    %v2940 = vadd.f32 0.0, %v2939
    %2941 = vmatmul.bf16.gmra.mxu0 %v2772
    %v2942 = vpop.f32.mrf.mxu0
    %v2943 = vadd.f32 0.0, %v2942
    %v2944 = vpop.f32.mrf.mxu0
    %v2945 = vadd.f32 0.0, %v2944
    %2946 = vmatmul.bf16.gmra.mxu0 %v2776
    %v2947 = vpop.f32.mrf.mxu0
    %v2948 = vadd.f32 0.0, %v2947
    %v2949 = vpop.f32.mrf.mxu0
    %v2950 = vadd.f32 0.0, %v2949
    %2951 = vdwg.mxu0
    %v2952 = vadd.f32 %v2677, %v2874
    %v2953 = vadd.f32 %v2678, %v2918
    %v2954 = vadd.f32 %v2679, %v2876
    %v2955 = vadd.f32 %v2680, %v2920
    %v2956 = vadd.f32 %v2681, %v2879
    %v2957 = vadd.f32 %v2682, %v2923
    %v2958 = vadd.f32 %v2683, %v2881
    %v2959 = vadd.f32 %v2684, %v2925
    %v2960 = vadd.f32 %v2685, %v2884
    %v2961 = vadd.f32 %v2686, %v2928
    %v2962 = vadd.f32 %v2687, %v2886
    %v2963 = vadd.f32 %v2688, %v2930
    %v2964 = vadd.f32 %v2689, %v2889
    %v2965 = vadd.f32 %v2690, %v2933
    %v2966 = vadd.f32 %v2691, %v2891
    %v2967 = vadd.f32 %v2692, %v2935
    %v2968 = vadd.f32 %v2693, %v2894
    %v2969 = vadd.f32 %v2694, %v2938
    %v2970 = vadd.f32 %v2695, %v2896
    %v2971 = vadd.f32 %v2696, %v2940
    %v2972 = vadd.f32 %v2697, %v2899
    %v2973 = vadd.f32 %v2698, %v2943
    %v2974 = vadd.f32 %v2699, %v2901
    %v2975 = vadd.f32 %v2700, %v2945
    %v2976 = vadd.f32 %v2701, %v2904
    %v2977 = vadd.f32 %v2702, %v2948
    %v2978 = vadd.f32 %v2703, %v2906
    %v2979 = vadd.f32 %v2704, %v2950
    %v2980 = vld [vmem:[%s4 + $0x100] sm:$0xff]
    %v2981 = vld [vmem:[%s4 + $0x108] sm:$0xff]
    %v2982 = vld [vmem:[%s4 + $0x110] sm:$0xff]
    %v2983 = vld [vmem:[%s4 + $0x118] sm:$0xff]
    %v2984 = vld [vmem:[%s4 + $0x120] sm:$0xff]
    %v2985 = vld [vmem:[%s4 + $0x128] sm:$0xff]
    %v2986 = vld [vmem:[%s4 + $0x130] sm:$0xff]
    %v2987 = vld [vmem:[%s4 + $0x138] sm:$0xff]
    %v2988 = vld [vmem:[%s4 + $0x140] sm:$0xff]
    %v2989 = vld [vmem:[%s4 + $0x148] sm:$0xff]
    %v2990 = vld [vmem:[%s4 + $0x150] sm:$0xff]
    %v2991 = vld [vmem:[%s4 + $0x158] sm:$0xff]
    %v2992 = vld [vmem:[%s4 + $0x160] sm:$0xff]
    %v2993 = vld [vmem:[%s4 + $0x168] sm:$0xff]
    %v2994 = vld [vmem:[%s4 + $0x170] sm:$0xff]
    %v2995 = vld [vmem:[%s4 + $0x178] sm:$0xff]
    %v3003 = vrot.slane %v2486, 1
    %v3004 = vrot.slane %v2487, 1
    %v3005 = vsel %vm952, %v3003, %v3004
    %v3006 = vrot.slane %v2488, 1
    %v3007 = vsel %vm952, %v3004, %v3006
    %v3008 = vrot.slane %v2489, 1
    %v3009 = vsel %vm952, %v3006, %v3008
    %v3010 = vrot.slane %v2490, 1
    %v3011 = vsel %vm952, %v3008, %v3010
    %v3012 = vrot.slane %v2491, 1
    %v3013 = vsel %vm952, %v3010, %v3012
    %v3014 = vrot.slane %v2492, 1
    %v3015 = vsel %vm952, %v3012, %v3014
    %v3016 = vsel %vm952, %v3014, %v984
    %v3040 = vunpack.c.l.b16 %v2980
    %v3041 = vunpack.c.h.b16 %v2980
    %v3042 = vunpack.c.l.b16 %v2981
    %v3043 = vunpack.c.h.b16 %v2981
    %v3044 = vunpack.c.l.b16 %v2982
    %v3045 = vunpack.c.h.b16 %v2982
    %v3046 = vunpack.c.l.b16 %v2983
    %v3047 = vunpack.c.h.b16 %v2983
    %v3048 = vunpack.c.l.b16 %v2984
    %v3049 = vunpack.c.h.b16 %v2984
    %v3050 = vunpack.c.l.b16 %v2985
    %v3051 = vunpack.c.h.b16 %v2985
    %v3052 = vunpack.c.l.b16 %v2986
    %v3053 = vunpack.c.h.b16 %v2986
    %v3054 = vunpack.c.l.b16 %v2987
    %v3055 = vunpack.c.h.b16 %v2987
    %v3056 = vunpack.c.l.b16 %v2988
    %v3057 = vunpack.c.h.b16 %v2988
    %v3058 = vunpack.c.l.b16 %v2989
    %v3059 = vunpack.c.h.b16 %v2989
    %v3060 = vunpack.c.l.b16 %v2990
    %v3061 = vunpack.c.h.b16 %v2990
    %v3062 = vunpack.c.l.b16 %v2991
    %v3063 = vunpack.c.h.b16 %v2991
    %v3064 = vunpack.c.l.b16 %v2992
    %v3065 = vunpack.c.h.b16 %v2992
    %v3066 = vunpack.c.l.b16 %v2993
    %v3067 = vunpack.c.h.b16 %v2993
    %v3068 = vunpack.c.l.b16 %v2994
    %v3069 = vunpack.c.h.b16 %v2994
    %v3070 = vunpack.c.l.b16 %v2995
    %v3071 = vunpack.c.h.b16 %v2995
    %v3072 = vpack.c.b16 %v3042, %v3040
    %v3073 = vpack.c.b16 %v3043, %v3041
    %v3074 = vpack.c.b16 %v3046, %v3044
    %v3075 = vpack.c.b16 %v3047, %v3045
    %v3076 = vpack.c.b16 %v3050, %v3048
    %v3077 = vpack.c.b16 %v3051, %v3049
    %v3078 = vpack.c.b16 %v3054, %v3052
    %v3079 = vpack.c.b16 %v3055, %v3053
    %v3080 = vpack.c.b16 %v3058, %v3056
    %v3081 = vpack.c.b16 %v3059, %v3057
    %v3082 = vpack.c.b16 %v3062, %v3060
    %v3083 = vpack.c.b16 %v3063, %v3061
    %v3084 = vpack.c.b16 %v3066, %v3064
    %v3085 = vpack.c.b16 %v3067, %v3065
    %v3086 = vpack.c.b16 %v3070, %v3068
    %v3087 = vpack.c.b16 %v3071, %v3069
    %3104 = vmatpush.bf16.msra.mxu0 %v3086
    %3105 = vmatpush.bf16.msra.mxu0 %v3084
    %3106 = vmatpush.bf16.msra.mxu0 %v3082
    %3107 = vmatpush.bf16.msra.mxu0 %v3080
    %3108 = vmatpush.bf16.msra.mxu0 %v3078
    %3109 = vmatpush.bf16.msra.mxu0 %v3076
    %3110 = vmatpush.bf16.msra.mxu0 %v3074
    %3111 = vmatpush.bf16.msra.mxu0 %v3072
    %3112 = vmatmul.bf16.gmra.mxu0 %v3005
    %v3113 = vpop.f32.mrf.mxu0
    %v3114 = vadd.f32 0.0, %v3113
    %v3115 = vpop.f32.mrf.mxu0
    %v3116 = vadd.f32 0.0, %v3115
    %3117 = vmatmul.bf16.gmra.mxu0 %v3007
    %v3118 = vpop.f32.mrf.mxu0
    %v3119 = vadd.f32 0.0, %v3118
    %v3120 = vpop.f32.mrf.mxu0
    %v3121 = vadd.f32 0.0, %v3120
    %3122 = vmatmul.bf16.gmra.mxu0 %v3009
    %v3123 = vpop.f32.mrf.mxu0
    %v3124 = vadd.f32 0.0, %v3123
    %v3125 = vpop.f32.mrf.mxu0
    %v3126 = vadd.f32 0.0, %v3125
    %3127 = vmatmul.bf16.gmra.mxu0 %v3011
    %v3128 = vpop.f32.mrf.mxu0
    %v3129 = vadd.f32 0.0, %v3128
    %v3130 = vpop.f32.mrf.mxu0
    %v3131 = vadd.f32 0.0, %v3130
    %3132 = vmatmul.bf16.gmra.mxu0 %v3013
    %v3133 = vpop.f32.mrf.mxu0
    %v3134 = vadd.f32 0.0, %v3133
    %v3135 = vpop.f32.mrf.mxu0
    %v3136 = vadd.f32 0.0, %v3135
    %3137 = vmatmul.bf16.gmra.mxu0 %v3015
    %v3138 = vpop.f32.mrf.mxu0
    %v3139 = vadd.f32 0.0, %v3138
    %v3140 = vpop.f32.mrf.mxu0
    %v3141 = vadd.f32 0.0, %v3140
    %3142 = vmatmul.bf16.gmra.mxu0 %v3016
    %v3143 = vpop.f32.mrf.mxu0
    %v3144 = vadd.f32 0.0, %v3143
    %v3145 = vpop.f32.mrf.mxu0
    %v3146 = vadd.f32 0.0, %v3145
    %3147 = vdwg.mxu0
    %3148 = vmatpush.bf16.msra.mxu0 %v3087
    %3149 = vmatpush.bf16.msra.mxu0 %v3085
    %3150 = vmatpush.bf16.msra.mxu0 %v3083
    %3151 = vmatpush.bf16.msra.mxu0 %v3081
    %3152 = vmatpush.bf16.msra.mxu0 %v3079
    %3153 = vmatpush.bf16.msra.mxu0 %v3077
    %3154 = vmatpush.bf16.msra.mxu0 %v3075
    %3155 = vmatpush.bf16.msra.mxu0 %v3073
    %3156 = vmatmul.bf16.gmra.mxu0 %v3005
    %v3157 = vpop.f32.mrf.mxu0
    %v3158 = vadd.f32 0.0, %v3157
    %v3159 = vpop.f32.mrf.mxu0
    %v3160 = vadd.f32 0.0, %v3159
    %3161 = vmatmul.bf16.gmra.mxu0 %v3007
    %v3162 = vpop.f32.mrf.mxu0
    %v3163 = vadd.f32 0.0, %v3162
    %v3164 = vpop.f32.mrf.mxu0
    %v3165 = vadd.f32 0.0, %v3164
    %3166 = vmatmul.bf16.gmra.mxu0 %v3009
    %v3167 = vpop.f32.mrf.mxu0
    %v3168 = vadd.f32 0.0, %v3167
    %v3169 = vpop.f32.mrf.mxu0
    %v3170 = vadd.f32 0.0, %v3169
    %3171 = vmatmul.bf16.gmra.mxu0 %v3011
    %v3172 = vpop.f32.mrf.mxu0
    %v3173 = vadd.f32 0.0, %v3172
    %v3174 = vpop.f32.mrf.mxu0
    %v3175 = vadd.f32 0.0, %v3174
    %3176 = vmatmul.bf16.gmra.mxu0 %v3013
    %v3177 = vpop.f32.mrf.mxu0
    %v3178 = vadd.f32 0.0, %v3177
    %v3179 = vpop.f32.mrf.mxu0
    %v3180 = vadd.f32 0.0, %v3179
    %3181 = vmatmul.bf16.gmra.mxu0 %v3015
    %v3182 = vpop.f32.mrf.mxu0
    %v3183 = vadd.f32 0.0, %v3182
    %v3184 = vpop.f32.mrf.mxu0
    %v3185 = vadd.f32 0.0, %v3184
    %3186 = vmatmul.bf16.gmra.mxu0 %v3016
    %v3187 = vpop.f32.mrf.mxu0
    %v3188 = vadd.f32 0.0, %v3187
    %v3189 = vpop.f32.mrf.mxu0
    %v3190 = vadd.f32 0.0, %v3189
    %3191 = vdwg.mxu0
    %v3192 = vadd.f32 %v2952, %v3114
    %v3193 = vadd.f32 %v2953, %v3158
    %v3194 = vadd.f32 %v2954, %v3116
    %v3195 = vadd.f32 %v2955, %v3160
    %v3196 = vadd.f32 %v2956, %v3119
    %v3197 = vadd.f32 %v2957, %v3163
    %v3198 = vadd.f32 %v2958, %v3121
    %v3199 = vadd.f32 %v2959, %v3165
    %v3200 = vadd.f32 %v2960, %v3124
    %v3201 = vadd.f32 %v2961, %v3168
    %v3202 = vadd.f32 %v2962, %v3126
    %v3203 = vadd.f32 %v2963, %v3170
    %v3204 = vadd.f32 %v2964, %v3129
    %v3205 = vadd.f32 %v2965, %v3173
    %v3206 = vadd.f32 %v2966, %v3131
    %v3207 = vadd.f32 %v2967, %v3175
    %v3208 = vadd.f32 %v2968, %v3134
    %v3209 = vadd.f32 %v2969, %v3178
    %v3210 = vadd.f32 %v2970, %v3136
    %v3211 = vadd.f32 %v2971, %v3180
    %v3212 = vadd.f32 %v2972, %v3139
    %v3213 = vadd.f32 %v2973, %v3183
    %v3214 = vadd.f32 %v2974, %v3141
    %v3215 = vadd.f32 %v2975, %v3185
    %v3216 = vadd.f32 %v2976, %v3144
    %v3217 = vadd.f32 %v2977, %v3188
    %v3218 = vadd.f32 %v2978, %v3146
    %v3219 = vadd.f32 %v2979, %v3190
    %v3220 = vmax.f32 %v3192, 0.0
    %v3221 = vmax.f32 %v3193, 0.0
    %v3222 = vmax.f32 %v3194, 0.0
    %v3223 = vmax.f32 %v3195, 0.0
    %v3224 = vmax.f32 %v3196, 0.0
    %v3225 = vmax.f32 %v3197, 0.0
    %v3226 = vmax.f32 %v3198, 0.0
    %v3227 = vmax.f32 %v3199, 0.0
    %v3228 = vmax.f32 %v3200, 0.0
    %v3229 = vmax.f32 %v3201, 0.0
    %v3230 = vmax.f32 %v3202, 0.0
    %v3231 = vmax.f32 %v3203, 0.0
    %v3232 = vmax.f32 %v3204, 0.0
    %v3233 = vmax.f32 %v3205, 0.0
    %v3234 = vmax.f32 %v3206, 0.0
    %v3235 = vmax.f32 %v3207, 0.0
    %v3236 = vmax.f32 %v3208, 0.0
    %v3237 = vmax.f32 %v3209, 0.0
    %v3238 = vmax.f32 %v3210, 0.0
    %v3239 = vmax.f32 %v3211, 0.0
    %v3240 = vmax.f32 %v3212, 0.0
    %v3241 = vmax.f32 %v3213, 0.0
    %v3242 = vmax.f32 %v3214, 0.0
    %v3243 = vmax.f32 %v3215, 0.0
    %v3244 = vmax.f32 %v3216, 0.0
    %v3245 = vmax.f32 %v3217, 0.0
    %v3246 = vmax.f32 %v3218, 0.0
    %v3247 = vmax.f32 %v3219, 0.0
    %v3248 = vmax.f32 %v3220, %v3221
    %v3249 = vmax.f32 %v3222, %v3223
    %v3250 = vmax.f32 %v3224, %v3225
    %v3251 = vmax.f32 %v3226, %v3227
    %v3252 = vmax.f32 %v3228, %v3229
    %v3253 = vmax.f32 %v3230, %v3231
    %v3254 = vmax.f32 %v3232, %v3233
    %v3255 = vmax.f32 %v3234, %v3235
    %v3256 = vmax.f32 %v3236, %v3237
    %v3257 = vmax.f32 %v3238, %v3239
    %v3258 = vmax.f32 %v3240, %v3241
    %v3259 = vmax.f32 %v3242, %v3243
    %v3260 = vmax.f32 %v3244, %v3245
    %v3261 = vmax.f32 %v3246, %v3247
    %v3262 = vpack.c.bf16 %v3249, %v3248
    %v3263 = vpack.c.bf16 %v3251, %v3250
    %v3264 = vpack.c.bf16 %v3253, %v3252
    %v3265 = vpack.c.bf16 %v3255, %v3254
    %v3266 = vpack.c.bf16 %v3257, %v3256
    %v3267 = vpack.c.bf16 %v3259, %v3258
    %v3268 = vpack.c.bf16 %v3261, %v3260
    %v3269 = vld [vmem:[#allocation4] sm:$0xf]
    %v3270 = vld [vmem:[#allocation4 + $0x4] sm:$0xf]
    %v3271 = vld [vmem:[#allocation4 + $0x8] sm:$0xf]
    %v3272 = vld [vmem:[#allocation4 + $0xc] sm:$0xf]
    %v3273 = vld [vmem:[#allocation4 + $0x10] sm:$0xf]
    %v3274 = vld [vmem:[#allocation4 + $0x14] sm:$0xf]
    %v3275 = vld [vmem:[#allocation4 + $0x18] sm:$0xf]
    %v3276 = vld [vmem:[#allocation4 + $0x1c] sm:$0xf]
    %v3277 = vld [vmem:[#allocation4 + $0x20] sm:$0xf]
    %v3278 = vld [vmem:[#allocation4 + $0x24] sm:$0xf]
    %v3279 = vld [vmem:[#allocation4 + $0x28] sm:$0xf]
    %v3280 = vld [vmem:[#allocation4 + $0x2c] sm:$0xf]
    %v3293 = vunpack.c.l.b16 %v3269
    %v3294 = vunpack.c.l.b16 %v3270
    %v3295 = vunpack.c.l.b16 %v3271
    %v3296 = vunpack.c.l.b16 %v3272
    %v3297 = vunpack.c.l.b16 %v3273
    %v3298 = vunpack.c.l.b16 %v3274
    %v3299 = vunpack.c.l.b16 %v3275
    %v3300 = vunpack.c.l.b16 %v3276
    %v3301 = vunpack.c.l.b16 %v3277
    %v3302 = vunpack.c.l.b16 %v3278
    %v3303 = vunpack.c.l.b16 %v3279
    %v3304 = vunpack.c.l.b16 %v3280
    %v3305 = vpack.c.b16 %v3294, %v3293
    %v3306 = vpack.c.b16 %v3296, %v3295
    %v3307 = vpack.c.b16 %v3298, %v3297
    %v3308 = vpack.c.b16 %v3300, %v3299
    %v3309 = vpack.c.b16 %v3302, %v3301
    %v3310 = vpack.c.b16 %v3304, %v3303
    %vm3311 = vcmask 916480
    %v3313 = vsel %vm3311, %v3305, 0
    %v3316 = vsel %vm3311, %v3306, 0
    %v3319 = vsel %vm3311, %v3307, 0
    %v3322 = vsel %vm3311, %v3308, 0
    %v3325 = vsel %vm3311, %v3309, 0
    %v3328 = vsel %vm3311, %v3310, 0
    %3330 = vmatpush.bf16.msra.mxu0 0
    %3331 = vmatpush.bf16.msra.mxu0 %v3268
    %3332 = vmatpush.bf16.msra.mxu0 %v3267
    %3333 = vmatpush.bf16.msra.mxu0 %v3266
    %3334 = vmatpush.bf16.msra.mxu0 %v3265
    %3335 = vmatpush.bf16.msra.mxu0 %v3264
    %3336 = vmatpush.bf16.msra.mxu0 %v3263
    %3337 = vmatpush.bf16.msra.mxu0 %v3262
    %3338 = vmatmul.bf16.gmra.mxu0 %v3313
    %v3339 = vpop.f32.mrf.mxu0
    %v3340 = vadd.f32 0.0, %v3339
    %v3341 = vpop.f32.mrf.mxu0
    %v3342 = vadd.f32 0.0, %v3341
    %3343 = vmatmul.bf16.gmra.mxu0 %v3316
    %v3344 = vpop.f32.mrf.mxu0
    %v3345 = vadd.f32 0.0, %v3344
    %v3346 = vpop.f32.mrf.mxu0
    %v3347 = vadd.f32 0.0, %v3346
    %3348 = vmatmul.bf16.gmra.mxu0 %v3319
    %v3349 = vpop.f32.mrf.mxu0
    %v3350 = vadd.f32 0.0, %v3349
    %v3351 = vpop.f32.mrf.mxu0
    %v3352 = vadd.f32 0.0, %v3351
    %3353 = vmatmul.bf16.gmra.mxu0 %v3322
    %v3354 = vpop.f32.mrf.mxu0
    %v3355 = vadd.f32 0.0, %v3354
    %v3356 = vpop.f32.mrf.mxu0
    %v3357 = vadd.f32 0.0, %v3356
    %3358 = vmatmul.bf16.gmra.mxu0 %v3325
    %v3359 = vpop.f32.mrf.mxu0
    %v3360 = vadd.f32 0.0, %v3359
    %v3361 = vpop.f32.mrf.mxu0
    %v3362 = vadd.f32 0.0, %v3361
    %3363 = vmatmul.bf16.gmra.mxu0 %v3328
    %v3364 = vpop.f32.mrf.mxu0
    %v3365 = vadd.f32 0.0, %v3364
    %v3366 = vpop.f32.mrf.mxu0
    %v3367 = vadd.f32 0.0, %v3366
    %3368 = vdwg.mxu0
    %v3369 = vmax.f32 %v3340, %v3342
    %v3370 = vmax.f32 %v3345, %v3347
    %v3371 = vmax.f32 %v3350, %v3352
    %v3372 = vmax.f32 %v3355, %v3357
    %v3373 = vmax.f32 %v3360, %v3362
    %v3374 = vmax.f32 %v3365, %v3367
    %v3375 = vpack.c.bf16 %v3369, %v3369
    %v3376 = vpack.c.bf16 %v3370, %v3370
    %v3377 = vpack.c.bf16 %v3371, %v3371
    %v3378 = vpack.c.bf16 %v3372, %v3372
    %v3379 = vpack.c.bf16 %v3373, %v3373
    %v3380 = vpack.c.bf16 %v3374, %v3374
    %v3381 = vld [vmem:[#allocation6] sm:$0xff]
    %v3382 = vld [vmem:[#allocation6 + $0x8] sm:$0xff]
    %v3383 = vld [vmem:[#allocation6 + $0x10] sm:$0xf]
    %v3384 = vld [vmem:[#allocation6 + $0x14] sm:$0xff]
    %v3385 = vld [vmem:[#allocation6 + $0x1c] sm:$0xff]
    %v3386 = vld [vmem:[#allocation6 + $0x24] sm:$0xf]
    %v3387 = vld [vmem:[#allocation6 + $0x28] sm:$0xff]
    %v3388 = vld [vmem:[#allocation6 + $0x30] sm:$0xff]
    %v3389 = vld [vmem:[#allocation6 + $0x38] sm:$0xf]
    %v3390 = vld [vmem:[#allocation6 + $0x3c] sm:$0xff]
    %v3391 = vld [vmem:[#allocation6 + $0x44] sm:$0xff]
    %v3392 = vld [vmem:[#allocation6 + $0x4c] sm:$0xf]
    %v3393 = vld [vmem:[#allocation6 + $0x50] sm:$0xff]
    %v3394 = vld [vmem:[#allocation6 + $0x58] sm:$0xff]
    %v3395 = vld [vmem:[#allocation6 + $0x60] sm:$0xf]
    %v3396 = vld [vmem:[#allocation6 + $0x64] sm:$0xff]
    %v3397 = vld [vmem:[#allocation6 + $0x6c] sm:$0xff]
    %v3398 = vld [vmem:[#allocation6 + $0x74] sm:$0xf]
    %v3399 = vld [vmem:[#allocation6 + $0x78] sm:$0xff]
    %v3400 = vld [vmem:[#allocation6 + $0x80] sm:$0xff]
    %v3401 = vld [vmem:[#allocation6 + $0x88] sm:$0xf]
    %v3402 = vld [vmem:[#allocation6 + $0x8c] sm:$0xff]
    %v3403 = vld [vmem:[#allocation6 + $0x94] sm:$0xff]
    %v3404 = vld [vmem:[#allocation6 + $0x9c] sm:$0xf]
    %v3405 = vld [vmem:[#allocation6 + $0xa0] sm:$0xff]
    %v3406 = vld [vmem:[#allocation6 + $0xa8] sm:$0xff]
    %v3407 = vld [vmem:[#allocation6 + $0xb0] sm:$0xf]
    %v3408 = vld [vmem:[#allocation6 + $0xb4] sm:$0xff]
    %v3409 = vld [vmem:[#allocation6 + $0xbc] sm:$0xff]
    %v3410 = vld [vmem:[#allocation6 + $0xc4] sm:$0xf]
    %v3411 = vld [vmem:[#allocation6 + $0xc8] sm:$0xff]
    %v3412 = vld [vmem:[#allocation6 + $0xd0] sm:$0xff]
    %v3413 = vld [vmem:[#allocation6 + $0xd8] sm:$0xf]
    %v3414 = vld [vmem:[#allocation6 + $0xdc] sm:$0xff]
    %v3415 = vld [vmem:[#allocation6 + $0xe4] sm:$0xff]
    %v3416 = vld [vmem:[#allocation6 + $0xec] sm:$0xf]
    %v3417 = vld [vmem:[#allocation6 + $0xf0] sm:$0xff]
    %v3418 = vld [vmem:[#allocation6 + $0xf8] sm:$0xff]
    %v3419 = vld [vmem:[#allocation6 + $0x100] sm:$0xf]
    %v3420 = vld [vmem:[#allocation6 + $0x104] sm:$0xff]
    %v3421 = vld [vmem:[#allocation6 + $0x10c] sm:$0xff]
    %v3422 = vld [vmem:[#allocation6 + $0x114] sm:$0xf]
    %v3423 = vld [vmem:[#allocation6 + $0x118] sm:$0xff]
    %v3424 = vld [vmem:[#allocation6 + $0x120] sm:$0xff]
    %v3425 = vld [vmem:[#allocation6 + $0x128] sm:$0xf]
    %v3426 = vld [vmem:[#allocation6 + $0x12c] sm:$0xff]
    %v3427 = vld [vmem:[#allocation6 + $0x134] sm:$0xff]
    %v3428 = vld [vmem:[#allocation6 + $0x13c] sm:$0xf]
    %v3429 = vld [vmem:[#allocation6 + $0x140] sm:$0xff]
    %v3430 = vld [vmem:[#allocation6 + $0x148] sm:$0xff]
    %v3431 = vld [vmem:[#allocation6 + $0x150] sm:$0xf]
    %v3432 = vld [vmem:[#allocation6 + $0x154] sm:$0xff]
    %v3433 = vld [vmem:[#allocation6 + $0x15c] sm:$0xff]
    %v3434 = vld [vmem:[#allocation6 + $0x164] sm:$0xf]
    %v3435 = vld [vmem:[#allocation6 + $0x168] sm:$0xff]
    %v3436 = vld [vmem:[#allocation6 + $0x170] sm:$0xff]
    %v3437 = vld [vmem:[#allocation6 + $0x178] sm:$0xf]
    %v3438 = vld [vmem:[#allocation6 + $0x17c] sm:$0xff]
    %v3439 = vld [vmem:[#allocation6 + $0x184] sm:$0xff]
    %v3440 = vld [vmem:[#allocation6 + $0x18c] sm:$0xf]
    %v3441 = vld [vmem:[#allocation6 + $0x190] sm:$0xff]
    %v3442 = vld [vmem:[#allocation6 + $0x198] sm:$0xff]
    %v3443 = vld [vmem:[#allocation6 + $0x1a0] sm:$0xf]
    %v3444 = vld [vmem:[#allocation6 + $0x1a4] sm:$0xff]
    %v3445 = vld [vmem:[#allocation6 + $0x1ac] sm:$0xff]
    %v3446 = vld [vmem:[#allocation6 + $0x1b4] sm:$0xf]
    %v3447 = vld [vmem:[#allocation6 + $0x1b8] sm:$0xff]
    %v3448 = vld [vmem:[#allocation6 + $0x1c0] sm:$0xff]
    %v3449 = vld [vmem:[#allocation6 + $0x1c8] sm:$0xf]
    %v3450 = vld [vmem:[#allocation6 + $0x1cc] sm:$0xff]
    %v3451 = vld [vmem:[#allocation6 + $0x1d4] sm:$0xff]
    %v3452 = vld [vmem:[#allocation6 + $0x1dc] sm:$0xf]
    %v3453 = vld [vmem:[#allocation6 + $0x1e0] sm:$0xff]
    %v3454 = vld [vmem:[#allocation6 + $0x1e8] sm:$0xff]
    %v3455 = vld [vmem:[#allocation6 + $0x1f0] sm:$0xf]
    %v3456 = vld [vmem:[#allocation6 + $0x1f4] sm:$0xff]
    %v3457 = vld [vmem:[#allocation6 + $0x1fc] sm:$0xff]
    %v3458 = vld [vmem:[#allocation6 + $0x204] sm:$0xf]
    %v3459 = vld [vmem:[#allocation6 + $0x208] sm:$0xff]
    %v3460 = vld [vmem:[#allocation6 + $0x210] sm:$0xff]
    %v3461 = vld [vmem:[#allocation6 + $0x218] sm:$0xf]
    %v3462 = vld [vmem:[#allocation6 + $0x21c] sm:$0xff]
    %v3463 = vld [vmem:[#allocation6 + $0x224] sm:$0xff]
    %v3464 = vld [vmem:[#allocation6 + $0x22c] sm:$0xf]
    %v3465 = vld [vmem:[#allocation6 + $0x230] sm:$0xff]
    %v3466 = vld [vmem:[#allocation6 + $0x238] sm:$0xff]
    %v3467 = vld [vmem:[#allocation6 + $0x240] sm:$0xf]
    %v3468 = vld [vmem:[#allocation6 + $0x244] sm:$0xff]
    %v3469 = vld [vmem:[#allocation6 + $0x24c] sm:$0xff]
    %v3470 = vld [vmem:[#allocation6 + $0x254] sm:$0xf]
    %v3471 = vld [vmem:[#allocation6 + $0x258] sm:$0xff]
    %v3472 = vld [vmem:[#allocation6 + $0x260] sm:$0xff]
    %v3473 = vld [vmem:[#allocation6 + $0x268] sm:$0xf]
    %v3474 = vld [vmem:[#allocation6 + $0x26c] sm:$0xff]
    %v3475 = vld [vmem:[#allocation6 + $0x274] sm:$0xff]
    %v3476 = vld [vmem:[#allocation6 + $0x27c] sm:$0xf]
    %v3477 = vld [vmem:[#allocation6 + $0x280] sm:$0xff]
    %v3478 = vld [vmem:[#allocation6 + $0x288] sm:$0xff]
    %v3479 = vld [vmem:[#allocation6 + $0x290] sm:$0xf]
    %v3480 = vld [vmem:[#allocation6 + $0x294] sm:$0xff]
    %v3481 = vld [vmem:[#allocation6 + $0x29c] sm:$0xff]
    %v3482 = vld [vmem:[#allocation6 + $0x2a4] sm:$0xf]
    %v3483 = vld [vmem:[#allocation6 + $0x2a8] sm:$0xff]
    %v3484 = vld [vmem:[#allocation6 + $0x2b0] sm:$0xff]
    %v3485 = vld [vmem:[#allocation6 + $0x2b8] sm:$0xf]
    %v3486 = vld [vmem:[#allocation6 + $0x2bc] sm:$0xff]
    %v3487 = vld [vmem:[#allocation6 + $0x2c4] sm:$0xff]
    %v3488 = vld [vmem:[#allocation6 + $0x2cc] sm:$0xf]
    %v3489 = vld [vmem:[#allocation6 + $0x2d0] sm:$0xff]
    %v3490 = vld [vmem:[#allocation6 + $0x2d8] sm:$0xff]
    %v3491 = vld [vmem:[#allocation6 + $0x2e0] sm:$0xf]
    %v3492 = vld [vmem:[#allocation6 + $0x2e4] sm:$0xff]
    %v3493 = vld [vmem:[#allocation6 + $0x2ec] sm:$0xff]
    %v3494 = vld [vmem:[#allocation6 + $0x2f4] sm:$0xf]
    %v3495 = vld [vmem:[#allocation6 + $0x2f8] sm:$0xff]
    %v3496 = vld [vmem:[#allocation6 + $0x300] sm:$0xff]
    %v3497 = vld [vmem:[#allocation6 + $0x308] sm:$0xf]
    %v3498 = vld [vmem:[#allocation6 + $0x30c] sm:$0xff]
    %v3499 = vld [vmem:[#allocation6 + $0x314] sm:$0xff]
    %v3500 = vld [vmem:[#allocation6 + $0x31c] sm:$0xf]
    %v3501 = vld [vmem:[#allocation6 + $0x320] sm:$0xff]
    %v3502 = vld [vmem:[#allocation6 + $0x328] sm:$0xff]
    %v3503 = vld [vmem:[#allocation6 + $0x330] sm:$0xf]
    %v3504 = vld [vmem:[#allocation6 + $0x334] sm:$0xff]
    %v3505 = vld [vmem:[#allocation6 + $0x33c] sm:$0xff]
    %v3506 = vld [vmem:[#allocation6 + $0x344] sm:$0xf]
    %v3507 = vld [vmem:[#allocation6 + $0x348] sm:$0xff]
    %v3508 = vld [vmem:[#allocation6 + $0x350] sm:$0xff]
    %v3509 = vld [vmem:[#allocation6 + $0x358] sm:$0xf]
    %v3510 = vld [vmem:[#allocation6 + $0x35c] sm:$0xff]
    %v3511 = vld [vmem:[#allocation6 + $0x364] sm:$0xff]
    %v3512 = vld [vmem:[#allocation6 + $0x36c] sm:$0xf]
    %v3513 = vld [vmem:[#allocation6 + $0x370] sm:$0xff]
    %v3514 = vld [vmem:[#allocation6 + $0x378] sm:$0xff]
    %v3515 = vld [vmem:[#allocation6 + $0x380] sm:$0xf]
    %v3516 = vld [vmem:[#allocation6 + $0x384] sm:$0xff]
    %v3517 = vld [vmem:[#allocation6 + $0x38c] sm:$0xff]
    %v3518 = vld [vmem:[#allocation6 + $0x394] sm:$0xf]
    %v3519 = vld [vmem:[#allocation6 + $0x398] sm:$0xff]
    %v3520 = vld [vmem:[#allocation6 + $0x3a0] sm:$0xff]
    %v3521 = vld [vmem:[#allocation6 + $0x3a8] sm:$0xf]
    %v3522 = vld [vmem:[#allocation6 + $0x3ac] sm:$0xff]
    %v3523 = vld [vmem:[#allocation6 + $0x3b4] sm:$0xff]
    %v3524 = vld [vmem:[#allocation6 + $0x3bc] sm:$0xf]
    %v3525 = vld [vmem:[#allocation6 + $0x3c0] sm:$0xff]
    %v3526 = vld [vmem:[#allocation6 + $0x3c8] sm:$0xff]
    %v3527 = vld [vmem:[#allocation6 + $0x3d0] sm:$0xf]
    %v3528 = vld [vmem:[#allocation6 + $0x3d4] sm:$0xff]
    %v3529 = vld [vmem:[#allocation6 + $0x3dc] sm:$0xff]
    %v3530 = vld [vmem:[#allocation6 + $0x3e4] sm:$0xf]
    %v3531 = vld [vmem:[#allocation6 + $0x3e8] sm:$0xff]
    %v3532 = vld [vmem:[#allocation6 + $0x3f0] sm:$0xff]
    %v3533 = vld [vmem:[#allocation6 + $0x3f8] sm:$0xf]
    %v3534 = vld [vmem:[#allocation6 + $0x3fc] sm:$0xff]
    %v3535 = vld [vmem:[#allocation6 + $0x404] sm:$0xff]
    %v3536 = vld [vmem:[#allocation6 + $0x40c] sm:$0xf]
    %v3537 = vld [vmem:[#allocation6 + $0x410] sm:$0xff]
    %v3538 = vld [vmem:[#allocation6 + $0x418] sm:$0xff]
    %v3539 = vld [vmem:[#allocation6 + $0x420] sm:$0xf]
    %v3540 = vld [vmem:[#allocation6 + $0x424] sm:$0xff]
    %v3541 = vld [vmem:[#allocation6 + $0x42c] sm:$0xff]
    %v3542 = vld [vmem:[#allocation6 + $0x434] sm:$0xf]
    %v3543 = vld [vmem:[#allocation6 + $0x438] sm:$0xff]
    %v3544 = vld [vmem:[#allocation6 + $0x440] sm:$0xff]
    %v3545 = vld [vmem:[#allocation6 + $0x448] sm:$0xf]
    %v3546 = vld [vmem:[#allocation6 + $0x44c] sm:$0xff]
    %v3547 = vld [vmem:[#allocation6 + $0x454] sm:$0xff]
    %v3548 = vld [vmem:[#allocation6 + $0x45c] sm:$0xf]
    %v3549 = vld [vmem:[#allocation6 + $0x460] sm:$0xff]
    %v3550 = vld [vmem:[#allocation6 + $0x468] sm:$0xff]
    %v3551 = vld [vmem:[#allocation6 + $0x470] sm:$0xf]
    %v3552 = vld [vmem:[#allocation6 + $0x474] sm:$0xff]
    %v3553 = vld [vmem:[#allocation6 + $0x47c] sm:$0xff]
    %v3554 = vld [vmem:[#allocation6 + $0x484] sm:$0xf]
    %v3555 = vld [vmem:[#allocation6 + $0x488] sm:$0xff]
    %v3556 = vld [vmem:[#allocation6 + $0x490] sm:$0xff]
    %v3557 = vld [vmem:[#allocation6 + $0x498] sm:$0xf]
    %v3558 = vld [vmem:[#allocation6 + $0x49c] sm:$0xff]
    %v3559 = vld [vmem:[#allocation6 + $0x4a4] sm:$0xff]
    %v3560 = vld [vmem:[#allocation6 + $0x4ac] sm:$0xf]
    %v3561 = vld [vmem:[#allocation6 + $0x4b0] sm:$0xff]
    %v3562 = vld [vmem:[#allocation6 + $0x4b8] sm:$0xff]
    %v3563 = vld [vmem:[#allocation6 + $0x4c0] sm:$0xf]
    %v3564 = vld [vmem:[#allocation6 + $0x4c4] sm:$0xff]
    %v3565 = vld [vmem:[#allocation6 + $0x4cc] sm:$0xff]
    %v3566 = vld [vmem:[#allocation6 + $0x4d4] sm:$0xf]
    %v3567 = vld [vmem:[#allocation6 + $0x4d8] sm:$0xff]
    %v3568 = vld [vmem:[#allocation6 + $0x4e0] sm:$0xff]
    %v3569 = vld [vmem:[#allocation6 + $0x4e8] sm:$0xf]
    %v3570 = vld [vmem:[#allocation6 + $0x4ec] sm:$0xff]
    %v3571 = vld [vmem:[#allocation6 + $0x4f4] sm:$0xff]
    %v3572 = vld [vmem:[#allocation6 + $0x4fc] sm:$0xf]
    %v3573 = vld [vmem:[#allocation6 + $0x500] sm:$0xff]
    %v3574 = vld [vmem:[#allocation6 + $0x508] sm:$0xff]
    %v3575 = vld [vmem:[#allocation6 + $0x510] sm:$0xf]
    %v3576 = vld [vmem:[#allocation6 + $0x514] sm:$0xff]
    %v3577 = vld [vmem:[#allocation6 + $0x51c] sm:$0xff]
    %v3578 = vld [vmem:[#allocation6 + $0x524] sm:$0xf]
    %v3579 = vld [vmem:[#allocation6 + $0x528] sm:$0xff]
    %v3580 = vld [vmem:[#allocation6 + $0x530] sm:$0xff]
    %v3581 = vld [vmem:[#allocation6 + $0x538] sm:$0xf]
    %v3582 = vld [vmem:[#allocation6 + $0x53c] sm:$0xff]
    %v3583 = vld [vmem:[#allocation6 + $0x544] sm:$0xff]
    %v3584 = vld [vmem:[#allocation6 + $0x54c] sm:$0xf]
    %v3585 = vld [vmem:[#allocation6 + $0x550] sm:$0xff]
    %v3586 = vld [vmem:[#allocation6 + $0x558] sm:$0xff]
    %v3587 = vld [vmem:[#allocation6 + $0x560] sm:$0xf]
    %v3588 = vld [vmem:[#allocation6 + $0x564] sm:$0xff]
    %v3589 = vld [vmem:[#allocation6 + $0x56c] sm:$0xff]
    %v3590 = vld [vmem:[#allocation6 + $0x574] sm:$0xf]
    %v3591 = vld [vmem:[#allocation6 + $0x578] sm:$0xff]
    %v3592 = vld [vmem:[#allocation6 + $0x580] sm:$0xff]
    %v3593 = vld [vmem:[#allocation6 + $0x588] sm:$0xf]
    %v3594 = vld [vmem:[#allocation6 + $0x58c] sm:$0xff]
    %v3595 = vld [vmem:[#allocation6 + $0x594] sm:$0xff]
    %v3596 = vld [vmem:[#allocation6 + $0x59c] sm:$0xf]
    %v3597 = vld [vmem:[#allocation6 + $0x5a0] sm:$0xff]
    %v3598 = vld [vmem:[#allocation6 + $0x5a8] sm:$0xff]
    %v3599 = vld [vmem:[#allocation6 + $0x5b0] sm:$0xf]
    %v3600 = vld [vmem:[#allocation6 + $0x5b4] sm:$0xff]
    %v3601 = vld [vmem:[#allocation6 + $0x5bc] sm:$0xff]
    %v3602 = vld [vmem:[#allocation6 + $0x5c4] sm:$0xf]
    %v3603 = vld [vmem:[#allocation6 + $0x5c8] sm:$0xff]
    %v3604 = vld [vmem:[#allocation6 + $0x5d0] sm:$0xff]
    %v3605 = vld [vmem:[#allocation6 + $0x5d8] sm:$0xf]
    %v3606 = vld [vmem:[#allocation6 + $0x5dc] sm:$0xff]
    %v3607 = vld [vmem:[#allocation6 + $0x5e4] sm:$0xff]
    %v3608 = vld [vmem:[#allocation6 + $0x5ec] sm:$0xf]
    %v3609 = vld [vmem:[#allocation6 + $0x5f0] sm:$0xff]
    %v3610 = vld [vmem:[#allocation6 + $0x5f8] sm:$0xff]
    %v3611 = vld [vmem:[#allocation6 + $0x600] sm:$0xf]
    %v3612 = vld [vmem:[#allocation6 + $0x604] sm:$0xff]
    %v3613 = vld [vmem:[#allocation6 + $0x60c] sm:$0xff]
    %v3614 = vld [vmem:[#allocation6 + $0x614] sm:$0xf]
    %v3615 = vld [vmem:[#allocation6 + $0x618] sm:$0xff]
    %v3616 = vld [vmem:[#allocation6 + $0x620] sm:$0xff]
    %v3617 = vld [vmem:[#allocation6 + $0x628] sm:$0xf]
    %v3618 = vld [vmem:[#allocation6 + $0x62c] sm:$0xff]
    %v3619 = vld [vmem:[#allocation6 + $0x634] sm:$0xff]
    %v3620 = vld [vmem:[#allocation6 + $0x63c] sm:$0xf]
    %v3621 = vld [vmem:[#allocation6 + $0x640] sm:$0xff]
    %v3622 = vld [vmem:[#allocation6 + $0x648] sm:$0xff]
    %v3623 = vld [vmem:[#allocation6 + $0x650] sm:$0xf]
    %v3624 = vld [vmem:[#allocation6 + $0x654] sm:$0xff]
    %v3625 = vld [vmem:[#allocation6 + $0x65c] sm:$0xff]
    %v3626 = vld [vmem:[#allocation6 + $0x664] sm:$0xf]
    %v3627 = vld [vmem:[#allocation6 + $0x668] sm:$0xff]
    %v3628 = vld [vmem:[#allocation6 + $0x670] sm:$0xff]
    %v3629 = vld [vmem:[#allocation6 + $0x678] sm:$0xf]
    %v3630 = vld [vmem:[#allocation6 + $0x67c] sm:$0xff]
    %v3631 = vld [vmem:[#allocation6 + $0x684] sm:$0xff]
    %v3632 = vld [vmem:[#allocation6 + $0x68c] sm:$0xf]
    %v3633 = vld [vmem:[#allocation6 + $0x690] sm:$0xff]
    %v3634 = vld [vmem:[#allocation6 + $0x698] sm:$0xff]
    %v3635 = vld [vmem:[#allocation6 + $0x6a0] sm:$0xf]
    %v3636 = vld [vmem:[#allocation6 + $0x6a4] sm:$0xff]
    %v3637 = vld [vmem:[#allocation6 + $0x6ac] sm:$0xff]
    %v3638 = vld [vmem:[#allocation6 + $0x6b4] sm:$0xf]
    %v3639 = vld [vmem:[#allocation6 + $0x6b8] sm:$0xff]
    %v3640 = vld [vmem:[#allocation6 + $0x6c0] sm:$0xff]
    %v3641 = vld [vmem:[#allocation6 + $0x6c8] sm:$0xf]
    %v3642 = vld [vmem:[#allocation6 + $0x6cc] sm:$0xff]
    %v3643 = vld [vmem:[#allocation6 + $0x6d4] sm:$0xff]
    %v3644 = vld [vmem:[#allocation6 + $0x6dc] sm:$0xf]
    %v3645 = vld [vmem:[#allocation6 + $0x6e0] sm:$0xff]
    %v3646 = vld [vmem:[#allocation6 + $0x6e8] sm:$0xff]
    %v3647 = vld [vmem:[#allocation6 + $0x6f0] sm:$0xf]
    %v3648 = vld [vmem:[#allocation6 + $0x6f4] sm:$0xff]
    %v3649 = vld [vmem:[#allocation6 + $0x6fc] sm:$0xff]
    %v3650 = vld [vmem:[#allocation6 + $0x704] sm:$0xf]
    %v3651 = vld [vmem:[#allocation6 + $0x708] sm:$0xff]
    %v3652 = vld [vmem:[#allocation6 + $0x710] sm:$0xff]
    %v3653 = vld [vmem:[#allocation6 + $0x718] sm:$0xf]
    %v3654 = vld [vmem:[#allocation6 + $0x71c] sm:$0xff]
    %v3655 = vld [vmem:[#allocation6 + $0x724] sm:$0xff]
    %v3656 = vld [vmem:[#allocation6 + $0x72c] sm:$0xf]
    %v3657 = vld [vmem:[#allocation6 + $0x730] sm:$0xff]
    %v3658 = vld [vmem:[#allocation6 + $0x738] sm:$0xff]
    %v3659 = vld [vmem:[#allocation6 + $0x740] sm:$0xf]
    %v3660 = vld [vmem:[#allocation6 + $0x744] sm:$0xff]
    %v3661 = vld [vmem:[#allocation6 + $0x74c] sm:$0xff]
    %v3662 = vld [vmem:[#allocation6 + $0x754] sm:$0xf]
    %v3663 = vld [vmem:[#allocation6 + $0x758] sm:$0xff]
    %v3664 = vld [vmem:[#allocation6 + $0x760] sm:$0xff]
    %v3665 = vld [vmem:[#allocation6 + $0x768] sm:$0xf]
    %v3666 = vld [vmem:[#allocation6 + $0x76c] sm:$0xff]
    %v3667 = vld [vmem:[#allocation6 + $0x774] sm:$0xff]
    %v3668 = vld [vmem:[#allocation6 + $0x77c] sm:$0xf]
    %v3669 = vld [vmem:[%s8] sm:$0x1f]
    %v3671 = vperm.slane %v3669, 0
    %v3672 = vperm.slane %v3669, 1
    %v3673 = vperm.slane %v3669, 2
    %v3674 = vperm.slane %v3669, 3
    %v3675 = vperm.slane %v3669, 4
    %v3969 = vunpack.c.l.b16 %v3381
    %v3970 = vunpack.c.h.b16 %v3381
    %v3971 = vunpack.c.l.b16 %v3382
    %v3972 = vunpack.c.h.b16 %v3382
    %v3973 = vunpack.c.l.b16 %v3383
    %v3974 = vunpack.c.l.b16 %v3384
    %v3975 = vunpack.c.h.b16 %v3384
    %v3976 = vunpack.c.l.b16 %v3385
    %v3977 = vunpack.c.h.b16 %v3385
    %v3978 = vunpack.c.l.b16 %v3386
    %v3979 = vunpack.c.l.b16 %v3387
    %v3980 = vunpack.c.h.b16 %v3387
    %v3981 = vunpack.c.l.b16 %v3388
    %v3982 = vunpack.c.h.b16 %v3388
    %v3983 = vunpack.c.l.b16 %v3389
    %v3984 = vunpack.c.l.b16 %v3390
    %v3985 = vunpack.c.h.b16 %v3390
    %v3986 = vunpack.c.l.b16 %v3391
    %v3987 = vunpack.c.h.b16 %v3391
    %v3988 = vunpack.c.l.b16 %v3392
    %v3989 = vunpack.c.l.b16 %v3393
    %v3990 = vunpack.c.h.b16 %v3393
    %v3991 = vunpack.c.l.b16 %v3394
    %v3992 = vunpack.c.h.b16 %v3394
    %v3993 = vunpack.c.l.b16 %v3395
    %v3994 = vunpack.c.l.b16 %v3396
    %v3995 = vunpack.c.h.b16 %v3396
    %v3996 = vunpack.c.l.b16 %v3397
    %v3997 = vunpack.c.h.b16 %v3397
    %v3998 = vunpack.c.l.b16 %v3398
    %v3999 = vunpack.c.l.b16 %v3399
    %v4000 = vunpack.c.h.b16 %v3399
    %v4001 = vunpack.c.l.b16 %v3400
    %v4002 = vunpack.c.h.b16 %v3400
    %v4003 = vunpack.c.l.b16 %v3401
    %v4004 = vunpack.c.l.b16 %v3402
    %v4005 = vunpack.c.h.b16 %v3402
    %v4006 = vunpack.c.l.b16 %v3403
    %v4007 = vunpack.c.h.b16 %v3403
    %v4008 = vunpack.c.l.b16 %v3404
    %v4009 = vunpack.c.l.b16 %v3405
    %v4010 = vunpack.c.h.b16 %v3405
    %v4011 = vunpack.c.l.b16 %v3406
    %v4012 = vunpack.c.h.b16 %v3406
    %v4013 = vunpack.c.l.b16 %v3407
    %v4014 = vunpack.c.l.b16 %v3408
    %v4015 = vunpack.c.h.b16 %v3408
    %v4016 = vunpack.c.l.b16 %v3409
    %v4017 = vunpack.c.h.b16 %v3409
    %v4018 = vunpack.c.l.b16 %v3410
    %v4019 = vunpack.c.l.b16 %v3411
    %v4020 = vunpack.c.h.b16 %v3411
    %v4021 = vunpack.c.l.b16 %v3412
    %v4022 = vunpack.c.h.b16 %v3412
    %v4023 = vunpack.c.l.b16 %v3413
    %v4024 = vunpack.c.l.b16 %v3414
    %v4025 = vunpack.c.h.b16 %v3414
    %v4026 = vunpack.c.l.b16 %v3415
    %v4027 = vunpack.c.h.b16 %v3415
    %v4028 = vunpack.c.l.b16 %v3416
    %v4029 = vunpack.c.l.b16 %v3417
    %v4030 = vunpack.c.h.b16 %v3417
    %v4031 = vunpack.c.l.b16 %v3418
    %v4032 = vunpack.c.h.b16 %v3418
    %v4033 = vunpack.c.l.b16 %v3419
    %v4034 = vunpack.c.l.b16 %v3420
    %v4035 = vunpack.c.h.b16 %v3420
    %v4036 = vunpack.c.l.b16 %v3421
    %v4037 = vunpack.c.h.b16 %v3421
    %v4038 = vunpack.c.l.b16 %v3422
    %v4039 = vunpack.c.l.b16 %v3423
    %v4040 = vunpack.c.h.b16 %v3423
    %v4041 = vunpack.c.l.b16 %v3424
    %v4042 = vunpack.c.h.b16 %v3424
    %v4043 = vunpack.c.l.b16 %v3425
    %v4044 = vunpack.c.l.b16 %v3426
    %v4045 = vunpack.c.h.b16 %v3426
    %v4046 = vunpack.c.l.b16 %v3427
    %v4047 = vunpack.c.h.b16 %v3427
    %v4048 = vunpack.c.l.b16 %v3428
    %v4049 = vunpack.c.l.b16 %v3429
    %v4050 = vunpack.c.h.b16 %v3429
    %v4051 = vunpack.c.l.b16 %v3430
    %v4052 = vunpack.c.h.b16 %v3430
    %v4053 = vunpack.c.l.b16 %v3431
    %v4054 = vunpack.c.l.b16 %v3432
    %v4055 = vunpack.c.h.b16 %v3432
    %v4056 = vunpack.c.l.b16 %v3433
    %v4057 = vunpack.c.h.b16 %v3433
    %v4058 = vunpack.c.l.b16 %v3434
    %v4059 = vunpack.c.l.b16 %v3435
    %v4060 = vunpack.c.h.b16 %v3435
    %v4061 = vunpack.c.l.b16 %v3436
    %v4062 = vunpack.c.h.b16 %v3436
    %v4063 = vunpack.c.l.b16 %v3437
    %v4064 = vunpack.c.l.b16 %v3438
    %v4065 = vunpack.c.h.b16 %v3438
    %v4066 = vunpack.c.l.b16 %v3439
    %v4067 = vunpack.c.h.b16 %v3439
    %v4068 = vunpack.c.l.b16 %v3440
    %v4069 = vunpack.c.l.b16 %v3441
    %v4070 = vunpack.c.h.b16 %v3441
    %v4071 = vunpack.c.l.b16 %v3442
    %v4072 = vunpack.c.h.b16 %v3442
    %v4073 = vunpack.c.l.b16 %v3443
    %v4074 = vunpack.c.l.b16 %v3444
    %v4075 = vunpack.c.h.b16 %v3444
    %v4076 = vunpack.c.l.b16 %v3445
    %v4077 = vunpack.c.h.b16 %v3445
    %v4078 = vunpack.c.l.b16 %v3446
    %v4079 = vunpack.c.l.b16 %v3447
    %v4080 = vunpack.c.h.b16 %v3447
    %v4081 = vunpack.c.l.b16 %v3448
    %v4082 = vunpack.c.h.b16 %v3448
    %v4083 = vunpack.c.l.b16 %v3449
    %v4084 = vunpack.c.l.b16 %v3450
    %v4085 = vunpack.c.h.b16 %v3450
    %v4086 = vunpack.c.l.b16 %v3451
    %v4087 = vunpack.c.h.b16 %v3451
    %v4088 = vunpack.c.l.b16 %v3452
    %v4089 = vunpack.c.l.b16 %v3453
    %v4090 = vunpack.c.h.b16 %v3453
    %v4091 = vunpack.c.l.b16 %v3454
    %v4092 = vunpack.c.h.b16 %v3454
    %v4093 = vunpack.c.l.b16 %v3455
    %v4094 = vunpack.c.l.b16 %v3456
    %v4095 = vunpack.c.h.b16 %v3456
    %v4096 = vunpack.c.l.b16 %v3457
    %v4097 = vunpack.c.h.b16 %v3457
    %v4098 = vunpack.c.l.b16 %v3458
    %v4099 = vunpack.c.l.b16 %v3459
    %v4100 = vunpack.c.h.b16 %v3459
    %v4101 = vunpack.c.l.b16 %v3460
    %v4102 = vunpack.c.h.b16 %v3460
    %v4103 = vunpack.c.l.b16 %v3461
    %v4104 = vunpack.c.l.b16 %v3462
    %v4105 = vunpack.c.h.b16 %v3462
    %v4106 = vunpack.c.l.b16 %v3463
    %v4107 = vunpack.c.h.b16 %v3463
    %v4108 = vunpack.c.l.b16 %v3464
    %v4109 = vunpack.c.l.b16 %v3465
    %v4110 = vunpack.c.h.b16 %v3465
    %v4111 = vunpack.c.l.b16 %v3466
    %v4112 = vunpack.c.h.b16 %v3466
    %v4113 = vunpack.c.l.b16 %v3467
    %v4114 = vunpack.c.l.b16 %v3468
    %v4115 = vunpack.c.h.b16 %v3468
    %v4116 = vunpack.c.l.b16 %v3469
    %v4117 = vunpack.c.h.b16 %v3469
    %v4118 = vunpack.c.l.b16 %v3470
    %v4119 = vunpack.c.l.b16 %v3471
    %v4120 = vunpack.c.h.b16 %v3471
    %v4121 = vunpack.c.l.b16 %v3472
    %v4122 = vunpack.c.h.b16 %v3472
    %v4123 = vunpack.c.l.b16 %v3473
    %v4124 = vunpack.c.l.b16 %v3474
    %v4125 = vunpack.c.h.b16 %v3474
    %v4126 = vunpack.c.l.b16 %v3475
    %v4127 = vunpack.c.h.b16 %v3475
    %v4128 = vunpack.c.l.b16 %v3476
    %v4129 = vunpack.c.l.b16 %v3477
    %v4130 = vunpack.c.h.b16 %v3477
    %v4131 = vunpack.c.l.b16 %v3478
    %v4132 = vunpack.c.h.b16 %v3478
    %v4133 = vunpack.c.l.b16 %v3479
    %v4134 = vunpack.c.l.b16 %v3480
    %v4135 = vunpack.c.h.b16 %v3480
    %v4136 = vunpack.c.l.b16 %v3481
    %v4137 = vunpack.c.h.b16 %v3481
    %v4138 = vunpack.c.l.b16 %v3482
    %v4139 = vunpack.c.l.b16 %v3483
    %v4140 = vunpack.c.h.b16 %v3483
    %v4141 = vunpack.c.l.b16 %v3484
    %v4142 = vunpack.c.h.b16 %v3484
    %v4143 = vunpack.c.l.b16 %v3485
    %v4144 = vunpack.c.l.b16 %v3486
    %v4145 = vunpack.c.h.b16 %v3486
    %v4146 = vunpack.c.l.b16 %v3487
    %v4147 = vunpack.c.h.b16 %v3487
    %v4148 = vunpack.c.l.b16 %v3488
    %v4149 = vunpack.c.l.b16 %v3489
    %v4150 = vunpack.c.h.b16 %v3489
    %v4151 = vunpack.c.l.b16 %v3490
    %v4152 = vunpack.c.h.b16 %v3490
    %v4153 = vunpack.c.l.b16 %v3491
    %v4154 = vunpack.c.l.b16 %v3492
    %v4155 = vunpack.c.h.b16 %v3492
    %v4156 = vunpack.c.l.b16 %v3493
    %v4157 = vunpack.c.h.b16 %v3493
    %v4158 = vunpack.c.l.b16 %v3494
    %v4159 = vunpack.c.l.b16 %v3495
    %v4160 = vunpack.c.h.b16 %v3495
    %v4161 = vunpack.c.l.b16 %v3496
    %v4162 = vunpack.c.h.b16 %v3496
    %v4163 = vunpack.c.l.b16 %v3497
    %v4164 = vunpack.c.l.b16 %v3498
    %v4165 = vunpack.c.h.b16 %v3498
    %v4166 = vunpack.c.l.b16 %v3499
    %v4167 = vunpack.c.h.b16 %v3499
    %v4168 = vunpack.c.l.b16 %v3500
    %v4169 = vunpack.c.l.b16 %v3501
    %v4170 = vunpack.c.h.b16 %v3501
    %v4171 = vunpack.c.l.b16 %v3502
    %v4172 = vunpack.c.h.b16 %v3502
    %v4173 = vunpack.c.l.b16 %v3503
    %v4174 = vunpack.c.l.b16 %v3504
    %v4175 = vunpack.c.h.b16 %v3504
    %v4176 = vunpack.c.l.b16 %v3505
    %v4177 = vunpack.c.h.b16 %v3505
    %v4178 = vunpack.c.l.b16 %v3506
    %v4179 = vunpack.c.l.b16 %v3507
    %v4180 = vunpack.c.h.b16 %v3507
    %v4181 = vunpack.c.l.b16 %v3508
    %v4182 = vunpack.c.h.b16 %v3508
    %v4183 = vunpack.c.l.b16 %v3509
    %v4184 = vunpack.c.l.b16 %v3510
    %v4185 = vunpack.c.h.b16 %v3510
    %v4186 = vunpack.c.l.b16 %v3511
    %v4187 = vunpack.c.h.b16 %v3511
    %v4188 = vunpack.c.l.b16 %v3512
    %v4189 = vunpack.c.l.b16 %v3513
    %v4190 = vunpack.c.h.b16 %v3513
    %v4191 = vunpack.c.l.b16 %v3514
    %v4192 = vunpack.c.h.b16 %v3514
    %v4193 = vunpack.c.l.b16 %v3515
    %v4194 = vunpack.c.l.b16 %v3516
    %v4195 = vunpack.c.h.b16 %v3516
    %v4196 = vunpack.c.l.b16 %v3517
    %v4197 = vunpack.c.h.b16 %v3517
    %v4198 = vunpack.c.l.b16 %v3518
    %v4199 = vunpack.c.l.b16 %v3519
    %v4200 = vunpack.c.h.b16 %v3519
    %v4201 = vunpack.c.l.b16 %v3520
    %v4202 = vunpack.c.h.b16 %v3520
    %v4203 = vunpack.c.l.b16 %v3521
    %v4204 = vunpack.c.l.b16 %v3522
    %v4205 = vunpack.c.h.b16 %v3522
    %v4206 = vunpack.c.l.b16 %v3523
    %v4207 = vunpack.c.h.b16 %v3523
    %v4208 = vunpack.c.l.b16 %v3524
    %v4209 = vunpack.c.l.b16 %v3525
    %v4210 = vunpack.c.h.b16 %v3525
    %v4211 = vunpack.c.l.b16 %v3526
    %v4212 = vunpack.c.h.b16 %v3526
    %v4213 = vunpack.c.l.b16 %v3527
    %v4214 = vunpack.c.l.b16 %v3528
    %v4215 = vunpack.c.h.b16 %v3528
    %v4216 = vunpack.c.l.b16 %v3529
    %v4217 = vunpack.c.h.b16 %v3529
    %v4218 = vunpack.c.l.b16 %v3530
    %v4219 = vunpack.c.l.b16 %v3531
    %v4220 = vunpack.c.h.b16 %v3531
    %v4221 = vunpack.c.l.b16 %v3532
    %v4222 = vunpack.c.h.b16 %v3532
    %v4223 = vunpack.c.l.b16 %v3533
    %v4224 = vunpack.c.l.b16 %v3534
    %v4225 = vunpack.c.h.b16 %v3534
    %v4226 = vunpack.c.l.b16 %v3535
    %v4227 = vunpack.c.h.b16 %v3535
    %v4228 = vunpack.c.l.b16 %v3536
    %v4229 = vunpack.c.l.b16 %v3537
    %v4230 = vunpack.c.h.b16 %v3537
    %v4231 = vunpack.c.l.b16 %v3538
    %v4232 = vunpack.c.h.b16 %v3538
    %v4233 = vunpack.c.l.b16 %v3539
    %v4234 = vunpack.c.l.b16 %v3540
    %v4235 = vunpack.c.h.b16 %v3540
    %v4236 = vunpack.c.l.b16 %v3541
    %v4237 = vunpack.c.h.b16 %v3541
    %v4238 = vunpack.c.l.b16 %v3542
    %v4239 = vunpack.c.l.b16 %v3543
    %v4240 = vunpack.c.h.b16 %v3543
    %v4241 = vunpack.c.l.b16 %v3544
    %v4242 = vunpack.c.h.b16 %v3544
    %v4243 = vunpack.c.l.b16 %v3545
    %v4244 = vunpack.c.l.b16 %v3546
    %v4245 = vunpack.c.h.b16 %v3546
    %v4246 = vunpack.c.l.b16 %v3547
    %v4247 = vunpack.c.h.b16 %v3547
    %v4248 = vunpack.c.l.b16 %v3548
    %v4249 = vunpack.c.l.b16 %v3549
    %v4250 = vunpack.c.h.b16 %v3549
    %v4251 = vunpack.c.l.b16 %v3550
    %v4252 = vunpack.c.h.b16 %v3550
    %v4253 = vunpack.c.l.b16 %v3551
    %v4254 = vunpack.c.l.b16 %v3552
    %v4255 = vunpack.c.h.b16 %v3552
    %v4256 = vunpack.c.l.b16 %v3553
    %v4257 = vunpack.c.h.b16 %v3553
    %v4258 = vunpack.c.l.b16 %v3554
    %v4259 = vunpack.c.l.b16 %v3555
    %v4260 = vunpack.c.h.b16 %v3555
    %v4261 = vunpack.c.l.b16 %v3556
    %v4262 = vunpack.c.h.b16 %v3556
    %v4263 = vunpack.c.l.b16 %v3557
    %v4264 = vunpack.c.l.b16 %v3558
    %v4265 = vunpack.c.h.b16 %v3558
    %v4266 = vunpack.c.l.b16 %v3559
    %v4267 = vunpack.c.h.b16 %v3559
    %v4268 = vunpack.c.l.b16 %v3560
    %v4269 = vunpack.c.l.b16 %v3561
    %v4270 = vunpack.c.h.b16 %v3561
    %v4271 = vunpack.c.l.b16 %v3562
    %v4272 = vunpack.c.h.b16 %v3562
    %v4273 = vunpack.c.l.b16 %v3563
    %v4274 = vunpack.c.l.b16 %v3564
    %v4275 = vunpack.c.h.b16 %v3564
    %v4276 = vunpack.c.l.b16 %v3565
    %v4277 = vunpack.c.h.b16 %v3565
    %v4278 = vunpack.c.l.b16 %v3566
    %v4279 = vunpack.c.l.b16 %v3567
    %v4280 = vunpack.c.h.b16 %v3567
    %v4281 = vunpack.c.l.b16 %v3568
    %v4282 = vunpack.c.h.b16 %v3568
    %v4283 = vunpack.c.l.b16 %v3569
    %v4284 = vunpack.c.l.b16 %v3570
    %v4285 = vunpack.c.h.b16 %v3570
    %v4286 = vunpack.c.l.b16 %v3571
    %v4287 = vunpack.c.h.b16 %v3571
    %v4288 = vunpack.c.l.b16 %v3572
    %v4289 = vunpack.c.l.b16 %v3573
    %v4290 = vunpack.c.h.b16 %v3573
    %v4291 = vunpack.c.l.b16 %v3574
    %v4292 = vunpack.c.h.b16 %v3574
    %v4293 = vunpack.c.l.b16 %v3575
    %v4294 = vunpack.c.l.b16 %v3576
    %v4295 = vunpack.c.h.b16 %v3576
    %v4296 = vunpack.c.l.b16 %v3577
    %v4297 = vunpack.c.h.b16 %v3577
    %v4298 = vunpack.c.l.b16 %v3578
    %v4299 = vunpack.c.l.b16 %v3579
    %v4300 = vunpack.c.h.b16 %v3579
    %v4301 = vunpack.c.l.b16 %v3580
    %v4302 = vunpack.c.h.b16 %v3580
    %v4303 = vunpack.c.l.b16 %v3581
    %v4304 = vunpack.c.l.b16 %v3582
    %v4305 = vunpack.c.h.b16 %v3582
    %v4306 = vunpack.c.l.b16 %v3583
    %v4307 = vunpack.c.h.b16 %v3583
    %v4308 = vunpack.c.l.b16 %v3584
    %v4309 = vunpack.c.l.b16 %v3585
    %v4310 = vunpack.c.h.b16 %v3585
    %v4311 = vunpack.c.l.b16 %v3586
    %v4312 = vunpack.c.h.b16 %v3586
    %v4313 = vunpack.c.l.b16 %v3587
    %v4314 = vunpack.c.l.b16 %v3588
    %v4315 = vunpack.c.h.b16 %v3588
    %v4316 = vunpack.c.l.b16 %v3589
    %v4317 = vunpack.c.h.b16 %v3589
    %v4318 = vunpack.c.l.b16 %v3590
    %v4319 = vunpack.c.l.b16 %v3591
    %v4320 = vunpack.c.h.b16 %v3591
    %v4321 = vunpack.c.l.b16 %v3592
    %v4322 = vunpack.c.h.b16 %v3592
    %v4323 = vunpack.c.l.b16 %v3593
    %v4324 = vunpack.c.l.b16 %v3594
    %v4325 = vunpack.c.h.b16 %v3594
    %v4326 = vunpack.c.l.b16 %v3595
    %v4327 = vunpack.c.h.b16 %v3595
    %v4328 = vunpack.c.l.b16 %v3596
    %v4329 = vunpack.c.l.b16 %v3597
    %v4330 = vunpack.c.h.b16 %v3597
    %v4331 = vunpack.c.l.b16 %v3598
    %v4332 = vunpack.c.h.b16 %v3598
    %v4333 = vunpack.c.l.b16 %v3599
    %v4334 = vunpack.c.l.b16 %v3600
    %v4335 = vunpack.c.h.b16 %v3600
    %v4336 = vunpack.c.l.b16 %v3601
    %v4337 = vunpack.c.h.b16 %v3601
    %v4338 = vunpack.c.l.b16 %v3602
    %v4339 = vunpack.c.l.b16 %v3603
    %v4340 = vunpack.c.h.b16 %v3603
    %v4341 = vunpack.c.l.b16 %v3604
    %v4342 = vunpack.c.h.b16 %v3604
    %v4343 = vunpack.c.l.b16 %v3605
    %v4344 = vunpack.c.l.b16 %v3606
    %v4345 = vunpack.c.h.b16 %v3606
    %v4346 = vunpack.c.l.b16 %v3607
    %v4347 = vunpack.c.h.b16 %v3607
    %v4348 = vunpack.c.l.b16 %v3608
    %v4349 = vunpack.c.l.b16 %v3609
    %v4350 = vunpack.c.h.b16 %v3609
    %v4351 = vunpack.c.l.b16 %v3610
    %v4352 = vunpack.c.h.b16 %v3610
    %v4353 = vunpack.c.l.b16 %v3611
    %v4354 = vunpack.c.l.b16 %v3612
    %v4355 = vunpack.c.h.b16 %v3612
    %v4356 = vunpack.c.l.b16 %v3613
    %v4357 = vunpack.c.h.b16 %v3613
    %v4358 = vunpack.c.l.b16 %v3614
    %v4359 = vunpack.c.l.b16 %v3615
    %v4360 = vunpack.c.h.b16 %v3615
    %v4361 = vunpack.c.l.b16 %v3616
    %v4362 = vunpack.c.h.b16 %v3616
    %v4363 = vunpack.c.l.b16 %v3617
    %v4364 = vunpack.c.l.b16 %v3618
    %v4365 = vunpack.c.h.b16 %v3618
    %v4366 = vunpack.c.l.b16 %v3619
    %v4367 = vunpack.c.h.b16 %v3619
    %v4368 = vunpack.c.l.b16 %v3620
    %v4369 = vunpack.c.l.b16 %v3621
    %v4370 = vunpack.c.h.b16 %v3621
    %v4371 = vunpack.c.l.b16 %v3622
    %v4372 = vunpack.c.h.b16 %v3622
    %v4373 = vunpack.c.l.b16 %v3623
    %v4374 = vunpack.c.l.b16 %v3624
    %v4375 = vunpack.c.h.b16 %v3624
    %v4376 = vunpack.c.l.b16 %v3625
    %v4377 = vunpack.c.h.b16 %v3625
    %v4378 = vunpack.c.l.b16 %v3626
    %v4379 = vunpack.c.l.b16 %v3627
    %v4380 = vunpack.c.h.b16 %v3627
    %v4381 = vunpack.c.l.b16 %v3628
    %v4382 = vunpack.c.h.b16 %v3628
    %v4383 = vunpack.c.l.b16 %v3629
    %v4384 = vunpack.c.l.b16 %v3630
    %v4385 = vunpack.c.h.b16 %v3630
    %v4386 = vunpack.c.l.b16 %v3631
    %v4387 = vunpack.c.h.b16 %v3631
    %v4388 = vunpack.c.l.b16 %v3632
    %v4389 = vunpack.c.l.b16 %v3633
    %v4390 = vunpack.c.h.b16 %v3633
    %v4391 = vunpack.c.l.b16 %v3634
    %v4392 = vunpack.c.h.b16 %v3634
    %v4393 = vunpack.c.l.b16 %v3635
    %v4394 = vunpack.c.l.b16 %v3636
    %v4395 = vunpack.c.h.b16 %v3636
    %v4396 = vunpack.c.l.b16 %v3637
    %v4397 = vunpack.c.h.b16 %v3637
    %v4398 = vunpack.c.l.b16 %v3638
    %v4399 = vunpack.c.l.b16 %v3639
    %v4400 = vunpack.c.h.b16 %v3639
    %v4401 = vunpack.c.l.b16 %v3640
    %v4402 = vunpack.c.h.b16 %v3640
    %v4403 = vunpack.c.l.b16 %v3641
    %v4404 = vunpack.c.l.b16 %v3642
    %v4405 = vunpack.c.h.b16 %v3642
    %v4406 = vunpack.c.l.b16 %v3643
    %v4407 = vunpack.c.h.b16 %v3643
    %v4408 = vunpack.c.l.b16 %v3644
    %v4409 = vunpack.c.l.b16 %v3645
    %v4410 = vunpack.c.h.b16 %v3645
    %v4411 = vunpack.c.l.b16 %v3646
    %v4412 = vunpack.c.h.b16 %v3646
    %v4413 = vunpack.c.l.b16 %v3647
    %v4414 = vunpack.c.l.b16 %v3648
    %v4415 = vunpack.c.h.b16 %v3648
    %v4416 = vunpack.c.l.b16 %v3649
    %v4417 = vunpack.c.h.b16 %v3649
    %v4418 = vunpack.c.l.b16 %v3650
    %v4419 = vunpack.c.l.b16 %v3651
    %v4420 = vunpack.c.h.b16 %v3651
    %v4421 = vunpack.c.l.b16 %v3652
    %v4422 = vunpack.c.h.b16 %v3652
    %v4423 = vunpack.c.l.b16 %v3653
    %v4424 = vunpack.c.l.b16 %v3654
    %v4425 = vunpack.c.h.b16 %v3654
    %v4426 = vunpack.c.l.b16 %v3655
    %v4427 = vunpack.c.h.b16 %v3655
    %v4428 = vunpack.c.l.b16 %v3656
    %v4429 = vunpack.c.l.b16 %v3657
    %v4430 = vunpack.c.h.b16 %v3657
    %v4431 = vunpack.c.l.b16 %v3658
    %v4432 = vunpack.c.h.b16 %v3658
    %v4433 = vunpack.c.l.b16 %v3659
    %v4434 = vunpack.c.l.b16 %v3660
    %v4435 = vunpack.c.h.b16 %v3660
    %v4436 = vunpack.c.l.b16 %v3661
    %v4437 = vunpack.c.h.b16 %v3661
    %v4438 = vunpack.c.l.b16 %v3662
    %v4439 = vunpack.c.l.b16 %v3663
    %v4440 = vunpack.c.h.b16 %v3663
    %v4441 = vunpack.c.l.b16 %v3664
    %v4442 = vunpack.c.h.b16 %v3664
    %v4443 = vunpack.c.l.b16 %v3665
    %v4444 = vunpack.c.l.b16 %v3666
    %v4445 = vunpack.c.h.b16 %v3666
    %v4446 = vunpack.c.l.b16 %v3667
    %v4447 = vunpack.c.h.b16 %v3667
    %v4448 = vunpack.c.l.b16 %v3668
    %v4449 = vpack.c.b16 %v3974, %v3969
    %v4450 = vpack.c.b16 %v3975, %v3970
    %v4451 = vpack.c.b16 %v3976, %v3971
    %v4452 = vpack.c.b16 %v3977, %v3972
    %v4453 = vpack.c.b16 %v3978, %v3973
    %v4454 = vpack.c.b16 %v3984, %v3979
    %v4455 = vpack.c.b16 %v3985, %v3980
    %v4456 = vpack.c.b16 %v3986, %v3981
    %v4457 = vpack.c.b16 %v3987, %v3982
    %v4458 = vpack.c.b16 %v3988, %v3983
    %v4459 = vpack.c.b16 %v3994, %v3989
    %v4460 = vpack.c.b16 %v3995, %v3990
    %v4461 = vpack.c.b16 %v3996, %v3991
    %v4462 = vpack.c.b16 %v3997, %v3992
    %v4463 = vpack.c.b16 %v3998, %v3993
    %v4464 = vpack.c.b16 %v4004, %v3999
    %v4465 = vpack.c.b16 %v4005, %v4000
    %v4466 = vpack.c.b16 %v4006, %v4001
    %v4467 = vpack.c.b16 %v4007, %v4002
    %v4468 = vpack.c.b16 %v4008, %v4003
    %v4469 = vpack.c.b16 %v4014, %v4009
    %v4470 = vpack.c.b16 %v4015, %v4010
    %v4471 = vpack.c.b16 %v4016, %v4011
    %v4472 = vpack.c.b16 %v4017, %v4012
    %v4473 = vpack.c.b16 %v4018, %v4013
    %v4474 = vpack.c.b16 %v4024, %v4019
    %v4475 = vpack.c.b16 %v4025, %v4020
    %v4476 = vpack.c.b16 %v4026, %v4021
    %v4477 = vpack.c.b16 %v4027, %v4022
    %v4478 = vpack.c.b16 %v4028, %v4023
    %v4479 = vpack.c.b16 %v4034, %v4029
    %v4480 = vpack.c.b16 %v4035, %v4030
    %v4481 = vpack.c.b16 %v4036, %v4031
    %v4482 = vpack.c.b16 %v4037, %v4032
    %v4483 = vpack.c.b16 %v4038, %v4033
    %v4484 = vpack.c.b16 %v4044, %v4039
    %v4485 = vpack.c.b16 %v4045, %v4040
    %v4486 = vpack.c.b16 %v4046, %v4041
    %v4487 = vpack.c.b16 %v4047, %v4042
    %v4488 = vpack.c.b16 %v4048, %v4043
    %v4489 = vpack.c.b16 %v4054, %v4049
    %v4490 = vpack.c.b16 %v4055, %v4050
    %v4491 = vpack.c.b16 %v4056, %v4051
    %v4492 = vpack.c.b16 %v4057, %v4052
    %v4493 = vpack.c.b16 %v4058, %v4053
    %v4494 = vpack.c.b16 %v4064, %v4059
    %v4495 = vpack.c.b16 %v4065, %v4060
    %v4496 = vpack.c.b16 %v4066, %v4061
    %v4497 = vpack.c.b16 %v4067, %v4062
    %v4498 = vpack.c.b16 %v4068, %v4063
    %v4499 = vpack.c.b16 %v4074, %v4069
    %v4500 = vpack.c.b16 %v4075, %v4070
    %v4501 = vpack.c.b16 %v4076, %v4071
    %v4502 = vpack.c.b16 %v4077, %v4072
    %v4503 = vpack.c.b16 %v4078, %v4073
    %v4504 = vpack.c.b16 %v4084, %v4079
    %v4505 = vpack.c.b16 %v4085, %v4080
    %v4506 = vpack.c.b16 %v4086, %v4081
    %v4507 = vpack.c.b16 %v4087, %v4082
    %v4508 = vpack.c.b16 %v4088, %v4083
    %v4509 = vpack.c.b16 %v4094, %v4089
    %v4510 = vpack.c.b16 %v4095, %v4090
    %v4511 = vpack.c.b16 %v4096, %v4091
    %v4512 = vpack.c.b16 %v4097, %v4092
    %v4513 = vpack.c.b16 %v4098, %v4093
    %v4514 = vpack.c.b16 %v4104, %v4099
    %v4515 = vpack.c.b16 %v4105, %v4100
    %v4516 = vpack.c.b16 %v4106, %v4101
    %v4517 = vpack.c.b16 %v4107, %v4102
    %v4518 = vpack.c.b16 %v4108, %v4103
    %v4519 = vpack.c.b16 %v4114, %v4109
    %v4520 = vpack.c.b16 %v4115, %v4110
    %v4521 = vpack.c.b16 %v4116, %v4111
    %v4522 = vpack.c.b16 %v4117, %v4112
    %v4523 = vpack.c.b16 %v4118, %v4113
    %v4524 = vpack.c.b16 %v4124, %v4119
    %v4525 = vpack.c.b16 %v4125, %v4120
    %v4526 = vpack.c.b16 %v4126, %v4121
    %v4527 = vpack.c.b16 %v4127, %v4122
    %v4528 = vpack.c.b16 %v4128, %v4123
    %v4529 = vpack.c.b16 %v4134, %v4129
    %v4530 = vpack.c.b16 %v4135, %v4130
    %v4531 = vpack.c.b16 %v4136, %v4131
    %v4532 = vpack.c.b16 %v4137, %v4132
    %v4533 = vpack.c.b16 %v4138, %v4133
    %v4534 = vpack.c.b16 %v4144, %v4139
    %v4535 = vpack.c.b16 %v4145, %v4140
    %v4536 = vpack.c.b16 %v4146, %v4141
    %v4537 = vpack.c.b16 %v4147, %v4142
    %v4538 = vpack.c.b16 %v4148, %v4143
    %v4539 = vpack.c.b16 %v4154, %v4149
    %v4540 = vpack.c.b16 %v4155, %v4150
    %v4541 = vpack.c.b16 %v4156, %v4151
    %v4542 = vpack.c.b16 %v4157, %v4152
    %v4543 = vpack.c.b16 %v4158, %v4153
    %v4544 = vpack.c.b16 %v4164, %v4159
    %v4545 = vpack.c.b16 %v4165, %v4160
    %v4546 = vpack.c.b16 %v4166, %v4161
    %v4547 = vpack.c.b16 %v4167, %v4162
    %v4548 = vpack.c.b16 %v4168, %v4163
    %v4549 = vpack.c.b16 %v4174, %v4169
    %v4550 = vpack.c.b16 %v4175, %v4170
    %v4551 = vpack.c.b16 %v4176, %v4171
    %v4552 = vpack.c.b16 %v4177, %v4172
    %v4553 = vpack.c.b16 %v4178, %v4173
    %v4554 = vpack.c.b16 %v4184, %v4179
    %v4555 = vpack.c.b16 %v4185, %v4180
    %v4556 = vpack.c.b16 %v4186, %v4181
    %v4557 = vpack.c.b16 %v4187, %v4182
    %v4558 = vpack.c.b16 %v4188, %v4183
    %v4559 = vpack.c.b16 %v4194, %v4189
    %v4560 = vpack.c.b16 %v4195, %v4190
    %v4561 = vpack.c.b16 %v4196, %v4191
    %v4562 = vpack.c.b16 %v4197, %v4192
    %v4563 = vpack.c.b16 %v4198, %v4193
    %v4564 = vpack.c.b16 %v4204, %v4199
    %v4565 = vpack.c.b16 %v4205, %v4200
    %v4566 = vpack.c.b16 %v4206, %v4201
    %v4567 = vpack.c.b16 %v4207, %v4202
    %v4568 = vpack.c.b16 %v4208, %v4203
    %v4569 = vpack.c.b16 %v4214, %v4209
    %v4570 = vpack.c.b16 %v4215, %v4210
    %v4571 = vpack.c.b16 %v4216, %v4211
    %v4572 = vpack.c.b16 %v4217, %v4212
    %v4573 = vpack.c.b16 %v4218, %v4213
    %v4574 = vpack.c.b16 %v4224, %v4219
    %v4575 = vpack.c.b16 %v4225, %v4220
    %v4576 = vpack.c.b16 %v4226, %v4221
    %v4577 = vpack.c.b16 %v4227, %v4222
    %v4578 = vpack.c.b16 %v4228, %v4223
    %v4579 = vpack.c.b16 %v4234, %v4229
    %v4580 = vpack.c.b16 %v4235, %v4230
    %v4581 = vpack.c.b16 %v4236, %v4231
    %v4582 = vpack.c.b16 %v4237, %v4232
    %v4583 = vpack.c.b16 %v4238, %v4233
    %v4584 = vpack.c.b16 %v4244, %v4239
    %v4585 = vpack.c.b16 %v4245, %v4240
    %v4586 = vpack.c.b16 %v4246, %v4241
    %v4587 = vpack.c.b16 %v4247, %v4242
    %v4588 = vpack.c.b16 %v4248, %v4243
    %v4589 = vpack.c.b16 %v4254, %v4249
    %v4590 = vpack.c.b16 %v4255, %v4250
    %v4591 = vpack.c.b16 %v4256, %v4251
    %v4592 = vpack.c.b16 %v4257, %v4252
    %v4593 = vpack.c.b16 %v4258, %v4253
    %v4594 = vpack.c.b16 %v4264, %v4259
    %v4595 = vpack.c.b16 %v4265, %v4260
    %v4596 = vpack.c.b16 %v4266, %v4261
    %v4597 = vpack.c.b16 %v4267, %v4262
    %v4598 = vpack.c.b16 %v4268, %v4263
    %v4599 = vpack.c.b16 %v4274, %v4269
    %v4600 = vpack.c.b16 %v4275, %v4270
    %v4601 = vpack.c.b16 %v4276, %v4271
    %v4602 = vpack.c.b16 %v4277, %v4272
    %v4603 = vpack.c.b16 %v4278, %v4273
    %v4604 = vpack.c.b16 %v4284, %v4279
    %v4605 = vpack.c.b16 %v4285, %v4280
    %v4606 = vpack.c.b16 %v4286, %v4281
    %v4607 = vpack.c.b16 %v4287, %v4282
    %v4608 = vpack.c.b16 %v4288, %v4283
    %v4609 = vpack.c.b16 %v4294, %v4289
    %v4610 = vpack.c.b16 %v4295, %v4290
    %v4611 = vpack.c.b16 %v4296, %v4291
    %v4612 = vpack.c.b16 %v4297, %v4292
    %v4613 = vpack.c.b16 %v4298, %v4293
    %v4614 = vpack.c.b16 %v4304, %v4299
    %v4615 = vpack.c.b16 %v4305, %v4300
    %v4616 = vpack.c.b16 %v4306, %v4301
    %v4617 = vpack.c.b16 %v4307, %v4302
    %v4618 = vpack.c.b16 %v4308, %v4303
    %v4619 = vpack.c.b16 %v4314, %v4309
    %v4620 = vpack.c.b16 %v4315, %v4310
    %v4621 = vpack.c.b16 %v4316, %v4311
    %v4622 = vpack.c.b16 %v4317, %v4312
    %v4623 = vpack.c.b16 %v4318, %v4313
    %v4624 = vpack.c.b16 %v4324, %v4319
    %v4625 = vpack.c.b16 %v4325, %v4320
    %v4626 = vpack.c.b16 %v4326, %v4321
    %v4627 = vpack.c.b16 %v4327, %v4322
    %v4628 = vpack.c.b16 %v4328, %v4323
    %v4629 = vpack.c.b16 %v4334, %v4329
    %v4630 = vpack.c.b16 %v4335, %v4330
    %v4631 = vpack.c.b16 %v4336, %v4331
    %v4632 = vpack.c.b16 %v4337, %v4332
    %v4633 = vpack.c.b16 %v4338, %v4333
    %v4634 = vpack.c.b16 %v4344, %v4339
    %v4635 = vpack.c.b16 %v4345, %v4340
    %v4636 = vpack.c.b16 %v4346, %v4341
    %v4637 = vpack.c.b16 %v4347, %v4342
    %v4638 = vpack.c.b16 %v4348, %v4343
    %v4639 = vpack.c.b16 %v4354, %v4349
    %v4640 = vpack.c.b16 %v4355, %v4350
    %v4641 = vpack.c.b16 %v4356, %v4351
    %v4642 = vpack.c.b16 %v4357, %v4352
    %v4643 = vpack.c.b16 %v4358, %v4353
    %v4644 = vpack.c.b16 %v4364, %v4359
    %v4645 = vpack.c.b16 %v4365, %v4360
    %v4646 = vpack.c.b16 %v4366, %v4361
    %v4647 = vpack.c.b16 %v4367, %v4362
    %v4648 = vpack.c.b16 %v4368, %v4363
    %v4649 = vpack.c.b16 %v4374, %v4369
    %v4650 = vpack.c.b16 %v4375, %v4370
    %v4651 = vpack.c.b16 %v4376, %v4371
    %v4652 = vpack.c.b16 %v4377, %v4372
    %v4653 = vpack.c.b16 %v4378, %v4373
    %v4654 = vpack.c.b16 %v4384, %v4379
    %v4655 = vpack.c.b16 %v4385, %v4380
    %v4656 = vpack.c.b16 %v4386, %v4381
    %v4657 = vpack.c.b16 %v4387, %v4382
    %v4658 = vpack.c.b16 %v4388, %v4383
    %v4659 = vpack.c.b16 %v4394, %v4389
    %v4660 = vpack.c.b16 %v4395, %v4390
    %v4661 = vpack.c.b16 %v4396, %v4391
    %v4662 = vpack.c.b16 %v4397, %v4392
    %v4663 = vpack.c.b16 %v4398, %v4393
    %v4664 = vpack.c.b16 %v4404, %v4399
    %v4665 = vpack.c.b16 %v4405, %v4400
    %v4666 = vpack.c.b16 %v4406, %v4401
    %v4667 = vpack.c.b16 %v4407, %v4402
    %v4668 = vpack.c.b16 %v4408, %v4403
    %v4669 = vpack.c.b16 %v4414, %v4409
    %v4670 = vpack.c.b16 %v4415, %v4410
    %v4671 = vpack.c.b16 %v4416, %v4411
    %v4672 = vpack.c.b16 %v4417, %v4412
    %v4673 = vpack.c.b16 %v4418, %v4413
    %v4674 = vpack.c.b16 %v4424, %v4419
    %v4675 = vpack.c.b16 %v4425, %v4420
    %v4676 = vpack.c.b16 %v4426, %v4421
    %v4677 = vpack.c.b16 %v4427, %v4422
    %v4678 = vpack.c.b16 %v4428, %v4423
    %v4679 = vpack.c.b16 %v4434, %v4429
    %v4680 = vpack.c.b16 %v4435, %v4430
    %v4681 = vpack.c.b16 %v4436, %v4431
    %v4682 = vpack.c.b16 %v4437, %v4432
    %v4683 = vpack.c.b16 %v4438, %v4433
    %v4684 = vpack.c.b16 %v4444, %v4439
    %v4685 = vpack.c.b16 %v4445, %v4440
    %v4686 = vpack.c.b16 %v4446, %v4441
    %v4687 = vpack.c.b16 %v4447, %v4442
    %v4688 = vpack.c.b16 %v4448, %v4443
    %4929 = vmatpush.bf16.msra.mxu0 %v4484
    %4930 = vmatpush.bf16.msra.mxu0 %v4479
    %4931 = vmatpush.bf16.msra.mxu0 %v4474
    %4932 = vmatpush.bf16.msra.mxu0 %v4469
    %4933 = vmatpush.bf16.msra.mxu0 %v4464
    %4934 = vmatpush.bf16.msra.mxu0 %v4459
    %4935 = vmatpush.bf16.msra.mxu0 %v4454
    %4936 = vmatpush.bf16.msra.mxu0 %v4449
    %4937 = vmatmul.bf16.gmra.mxu0 %v3375
    %v4938 = vpop.f32.mrf.mxu0
    %v4939 = vadd.f32 %v3671, %v4938
    %v4940 = vpop.f32.mrf.mxu0
    %4941 = vdwg.mxu0
    %4942 = vmatpush.bf16.msra.mxu0 %v4524
    %4943 = vmatpush.bf16.msra.mxu0 %v4519
    %4944 = vmatpush.bf16.msra.mxu0 %v4514
    %4945 = vmatpush.bf16.msra.mxu0 %v4509
    %4946 = vmatpush.bf16.msra.mxu0 %v4504
    %4947 = vmatpush.bf16.msra.mxu0 %v4499
    %4948 = vmatpush.bf16.msra.mxu0 %v4494
    %4949 = vmatpush.bf16.msra.mxu0 %v4489
    %4950 = vmatmul.bf16.gmra.mxu0 %v3376
    %v4951 = vpop.f32.mrf.mxu0
    %v4952 = vadd.f32 %v4939, %v4951
    %v4953 = vpop.f32.mrf.mxu0
    %4954 = vdwg.mxu0
    %4955 = vmatpush.bf16.msra.mxu0 %v4564
    %4956 = vmatpush.bf16.msra.mxu0 %v4559
    %4957 = vmatpush.bf16.msra.mxu0 %v4554
    %4958 = vmatpush.bf16.msra.mxu0 %v4549
    %4959 = vmatpush.bf16.msra.mxu0 %v4544
    %4960 = vmatpush.bf16.msra.mxu0 %v4539
    %4961 = vmatpush.bf16.msra.mxu0 %v4534
    %4962 = vmatpush.bf16.msra.mxu0 %v4529
    %4963 = vmatmul.bf16.gmra.mxu0 %v3377
    %v4964 = vpop.f32.mrf.mxu0
    %v4965 = vadd.f32 %v4952, %v4964
    %v4966 = vpop.f32.mrf.mxu0
    %4967 = vdwg.mxu0
    %4968 = vmatpush.bf16.msra.mxu0 %v4604
    %4969 = vmatpush.bf16.msra.mxu0 %v4599
    %4970 = vmatpush.bf16.msra.mxu0 %v4594
    %4971 = vmatpush.bf16.msra.mxu0 %v4589
    %4972 = vmatpush.bf16.msra.mxu0 %v4584
    %4973 = vmatpush.bf16.msra.mxu0 %v4579
    %4974 = vmatpush.bf16.msra.mxu0 %v4574
    %4975 = vmatpush.bf16.msra.mxu0 %v4569
    %4976 = vmatmul.bf16.gmra.mxu0 %v3378
    %v4977 = vpop.f32.mrf.mxu0
    %v4978 = vadd.f32 %v4965, %v4977
    %v4979 = vpop.f32.mrf.mxu0
    %4980 = vdwg.mxu0
    %4981 = vmatpush.bf16.msra.mxu0 %v4644
    %4982 = vmatpush.bf16.msra.mxu0 %v4639
    %4983 = vmatpush.bf16.msra.mxu0 %v4634
    %4984 = vmatpush.bf16.msra.mxu0 %v4629
    %4985 = vmatpush.bf16.msra.mxu0 %v4624
    %4986 = vmatpush.bf16.msra.mxu0 %v4619
    %4987 = vmatpush.bf16.msra.mxu0 %v4614
    %4988 = vmatpush.bf16.msra.mxu0 %v4609
    %4989 = vmatmul.bf16.gmra.mxu0 %v3379
    %v4990 = vpop.f32.mrf.mxu0
    %v4991 = vadd.f32 %v4978, %v4990
    %v4992 = vpop.f32.mrf.mxu0
    %4993 = vdwg.mxu0
    %4994 = vmatpush.bf16.msra.mxu0 %v4684
    %4995 = vmatpush.bf16.msra.mxu0 %v4679
    %4996 = vmatpush.bf16.msra.mxu0 %v4674
    %4997 = vmatpush.bf16.msra.mxu0 %v4669
    %4998 = vmatpush.bf16.msra.mxu0 %v4664
    %4999 = vmatpush.bf16.msra.mxu0 %v4659
    %5000 = vmatpush.bf16.msra.mxu0 %v4654
    %5001 = vmatpush.bf16.msra.mxu0 %v4649
    %5002 = vmatmul.bf16.gmra.mxu0 %v3380
    %v5003 = vpop.f32.mrf.mxu0
    %v5004 = vadd.f32 %v4991, %v5003
    %v5005 = vpop.f32.mrf.mxu0
    %5006 = vdwg.mxu0
    %5007 = vmatpush.bf16.msra.mxu0 %v4485
    %5008 = vmatpush.bf16.msra.mxu0 %v4480
    %5009 = vmatpush.bf16.msra.mxu0 %v4475
    %5010 = vmatpush.bf16.msra.mxu0 %v4470
    %5011 = vmatpush.bf16.msra.mxu0 %v4465
    %5012 = vmatpush.bf16.msra.mxu0 %v4460
    %5013 = vmatpush.bf16.msra.mxu0 %v4455
    %5014 = vmatpush.bf16.msra.mxu0 %v4450
    %5015 = vmatmul.bf16.gmra.mxu0 %v3375
    %v5016 = vpop.f32.mrf.mxu0
    %v5017 = vadd.f32 %v3672, %v5016
    %v5018 = vpop.f32.mrf.mxu0
    %5019 = vdwg.mxu0
    %5020 = vmatpush.bf16.msra.mxu0 %v4525
    %5021 = vmatpush.bf16.msra.mxu0 %v4520
    %5022 = vmatpush.bf16.msra.mxu0 %v4515
    %5023 = vmatpush.bf16.msra.mxu0 %v4510
    %5024 = vmatpush.bf16.msra.mxu0 %v4505
    %5025 = vmatpush.bf16.msra.mxu0 %v4500
    %5026 = vmatpush.bf16.msra.mxu0 %v4495
    %5027 = vmatpush.bf16.msra.mxu0 %v4490
    %5028 = vmatmul.bf16.gmra.mxu0 %v3376
    %v5029 = vpop.f32.mrf.mxu0
    %v5030 = vadd.f32 %v5017, %v5029
    %v5031 = vpop.f32.mrf.mxu0
    %5032 = vdwg.mxu0
    %5033 = vmatpush.bf16.msra.mxu0 %v4565
    %5034 = vmatpush.bf16.msra.mxu0 %v4560
    %5035 = vmatpush.bf16.msra.mxu0 %v4555
    %5036 = vmatpush.bf16.msra.mxu0 %v4550
    %5037 = vmatpush.bf16.msra.mxu0 %v4545
    %5038 = vmatpush.bf16.msra.mxu0 %v4540
    %5039 = vmatpush.bf16.msra.mxu0 %v4535
    %5040 = vmatpush.bf16.msra.mxu0 %v4530
    %5041 = vmatmul.bf16.gmra.mxu0 %v3377
    %v5042 = vpop.f32.mrf.mxu0
    %v5043 = vadd.f32 %v5030, %v5042
    %v5044 = vpop.f32.mrf.mxu0
    %5045 = vdwg.mxu0
    %5046 = vmatpush.bf16.msra.mxu0 %v4605
    %5047 = vmatpush.bf16.msra.mxu0 %v4600
    %5048 = vmatpush.bf16.msra.mxu0 %v4595
    %5049 = vmatpush.bf16.msra.mxu0 %v4590
    %5050 = vmatpush.bf16.msra.mxu0 %v4585
    %5051 = vmatpush.bf16.msra.mxu0 %v4580
    %5052 = vmatpush.bf16.msra.mxu0 %v4575
    %5053 = vmatpush.bf16.msra.mxu0 %v4570
    %5054 = vmatmul.bf16.gmra.mxu0 %v3378
    %v5055 = vpop.f32.mrf.mxu0
    %v5056 = vadd.f32 %v5043, %v5055
    %v5057 = vpop.f32.mrf.mxu0
    %5058 = vdwg.mxu0
    %5059 = vmatpush.bf16.msra.mxu0 %v4645
    %5060 = vmatpush.bf16.msra.mxu0 %v4640
    %5061 = vmatpush.bf16.msra.mxu0 %v4635
    %5062 = vmatpush.bf16.msra.mxu0 %v4630
    %5063 = vmatpush.bf16.msra.mxu0 %v4625
    %5064 = vmatpush.bf16.msra.mxu0 %v4620
    %5065 = vmatpush.bf16.msra.mxu0 %v4615
    %5066 = vmatpush.bf16.msra.mxu0 %v4610
    %5067 = vmatmul.bf16.gmra.mxu0 %v3379
    %v5068 = vpop.f32.mrf.mxu0
    %v5069 = vadd.f32 %v5056, %v5068
    %v5070 = vpop.f32.mrf.mxu0
    %5071 = vdwg.mxu0
    %5072 = vmatpush.bf16.msra.mxu0 %v4685
    %5073 = vmatpush.bf16.msra.mxu0 %v4680
    %5074 = vmatpush.bf16.msra.mxu0 %v4675
    %5075 = vmatpush.bf16.msra.mxu0 %v4670
    %5076 = vmatpush.bf16.msra.mxu0 %v4665
    %5077 = vmatpush.bf16.msra.mxu0 %v4660
    %5078 = vmatpush.bf16.msra.mxu0 %v4655
    %5079 = vmatpush.bf16.msra.mxu0 %v4650
    %5080 = vmatmul.bf16.gmra.mxu0 %v3380
    %v5081 = vpop.f32.mrf.mxu0
    %v5082 = vadd.f32 %v5069, %v5081
    %v5083 = vpop.f32.mrf.mxu0
    %5084 = vdwg.mxu0
    %5085 = vmatpush.bf16.msra.mxu0 %v4486
    %5086 = vmatpush.bf16.msra.mxu0 %v4481
    %5087 = vmatpush.bf16.msra.mxu0 %v4476
    %5088 = vmatpush.bf16.msra.mxu0 %v4471
    %5089 = vmatpush.bf16.msra.mxu0 %v4466
    %5090 = vmatpush.bf16.msra.mxu0 %v4461
    %5091 = vmatpush.bf16.msra.mxu0 %v4456
    %5092 = vmatpush.bf16.msra.mxu0 %v4451
    %5093 = vmatmul.bf16.gmra.mxu0 %v3375
    %v5094 = vpop.f32.mrf.mxu0
    %v5095 = vadd.f32 %v3673, %v5094
    %v5096 = vpop.f32.mrf.mxu0
    %5097 = vdwg.mxu0
    %5098 = vmatpush.bf16.msra.mxu0 %v4526
    %5099 = vmatpush.bf16.msra.mxu0 %v4521
    %5100 = vmatpush.bf16.msra.mxu0 %v4516
    %5101 = vmatpush.bf16.msra.mxu0 %v4511
    %5102 = vmatpush.bf16.msra.mxu0 %v4506
    %5103 = vmatpush.bf16.msra.mxu0 %v4501
    %5104 = vmatpush.bf16.msra.mxu0 %v4496
    %5105 = vmatpush.bf16.msra.mxu0 %v4491
    %5106 = vmatmul.bf16.gmra.mxu0 %v3376
    %v5107 = vpop.f32.mrf.mxu0
    %v5108 = vadd.f32 %v5095, %v5107
    %v5109 = vpop.f32.mrf.mxu0
    %5110 = vdwg.mxu0
    %5111 = vmatpush.bf16.msra.mxu0 %v4566
    %5112 = vmatpush.bf16.msra.mxu0 %v4561
    %5113 = vmatpush.bf16.msra.mxu0 %v4556
    %5114 = vmatpush.bf16.msra.mxu0 %v4551
    %5115 = vmatpush.bf16.msra.mxu0 %v4546
    %5116 = vmatpush.bf16.msra.mxu0 %v4541
    %5117 = vmatpush.bf16.msra.mxu0 %v4536
    %5118 = vmatpush.bf16.msra.mxu0 %v4531
    %5119 = vmatmul.bf16.gmra.mxu0 %v3377
    %v5120 = vpop.f32.mrf.mxu0
    %v5121 = vadd.f32 %v5108, %v5120
    %v5122 = vpop.f32.mrf.mxu0
    %5123 = vdwg.mxu0
    %5124 = vmatpush.bf16.msra.mxu0 %v4606
    %5125 = vmatpush.bf16.msra.mxu0 %v4601
    %5126 = vmatpush.bf16.msra.mxu0 %v4596
    %5127 = vmatpush.bf16.msra.mxu0 %v4591
    %5128 = vmatpush.bf16.msra.mxu0 %v4586
    %5129 = vmatpush.bf16.msra.mxu0 %v4581
    %5130 = vmatpush.bf16.msra.mxu0 %v4576
    %5131 = vmatpush.bf16.msra.mxu0 %v4571
    %5132 = vmatmul.bf16.gmra.mxu0 %v3378
    %v5133 = vpop.f32.mrf.mxu0
    %v5134 = vadd.f32 %v5121, %v5133
    %v5135 = vpop.f32.mrf.mxu0
    %5136 = vdwg.mxu0
    %5137 = vmatpush.bf16.msra.mxu0 %v4646
    %5138 = vmatpush.bf16.msra.mxu0 %v4641
    %5139 = vmatpush.bf16.msra.mxu0 %v4636
    %5140 = vmatpush.bf16.msra.mxu0 %v4631
    %5141 = vmatpush.bf16.msra.mxu0 %v4626
    %5142 = vmatpush.bf16.msra.mxu0 %v4621
    %5143 = vmatpush.bf16.msra.mxu0 %v4616
    %5144 = vmatpush.bf16.msra.mxu0 %v4611
    %5145 = vmatmul.bf16.gmra.mxu0 %v3379
    %v5146 = vpop.f32.mrf.mxu0
    %v5147 = vadd.f32 %v5134, %v5146
    %v5148 = vpop.f32.mrf.mxu0
    %5149 = vdwg.mxu0
    %5150 = vmatpush.bf16.msra.mxu0 %v4686
    %5151 = vmatpush.bf16.msra.mxu0 %v4681
    %5152 = vmatpush.bf16.msra.mxu0 %v4676
    %5153 = vmatpush.bf16.msra.mxu0 %v4671
    %5154 = vmatpush.bf16.msra.mxu0 %v4666
    %5155 = vmatpush.bf16.msra.mxu0 %v4661
    %5156 = vmatpush.bf16.msra.mxu0 %v4656
    %5157 = vmatpush.bf16.msra.mxu0 %v4651
    %5158 = vmatmul.bf16.gmra.mxu0 %v3380
    %v5159 = vpop.f32.mrf.mxu0
    %v5160 = vadd.f32 %v5147, %v5159
    %v5161 = vpop.f32.mrf.mxu0
    %5162 = vdwg.mxu0
    %5163 = vmatpush.bf16.msra.mxu0 %v4487
    %5164 = vmatpush.bf16.msra.mxu0 %v4482
    %5165 = vmatpush.bf16.msra.mxu0 %v4477
    %5166 = vmatpush.bf16.msra.mxu0 %v4472
    %5167 = vmatpush.bf16.msra.mxu0 %v4467
    %5168 = vmatpush.bf16.msra.mxu0 %v4462
    %5169 = vmatpush.bf16.msra.mxu0 %v4457
    %5170 = vmatpush.bf16.msra.mxu0 %v4452
    %5171 = vmatmul.bf16.gmra.mxu0 %v3375
    %v5172 = vpop.f32.mrf.mxu0
    %v5173 = vadd.f32 %v3674, %v5172
    %v5174 = vpop.f32.mrf.mxu0
    %5175 = vdwg.mxu0
    %5176 = vmatpush.bf16.msra.mxu0 %v4527
    %5177 = vmatpush.bf16.msra.mxu0 %v4522
    %5178 = vmatpush.bf16.msra.mxu0 %v4517
    %5179 = vmatpush.bf16.msra.mxu0 %v4512
    %5180 = vmatpush.bf16.msra.mxu0 %v4507
    %5181 = vmatpush.bf16.msra.mxu0 %v4502
    %5182 = vmatpush.bf16.msra.mxu0 %v4497
    %5183 = vmatpush.bf16.msra.mxu0 %v4492
    %5184 = vmatmul.bf16.gmra.mxu0 %v3376
    %v5185 = vpop.f32.mrf.mxu0
    %v5186 = vadd.f32 %v5173, %v5185
    %v5187 = vpop.f32.mrf.mxu0
    %5188 = vdwg.mxu0
    %5189 = vmatpush.bf16.msra.mxu0 %v4567
    %5190 = vmatpush.bf16.msra.mxu0 %v4562
    %5191 = vmatpush.bf16.msra.mxu0 %v4557
    %5192 = vmatpush.bf16.msra.mxu0 %v4552
    %5193 = vmatpush.bf16.msra.mxu0 %v4547
    %5194 = vmatpush.bf16.msra.mxu0 %v4542
    %5195 = vmatpush.bf16.msra.mxu0 %v4537
    %5196 = vmatpush.bf16.msra.mxu0 %v4532
    %5197 = vmatmul.bf16.gmra.mxu0 %v3377
    %v5198 = vpop.f32.mrf.mxu0
    %v5199 = vadd.f32 %v5186, %v5198
    %v5200 = vpop.f32.mrf.mxu0
    %5201 = vdwg.mxu0
    %5202 = vmatpush.bf16.msra.mxu0 %v4607
    %5203 = vmatpush.bf16.msra.mxu0 %v4602
    %5204 = vmatpush.bf16.msra.mxu0 %v4597
    %5205 = vmatpush.bf16.msra.mxu0 %v4592
    %5206 = vmatpush.bf16.msra.mxu0 %v4587
    %5207 = vmatpush.bf16.msra.mxu0 %v4582
    %5208 = vmatpush.bf16.msra.mxu0 %v4577
    %5209 = vmatpush.bf16.msra.mxu0 %v4572
    %5210 = vmatmul.bf16.gmra.mxu0 %v3378
    %v5211 = vpop.f32.mrf.mxu0
    %v5212 = vadd.f32 %v5199, %v5211
    %v5213 = vpop.f32.mrf.mxu0
    %5214 = vdwg.mxu0
    %5215 = vmatpush.bf16.msra.mxu0 %v4647
    %5216 = vmatpush.bf16.msra.mxu0 %v4642
    %5217 = vmatpush.bf16.msra.mxu0 %v4637
    %5218 = vmatpush.bf16.msra.mxu0 %v4632
    %5219 = vmatpush.bf16.msra.mxu0 %v4627
    %5220 = vmatpush.bf16.msra.mxu0 %v4622
    %5221 = vmatpush.bf16.msra.mxu0 %v4617
    %5222 = vmatpush.bf16.msra.mxu0 %v4612
    %5223 = vmatmul.bf16.gmra.mxu0 %v3379
    %v5224 = vpop.f32.mrf.mxu0
    %v5225 = vadd.f32 %v5212, %v5224
    %v5226 = vpop.f32.mrf.mxu0
    %5227 = vdwg.mxu0
    %5228 = vmatpush.bf16.msra.mxu0 %v4687
    %5229 = vmatpush.bf16.msra.mxu0 %v4682
    %5230 = vmatpush.bf16.msra.mxu0 %v4677
    %5231 = vmatpush.bf16.msra.mxu0 %v4672
    %5232 = vmatpush.bf16.msra.mxu0 %v4667
    %5233 = vmatpush.bf16.msra.mxu0 %v4662
    %5234 = vmatpush.bf16.msra.mxu0 %v4657
    %5235 = vmatpush.bf16.msra.mxu0 %v4652
    %5236 = vmatmul.bf16.gmra.mxu0 %v3380
    %v5237 = vpop.f32.mrf.mxu0
    %v5238 = vadd.f32 %v5225, %v5237
    %v5239 = vpop.f32.mrf.mxu0
    %5240 = vdwg.mxu0
    %5241 = vmatpush.bf16.msra.mxu0 %v4488
    %5242 = vmatpush.bf16.msra.mxu0 %v4483
    %5243 = vmatpush.bf16.msra.mxu0 %v4478
    %5244 = vmatpush.bf16.msra.mxu0 %v4473
    %5245 = vmatpush.bf16.msra.mxu0 %v4468
    %5246 = vmatpush.bf16.msra.mxu0 %v4463
    %5247 = vmatpush.bf16.msra.mxu0 %v4458
    %5248 = vmatpush.bf16.msra.mxu0 %v4453
    %5249 = vmatmul.bf16.gmra.mxu0 %v3375
    %v5250 = vpop.f32.mrf.mxu0
    %v5251 = vadd.f32 %v3675, %v5250
    %v5252 = vpop.f32.mrf.mxu0
    %5253 = vdwg.mxu0
    %5254 = vmatpush.bf16.msra.mxu0 %v4528
    %5255 = vmatpush.bf16.msra.mxu0 %v4523
    %5256 = vmatpush.bf16.msra.mxu0 %v4518
    %5257 = vmatpush.bf16.msra.mxu0 %v4513
    %5258 = vmatpush.bf16.msra.mxu0 %v4508
    %5259 = vmatpush.bf16.msra.mxu0 %v4503
    %5260 = vmatpush.bf16.msra.mxu0 %v4498
    %5261 = vmatpush.bf16.msra.mxu0 %v4493
    %5262 = vmatmul.bf16.gmra.mxu0 %v3376
    %v5263 = vpop.f32.mrf.mxu0
    %v5264 = vadd.f32 %v5251, %v5263
    %v5265 = vpop.f32.mrf.mxu0
    %5266 = vdwg.mxu0
    %5267 = vmatpush.bf16.msra.mxu0 %v4568
    %5268 = vmatpush.bf16.msra.mxu0 %v4563
    %5269 = vmatpush.bf16.msra.mxu0 %v4558
    %5270 = vmatpush.bf16.msra.mxu0 %v4553
    %5271 = vmatpush.bf16.msra.mxu0 %v4548
    %5272 = vmatpush.bf16.msra.mxu0 %v4543
    %5273 = vmatpush.bf16.msra.mxu0 %v4538
    %5274 = vmatpush.bf16.msra.mxu0 %v4533
    %5275 = vmatmul.bf16.gmra.mxu0 %v3377
    %v5276 = vpop.f32.mrf.mxu0
    %v5277 = vadd.f32 %v5264, %v5276
    %v5278 = vpop.f32.mrf.mxu0
    %5279 = vdwg.mxu0
    %5280 = vmatpush.bf16.msra.mxu0 %v4608
    %5281 = vmatpush.bf16.msra.mxu0 %v4603
    %5282 = vmatpush.bf16.msra.mxu0 %v4598
    %5283 = vmatpush.bf16.msra.mxu0 %v4593
    %5284 = vmatpush.bf16.msra.mxu0 %v4588
    %5285 = vmatpush.bf16.msra.mxu0 %v4583
    %5286 = vmatpush.bf16.msra.mxu0 %v4578
    %5287 = vmatpush.bf16.msra.mxu0 %v4573
    %5288 = vmatmul.bf16.gmra.mxu0 %v3378
    %v5289 = vpop.f32.mrf.mxu0
    %v5290 = vadd.f32 %v5277, %v5289
    %v5291 = vpop.f32.mrf.mxu0
    %5292 = vdwg.mxu0
    %5293 = vmatpush.bf16.msra.mxu0 %v4648
    %5294 = vmatpush.bf16.msra.mxu0 %v4643
    %5295 = vmatpush.bf16.msra.mxu0 %v4638
    %5296 = vmatpush.bf16.msra.mxu0 %v4633
    %5297 = vmatpush.bf16.msra.mxu0 %v4628
    %5298 = vmatpush.bf16.msra.mxu0 %v4623
    %5299 = vmatpush.bf16.msra.mxu0 %v4618
    %5300 = vmatpush.bf16.msra.mxu0 %v4613
    %5301 = vmatmul.bf16.gmra.mxu0 %v3379
    %v5302 = vpop.f32.mrf.mxu0
    %v5303 = vadd.f32 %v5290, %v5302
    %v5304 = vpop.f32.mrf.mxu0
    %5305 = vdwg.mxu0
    %5306 = vmatpush.bf16.msra.mxu0 %v4688
    %5307 = vmatpush.bf16.msra.mxu0 %v4683
    %5308 = vmatpush.bf16.msra.mxu0 %v4678
    %5309 = vmatpush.bf16.msra.mxu0 %v4673
    %5310 = vmatpush.bf16.msra.mxu0 %v4668
    %5311 = vmatpush.bf16.msra.mxu0 %v4663
    %5312 = vmatpush.bf16.msra.mxu0 %v4658
    %5313 = vmatpush.bf16.msra.mxu0 %v4653
    %5314 = vmatmul.bf16.gmra.mxu0 %v3380
    %v5315 = vpop.f32.mrf.mxu0
    %v5316 = vadd.f32 %v5303, %v5315
    %v5317 = vpop.f32.mrf.mxu0
    %5318 = vdwg.mxu0
    %v5319 = vmax.f32 %v5004, 0.0
    %v5320 = vmax.f32 %v5082, 0.0
    %v5321 = vmax.f32 %v5160, 0.0
    %v5322 = vmax.f32 %v5238, 0.0
    %v5323 = vmax.f32 %v5316, 0.0
    %v5324 = vpack.c.bf16 %v5319, %v5319
    %v5325 = vpack.c.bf16 %v5320, %v5320
    %v5326 = vpack.c.bf16 %v5321, %v5321
    %v5327 = vpack.c.bf16 %v5322, %v5322
    %v5328 = vpack.c.bf16 %v5323, %v5323
    %v5329 = vld [vmem:[#allocation7] sm:$0xf]
    %v5330 = vld [vmem:[#allocation7 + $0x4] sm:$0xf]
    %v5331 = vld [vmem:[#allocation7 + $0x8] sm:$0xf]
    %v5332 = vld [vmem:[#allocation7 + $0xc] sm:$0xf]
    %v5333 = vld [vmem:[#allocation7 + $0x10] sm:$0xf]
    %v5334 = vld [vmem:[#allocation7 + $0x14] sm:$0xf]
    %v5335 = vld [vmem:[#allocation7 + $0x18] sm:$0xf]
    %v5336 = vld [vmem:[#allocation7 + $0x1c] sm:$0xf]
    %v5337 = vld [vmem:[#allocation7 + $0x20] sm:$0xf]
    %v5338 = vld [vmem:[#allocation7 + $0x24] sm:$0xf]
    %v5339 = vld [vmem:[#allocation7 + $0x28] sm:$0xf]
    %v5340 = vld [vmem:[#allocation7 + $0x2c] sm:$0xf]
    %v5341 = vld [vmem:[#allocation7 + $0x30] sm:$0xf]
    %v5342 = vld [vmem:[#allocation7 + $0x34] sm:$0xf]
    %v5343 = vld [vmem:[#allocation7 + $0x38] sm:$0xf]
    %v5344 = vld [vmem:[#allocation7 + $0x3c] sm:$0xf]
    %v5345 = vld [vmem:[#allocation7 + $0x40] sm:$0xf]
    %v5346 = vld [vmem:[#allocation7 + $0x44] sm:$0xf]
    %v5347 = vld [vmem:[#allocation7 + $0x48] sm:$0xf]
    %v5348 = vld [vmem:[#allocation7 + $0x4c] sm:$0xf]
    %v5349 = vld [vmem:[#allocation7 + $0x50] sm:$0xf]
    %v5350 = vld [vmem:[#allocation7 + $0x54] sm:$0xf]
    %v5351 = vld [vmem:[#allocation7 + $0x58] sm:$0xf]
    %v5352 = vld [vmem:[#allocation7 + $0x5c] sm:$0xf]
    %v5353 = vld [vmem:[#allocation7 + $0x60] sm:$0xf]
    %v5354 = vld [vmem:[#allocation7 + $0x64] sm:$0xf]
    %v5355 = vld [vmem:[#allocation7 + $0x68] sm:$0xf]
    %v5356 = vld [vmem:[#allocation7 + $0x6c] sm:$0xf]
    %v5357 = vld [vmem:[#allocation7 + $0x70] sm:$0xf]
    %v5358 = vld [vmem:[#allocation7 + $0x74] sm:$0xf]
    %v5359 = vld [vmem:[#allocation7 + $0x78] sm:$0xf]
    %v5360 = vld [vmem:[#allocation7 + $0x7c] sm:$0xf]
    %v5361 = vld [vmem:[#allocation7 + $0x80] sm:$0xf]
    %v5362 = vld [vmem:[#allocation7 + $0x84] sm:$0xf]
    %v5363 = vld [vmem:[#allocation7 + $0x88] sm:$0xf]
    %v5364 = vld [vmem:[#allocation7 + $0x8c] sm:$0xf]
    %v5365 = vld [vmem:[#allocation7 + $0x90] sm:$0xf]
    %v5366 = vld [vmem:[#allocation7 + $0x94] sm:$0xf]
    %v5367 = vld [vmem:[#allocation7 + $0x98] sm:$0xf]
    %v5368 = vld [vmem:[#allocation7 + $0x9c] sm:$0xf]
    %v5369 = vld [vmem:[#allocation7 + $0xa0] sm:$0xf]
    %v5370 = vld [vmem:[#allocation7 + $0xa4] sm:$0xf]
    %v5371 = vld [vmem:[#allocation7 + $0xa8] sm:$0xf]
    %v5372 = vld [vmem:[#allocation7 + $0xac] sm:$0xf]
    %v5373 = vld [vmem:[#allocation7 + $0xb0] sm:$0xf]
    %v5374 = vld [vmem:[#allocation7 + $0xb4] sm:$0xf]
    %v5375 = vld [vmem:[#allocation7 + $0xb8] sm:$0xf]
    %v5376 = vld [vmem:[#allocation7 + $0xbc] sm:$0xf]
    %v5377 = vld [vmem:[#allocation7 + $0xc0] sm:$0xf]
    %v5378 = vld [vmem:[#allocation7 + $0xc4] sm:$0xf]
    %v5379 = vld [vmem:[#allocation7 + $0xc8] sm:$0xf]
    %v5380 = vld [vmem:[#allocation7 + $0xcc] sm:$0xf]
    %v5381 = vld [vmem:[#allocation7 + $0xd0] sm:$0xf]
    %v5382 = vld [vmem:[#allocation7 + $0xd4] sm:$0xf]
    %v5383 = vld [vmem:[#allocation7 + $0xd8] sm:$0xf]
    %v5384 = vld [vmem:[#allocation7 + $0xdc] sm:$0xf]
    %v5385 = vld [vmem:[#allocation7 + $0xe0] sm:$0xf]
    %v5386 = vld [vmem:[#allocation7 + $0xe4] sm:$0xf]
    %v5387 = vld [vmem:[#allocation7 + $0xe8] sm:$0xf]
    %v5388 = vld [vmem:[#allocation7 + $0xec] sm:$0xf]
    %v5389 = vld [vmem:[#allocation7 + $0xf0] sm:$0xf]
    %v5390 = vld [vmem:[#allocation7 + $0xf4] sm:$0xf]
    %v5391 = vld [vmem:[#allocation7 + $0xf8] sm:$0xf]
    %v5392 = vld [vmem:[#allocation7 + $0xfc] sm:$0xf]
    %v5393 = vld [vmem:[#allocation7 + $0x100] sm:$0xf]
    %v5394 = vld [vmem:[#allocation7 + $0x104] sm:$0xf]
    %v5395 = vld [vmem:[#allocation7 + $0x108] sm:$0xf]
    %v5396 = vld [vmem:[#allocation7 + $0x10c] sm:$0xf]
    %v5397 = vld [vmem:[#allocation7 + $0x110] sm:$0xf]
    %v5398 = vld [vmem:[#allocation7 + $0x114] sm:$0xf]
    %v5399 = vld [vmem:[#allocation7 + $0x118] sm:$0xf]
    %v5400 = vld [vmem:[#allocation7 + $0x11c] sm:$0xf]
    %v5401 = vld [vmem:[#allocation7 + $0x120] sm:$0xf]
    %v5402 = vld [vmem:[#allocation7 + $0x124] sm:$0xf]
    %v5403 = vld [vmem:[#allocation7 + $0x128] sm:$0xf]
    %v5404 = vld [vmem:[#allocation7 + $0x12c] sm:$0xf]
    %v5405 = vld [vmem:[#allocation7 + $0x130] sm:$0xf]
    %v5406 = vld [vmem:[#allocation7 + $0x134] sm:$0xf]
    %v5407 = vld [vmem:[#allocation7 + $0x138] sm:$0xf]
    %v5408 = vld [vmem:[#allocation7 + $0x13c] sm:$0xf]
    %v5409 = vld [vmem:[%s10] sm:$0x1]
    %v5411 = vperm.slane %v5409, 0
    %v5493 = vunpack.c.l.b16 %v5329
    %v5494 = vunpack.c.l.b16 %v5330
    %v5495 = vunpack.c.l.b16 %v5331
    %v5496 = vunpack.c.l.b16 %v5332
    %v5497 = vunpack.c.l.b16 %v5333
    %v5498 = vunpack.c.l.b16 %v5334
    %v5499 = vunpack.c.l.b16 %v5335
    %v5500 = vunpack.c.l.b16 %v5336
    %v5501 = vunpack.c.l.b16 %v5337
    %v5502 = vunpack.c.l.b16 %v5338
    %v5503 = vunpack.c.l.b16 %v5339
    %v5504 = vunpack.c.l.b16 %v5340
    %v5505 = vunpack.c.l.b16 %v5341
    %v5506 = vunpack.c.l.b16 %v5342
    %v5507 = vunpack.c.l.b16 %v5343
    %v5508 = vunpack.c.l.b16 %v5344
    %v5509 = vunpack.c.l.b16 %v5345
    %v5510 = vunpack.c.l.b16 %v5346
    %v5511 = vunpack.c.l.b16 %v5347
    %v5512 = vunpack.c.l.b16 %v5348
    %v5513 = vunpack.c.l.b16 %v5349
    %v5514 = vunpack.c.l.b16 %v5350
    %v5515 = vunpack.c.l.b16 %v5351
    %v5516 = vunpack.c.l.b16 %v5352
    %v5517 = vunpack.c.l.b16 %v5353
    %v5518 = vunpack.c.l.b16 %v5354
    %v5519 = vunpack.c.l.b16 %v5355
    %v5520 = vunpack.c.l.b16 %v5356
    %v5521 = vunpack.c.l.b16 %v5357
    %v5522 = vunpack.c.l.b16 %v5358
    %v5523 = vunpack.c.l.b16 %v5359
    %v5524 = vunpack.c.l.b16 %v5360
    %v5525 = vunpack.c.l.b16 %v5361
    %v5526 = vunpack.c.l.b16 %v5362
    %v5527 = vunpack.c.l.b16 %v5363
    %v5528 = vunpack.c.l.b16 %v5364
    %v5529 = vunpack.c.l.b16 %v5365
    %v5530 = vunpack.c.l.b16 %v5366
    %v5531 = vunpack.c.l.b16 %v5367
    %v5532 = vunpack.c.l.b16 %v5368
    %v5533 = vunpack.c.l.b16 %v5369
    %v5534 = vunpack.c.l.b16 %v5370
    %v5535 = vunpack.c.l.b16 %v5371
    %v5536 = vunpack.c.l.b16 %v5372
    %v5537 = vunpack.c.l.b16 %v5373
    %v5538 = vunpack.c.l.b16 %v5374
    %v5539 = vunpack.c.l.b16 %v5375
    %v5540 = vunpack.c.l.b16 %v5376
    %v5541 = vunpack.c.l.b16 %v5377
    %v5542 = vunpack.c.l.b16 %v5378
    %v5543 = vunpack.c.l.b16 %v5379
    %v5544 = vunpack.c.l.b16 %v5380
    %v5545 = vunpack.c.l.b16 %v5381
    %v5546 = vunpack.c.l.b16 %v5382
    %v5547 = vunpack.c.l.b16 %v5383
    %v5548 = vunpack.c.l.b16 %v5384
    %v5549 = vunpack.c.l.b16 %v5385
    %v5550 = vunpack.c.l.b16 %v5386
    %v5551 = vunpack.c.l.b16 %v5387
    %v5552 = vunpack.c.l.b16 %v5388
    %v5553 = vunpack.c.l.b16 %v5389
    %v5554 = vunpack.c.l.b16 %v5390
    %v5555 = vunpack.c.l.b16 %v5391
    %v5556 = vunpack.c.l.b16 %v5392
    %v5557 = vunpack.c.l.b16 %v5393
    %v5558 = vunpack.c.l.b16 %v5394
    %v5559 = vunpack.c.l.b16 %v5395
    %v5560 = vunpack.c.l.b16 %v5396
    %v5561 = vunpack.c.l.b16 %v5397
    %v5562 = vunpack.c.l.b16 %v5398
    %v5563 = vunpack.c.l.b16 %v5399
    %v5564 = vunpack.c.l.b16 %v5400
    %v5565 = vunpack.c.l.b16 %v5401
    %v5566 = vunpack.c.l.b16 %v5402
    %v5567 = vunpack.c.l.b16 %v5403
    %v5568 = vunpack.c.l.b16 %v5404
    %v5569 = vunpack.c.l.b16 %v5405
    %v5570 = vunpack.c.l.b16 %v5406
    %v5571 = vunpack.c.l.b16 %v5407
    %v5572 = vunpack.c.l.b16 %v5408
    %v5573 = vpack.c.b16 %v5494, %v5493
    %v5574 = vpack.c.b16 %v5496, %v5495
    %v5575 = vpack.c.b16 %v5498, %v5497
    %v5576 = vpack.c.b16 %v5500, %v5499
    %v5577 = vpack.c.b16 %v5502, %v5501
    %v5578 = vpack.c.b16 %v5504, %v5503
    %v5579 = vpack.c.b16 %v5506, %v5505
    %v5580 = vpack.c.b16 %v5508, %v5507
    %v5581 = vpack.c.b16 %v5510, %v5509
    %v5582 = vpack.c.b16 %v5512, %v5511
    %v5583 = vpack.c.b16 %v5514, %v5513
    %v5584 = vpack.c.b16 %v5516, %v5515
    %v5585 = vpack.c.b16 %v5518, %v5517
    %v5586 = vpack.c.b16 %v5520, %v5519
    %v5587 = vpack.c.b16 %v5522, %v5521
    %v5588 = vpack.c.b16 %v5524, %v5523
    %v5589 = vpack.c.b16 %v5526, %v5525
    %v5590 = vpack.c.b16 %v5528, %v5527
    %v5591 = vpack.c.b16 %v5530, %v5529
    %v5592 = vpack.c.b16 %v5532, %v5531
    %v5593 = vpack.c.b16 %v5534, %v5533
    %v5594 = vpack.c.b16 %v5536, %v5535
    %v5595 = vpack.c.b16 %v5538, %v5537
    %v5596 = vpack.c.b16 %v5540, %v5539
    %v5597 = vpack.c.b16 %v5542, %v5541
    %v5598 = vpack.c.b16 %v5544, %v5543
    %v5599 = vpack.c.b16 %v5546, %v5545
    %v5600 = vpack.c.b16 %v5548, %v5547
    %v5601 = vpack.c.b16 %v5550, %v5549
    %v5602 = vpack.c.b16 %v5552, %v5551
    %v5603 = vpack.c.b16 %v5554, %v5553
    %v5604 = vpack.c.b16 %v5556, %v5555
    %v5605 = vpack.c.b16 %v5558, %v5557
    %v5606 = vpack.c.b16 %v5560, %v5559
    %v5607 = vpack.c.b16 %v5562, %v5561
    %v5608 = vpack.c.b16 %v5564, %v5563
    %v5609 = vpack.c.b16 %v5566, %v5565
    %v5610 = vpack.c.b16 %v5568, %v5567
    %v5611 = vpack.c.b16 %v5570, %v5569
    %v5612 = vpack.c.b16 %v5572, %v5571
    %5653 = vmatpush.bf16.msra.mxu0 %v5580
    %5654 = vmatpush.bf16.msra.mxu0 %v5579
    %5655 = vmatpush.bf16.msra.mxu0 %v5578
    %5656 = vmatpush.bf16.msra.mxu0 %v5577
    %5657 = vmatpush.bf16.msra.mxu0 %v5576
    %5658 = vmatpush.bf16.msra.mxu0 %v5575
    %5659 = vmatpush.bf16.msra.mxu0 %v5574
    %5660 = vmatpush.bf16.msra.mxu0 %v5573
    %5661 = vmatmul.bf16.gmra.mxu0 %v5324
    %v5662 = vpop.f32.mrf.mxu0
    %v5663 = vadd.f32 %v5411, %v5662
    %v5664 = vpop.f32.mrf.mxu0
    %5665 = vdwg.mxu0
    %5666 = vmatpush.bf16.msra.mxu0 %v5588
    %5667 = vmatpush.bf16.msra.mxu0 %v5587
    %5668 = vmatpush.bf16.msra.mxu0 %v5586
    %5669 = vmatpush.bf16.msra.mxu0 %v5585
    %5670 = vmatpush.bf16.msra.mxu0 %v5584
    %5671 = vmatpush.bf16.msra.mxu0 %v5583
    %5672 = vmatpush.bf16.msra.mxu0 %v5582
    %5673 = vmatpush.bf16.msra.mxu0 %v5581
    %5674 = vmatmul.bf16.gmra.mxu0 %v5325
    %v5675 = vpop.f32.mrf.mxu0
    %v5676 = vadd.f32 %v5663, %v5675
    %v5677 = vpop.f32.mrf.mxu0
    %5678 = vdwg.mxu0
    %5679 = vmatpush.bf16.msra.mxu0 %v5596
    %5680 = vmatpush.bf16.msra.mxu0 %v5595
    %5681 = vmatpush.bf16.msra.mxu0 %v5594
    %5682 = vmatpush.bf16.msra.mxu0 %v5593
    %5683 = vmatpush.bf16.msra.mxu0 %v5592
    %5684 = vmatpush.bf16.msra.mxu0 %v5591
    %5685 = vmatpush.bf16.msra.mxu0 %v5590
    %5686 = vmatpush.bf16.msra.mxu0 %v5589
    %5687 = vmatmul.bf16.gmra.mxu0 %v5326
    %v5688 = vpop.f32.mrf.mxu0
    %v5689 = vadd.f32 %v5676, %v5688
    %v5690 = vpop.f32.mrf.mxu0
    %5691 = vdwg.mxu0
    %5692 = vmatpush.bf16.msra.mxu0 %v5604
    %5693 = vmatpush.bf16.msra.mxu0 %v5603
    %5694 = vmatpush.bf16.msra.mxu0 %v5602
    %5695 = vmatpush.bf16.msra.mxu0 %v5601
    %5696 = vmatpush.bf16.msra.mxu0 %v5600
    %5697 = vmatpush.bf16.msra.mxu0 %v5599
    %5698 = vmatpush.bf16.msra.mxu0 %v5598
    %5699 = vmatpush.bf16.msra.mxu0 %v5597
    %5700 = vmatmul.bf16.gmra.mxu0 %v5327
    %v5701 = vpop.f32.mrf.mxu0
    %v5702 = vadd.f32 %v5689, %v5701
    %v5703 = vpop.f32.mrf.mxu0
    %5704 = vdwg.mxu0
    %5705 = vmatpush.bf16.msra.mxu0 %v5612
    %5706 = vmatpush.bf16.msra.mxu0 %v5611
    %5707 = vmatpush.bf16.msra.mxu0 %v5610
    %5708 = vmatpush.bf16.msra.mxu0 %v5609
    %5709 = vmatpush.bf16.msra.mxu0 %v5608
    %5710 = vmatpush.bf16.msra.mxu0 %v5607
    %5711 = vmatpush.bf16.msra.mxu0 %v5606
    %5712 = vmatpush.bf16.msra.mxu0 %v5605
    %5713 = vmatmul.bf16.gmra.mxu0 %v5328
    %v5714 = vpop.f32.mrf.mxu0
    %v5715 = vadd.f32 %v5702, %v5714
    %v5716 = vpop.f32.mrf.mxu0
    %5717 = vdwg.mxu0
    %v5718 = vmax.f32 %v5715, 0.0
    %v5719 = vpack.c.bf16 %v5718, %v5718
    %v5720 = vld [vmem:[#allocation9] sm:$0xf]
    %v5721 = vld [vmem:[#allocation9 + $0x4] sm:$0xf]
    %v5722 = vld [vmem:[#allocation9 + $0x8] sm:$0xf]
    %v5723 = vld [vmem:[#allocation9 + $0xc] sm:$0xf]
    %v5724 = vld [vmem:[#allocation9 + $0x10] sm:$0xf]
    %v5725 = vld [vmem:[#allocation9 + $0x14] sm:$0xf]
    %v5726 = vld [vmem:[#allocation9 + $0x18] sm:$0xf]
    %v5727 = vld [vmem:[#allocation9 + $0x1c] sm:$0xf]
    %v5728 = vld [vmem:[#allocation9 + $0x20] sm:$0xf]
    %v5729 = vld [vmem:[#allocation9 + $0x24] sm:$0xf]
    %v5730 = vld [vmem:[#allocation9 + $0x28] sm:$0xf]
    %v5731 = vld [vmem:[#allocation9 + $0x2c] sm:$0xf]
    %v5732 = vld [vmem:[#allocation9 + $0x30] sm:$0xf]
    %v5733 = vld [vmem:[#allocation9 + $0x34] sm:$0xf]
    %v5734 = vld [vmem:[#allocation9 + $0x38] sm:$0xf]
    %v5735 = vld [vmem:[#allocation9 + $0x3c] sm:$0xf]
    %v5736 = vld [vmem:[%s12] sm:$0x1]
    %v5738 = vperm.slane %v5736, 0
    %v5756 = vunpack.c.l.b16 %v5720
    %v5757 = vunpack.c.l.b16 %v5721
    %v5758 = vunpack.c.l.b16 %v5722
    %v5759 = vunpack.c.l.b16 %v5723
    %v5760 = vunpack.c.l.b16 %v5724
    %v5761 = vunpack.c.l.b16 %v5725
    %v5762 = vunpack.c.l.b16 %v5726
    %v5763 = vunpack.c.l.b16 %v5727
    %v5764 = vunpack.c.l.b16 %v5728
    %v5765 = vunpack.c.l.b16 %v5729
    %v5766 = vunpack.c.l.b16 %v5730
    %v5767 = vunpack.c.l.b16 %v5731
    %v5768 = vunpack.c.l.b16 %v5732
    %v5769 = vunpack.c.l.b16 %v5733
    %v5770 = vunpack.c.l.b16 %v5734
    %v5771 = vunpack.c.l.b16 %v5735
    %v5772 = vpack.c.b16 %v5757, %v5756
    %v5773 = vpack.c.b16 %v5759, %v5758
    %v5774 = vpack.c.b16 %v5761, %v5760
    %v5775 = vpack.c.b16 %v5763, %v5762
    %v5776 = vpack.c.b16 %v5765, %v5764
    %v5777 = vpack.c.b16 %v5767, %v5766
    %v5778 = vpack.c.b16 %v5769, %v5768
    %v5779 = vpack.c.b16 %v5771, %v5770
    %5788 = vmatpush.bf16.msra.mxu0 %v5779
    %5789 = vmatpush.bf16.msra.mxu0 %v5778
    %5790 = vmatpush.bf16.msra.mxu0 %v5777
    %5791 = vmatpush.bf16.msra.mxu0 %v5776
    %5792 = vmatpush.bf16.msra.mxu0 %v5775
    %5793 = vmatpush.bf16.msra.mxu0 %v5774
    %5794 = vmatpush.bf16.msra.mxu0 %v5773
    %5795 = vmatpush.bf16.msra.mxu0 %v5772
    %5796 = vmatmul.bf16.gmra.mxu0 %v5719
    %v5797 = vpop.f32.mrf.mxu0
    %v5798 = vadd.f32 %v5738, %v5797
    %v5799 = vpop.f32.mrf.mxu0
    %5800 = vdwg.mxu0
    %5801 = vmax.xlane.f32.xlu0 %v5798
    %v5802 = vpop.xlane.xlu0 %5801
    %v5803 = vsub.f32 %v5798, %v5802
    %v5804 = vmul.f32 %v5803, 1.442695
    %v5805 = vpow.pop %v5804
    %5806 = vadd.xlane.f32.xlu0 %v5805
    %v5807 = vpop.xlane.xlu0 %5806
    %v5808 = vlog2.pop %v5807
    %v5809 = vmul.f32 %v5808, 0.6931472
    %v5810 = vsub.f32 %v5803, %v5809
    %5811 = vst [vmem:[%s13] sm:$0xff] %v5810
    // Predicated region
    $region74: #{cnn_forward.1} parent=1 // pred_check
      _
    $region75: #{cnn_forward.1} parent=1 // pred_check_branch
      %5813 = sbr.rel (0) target = $region77
    $region76: #{cnn_forward.1} parent=1 // pred_region
      _
    $region77: #{cnn_forward.1} parent=1 // pred_fallthru
      _
    // Predicated region
    $region78: #{cnn_forward.1} parent=1 // pred_check
      _
    $region79: #{cnn_forward.1} parent=1 // pred_check_branch
      %5815 = sbr.rel (0) target = $region81
    $region80: #{cnn_forward.1} parent=1 // pred_region
      _
    $region81: #{cnn_forward.1} parent=1 // pred_fallthru
      _
    %5816 = vsyncpa [#allocation3], 1
    %5817 = vsyncpa [#allocation5], 1
    %5818 = vsyncpa [#allocation8], 1

</llo_original>
